<compile_context>
chip_gen: v7x
topology: tpu7x:2x2x1
jax: 0.10.0
libtpu: 0.0.40
codegen_flags: <defaults>
</compile_context>

<pallas_src>
import jax
import jax.numpy as jnp
from jax.experimental import pallas as pl
from jax.experimental.pallas import tpu as pltpu


def avg_pool_head2_kernel(x_ref, w1_ref, b1_ref, w2_ref, b2_ref, w3_ref, b3_ref,
                          o_ref, h1_ref, acc_ref):
    j = pl.program_id(0)

    # First grid step: fc1 (+ folded BN) + ReLU into resident VMEM scratch,
    # zero the fc3 accumulator.
    @pl.when(j == 0)
    def _():
        h1 = jnp.dot(x_ref[...], w1_ref[...],
                     preferred_element_type=jnp.float32) + b1_ref[...]
        h1_ref[...] = jnp.maximum(h1, 0.0).astype(h1_ref.dtype)
        acc_ref[...] = jnp.zeros_like(acc_ref)

    # fc2 tile (+ folded BN) + ReLU, then accumulate its contribution to fc3.
    h2 = jnp.dot(h1_ref[...], w2_ref[...],
                 preferred_element_type=jnp.float32) + b2_ref[...]
    h2 = jnp.maximum(h2, 0.0)
    acc_ref[...] += jnp.dot(h2.astype(jnp.bfloat16), w3_ref[...],
                            preferred_element_type=jnp.float32)

    # Last grid step: add fc3 bias and write the output.
    @pl.when(j == pl.num_programs(0) - 1)
    def _():
        o_ref[...] = acc_ref[...] + b3_ref[...]


def avg_pool_head2(x_nchw, params, *, tile_n=512):
    """x_nchw: (N, C, H, W) float32 with H == W == fea_map_size."""
    N, C, _, _ = x_nchw.shape

    # Average pool over the full feature map in the wrapper (tiny DMA into kernel).
    pooled = jnp.mean(x_nchw.astype(jnp.float32), axis=(2, 3)).astype(jnp.bfloat16)

    w1, b1 = params["w1"], params["b1"]
    w2, b2 = params["w2"], params["b2"]
    w3, b3 = params["w3"], params["b3"]
    hidden = w2.shape[0]
    out_channels = w3.shape[1]
    assert hidden % tile_n == 0, "hidden must be divisible by tile_n"
    n_tiles = hidden // tile_n

    flops = 2 * N * (C * hidden + hidden * hidden + hidden * out_channels)
    bytes_accessed = (pooled.size * 2
                      + (w1.size + w2.size + w3.size) * 2          # bf16 weights
                      + (b1.size + b2.size + b3.size) * 4          # f32 biases
                      + N * out_channels * 4)                      # f32 output

    grid_spec = pltpu.PrefetchScalarGridSpec(
        num_scalar_prefetch=0,
        grid=(n_tiles,),
        in_specs=[
            pl.BlockSpec((N, C), lambda j: (0, 0)),                 # pooled x (resident)
            pl.BlockSpec((C, hidden), lambda j: (0, 0)),            # w1 (resident)
            pl.BlockSpec((1, hidden), lambda j: (0, 0)),            # b1 (resident)
            pl.BlockSpec((hidden, tile_n), lambda j: (0, j)),       # w2 tile (streamed)
            pl.BlockSpec((1, tile_n), lambda j: (0, j)),            # b2 tile (streamed)
            pl.BlockSpec((tile_n, out_channels), lambda j: (j, 0)), # w3 tile (streamed)
            pl.BlockSpec((1, out_channels), lambda j: (0, 0)),      # b3 (resident)
        ],
        out_specs=pl.BlockSpec((N, out_channels), lambda j: (0, 0)),
        scratch_shapes=[
            pltpu.VMEM((N, hidden), jnp.bfloat16),   # h1 (post-ReLU activations)
            pltpu.VMEM((N, out_channels), jnp.float32),  # fc3 accumulator
        ],
    )

    return pl.pallas_call(
        avg_pool_head2_kernel,
        out_shape=jax.ShapeDtypeStruct((N, out_channels), jnp.float32),
        grid_spec=grid_spec,
        compiler_params=pltpu.CompilerParams(
            dimension_semantics=("arbitrary",),   # reduction axis (output accumulator)
            vmem_limit_bytes=40 << 20,            # fits v7x's 64 MiB physical VMEM
        ),
        cost_estimate=pl.CostEstimate(flops=flops, transcendentals=0,
                                      bytes_accessed=bytes_accessed),
    )(pooled, w1, b1, w2, b2, w3, b3)


def make_params(key, in_channels, out_channels, hidden=2048, eps=1e-5):
    """Deterministic synthetic PyTorch-style params.

    Returns (kernel_params, f32_params): kernel_params has BN folded into the
    Linear weights and weights cast to bf16; f32_params keeps the original
    (unfused, f32) parameters for the reference computation.
    """
    ks = jax.random.split(key, 10)

    def linear(kw, kb, fan_in, fan_out):
        bound = 1.0 / jnp.sqrt(fan_in)
        w = jax.random.uniform(kw, (fan_in, fan_out), jnp.float32, -bound, bound)
        b = jax.random.uniform(kb, (1, fan_out), jnp.float32, -bound, bound)
        return w, b

    w1, b1 = linear(ks[0], ks[1], in_channels, hidden)
    w2, b2 = linear(ks[2], ks[3], hidden, hidden)
    w3, b3 = linear(ks[4], ks[5], hidden, out_channels)

    def bn_fold(kg, kb, n):
        gamma = 1.0 + 0.1 * jax.random.normal(kg, (1, n), jnp.float32)
        beta = 0.1 * jax.random.normal(kb, (1, n), jnp.float32)
        running_mean = jnp.zeros((1, n), jnp.float32)   # fresh-module running stats
        running_var = jnp.ones((1, n), jnp.float32)
        scale = gamma / jnp.sqrt(running_var + eps)
        shift = beta - running_mean * scale
        return scale, shift

    s1, t1 = bn_fold(ks[6], ks[7], hidden)
    s2, t2 = bn_fold(ks[8], ks[9], hidden)

    f32_params = dict(w1=w1, b1=b1, s1=s1, t1=t1,
                      w2=w2, b2=b2, s2=s2, t2=t2,
                      w3=w3, b3=b3)

    # Fold BN into the preceding Linear:  (x@w + b)*s + t == x@(w*s) + (b*s + t)
    kernel_params = dict(
        w1=(w1 * s1).astype(jnp.bfloat16), b1=b1 * s1 + t1,
        w2=(w2 * s2).astype(jnp.bfloat16), b2=b2 * s2 + t2,
        w3=w3.astype(jnp.bfloat16),        b3=b3,
    )
    return kernel_params, f32_params


def reference(x_nchw, p):
    """Pure-JAX f32 reference matching the PyTorch module (eval mode)."""
    N = x_nchw.shape[0]
    pooled = jnp.mean(x_nchw, axis=(2, 3)).reshape(N, -1)
    h1 = jnp.maximum((pooled @ p["w1"] + p["b1"]) * p["s1"] + p["t1"], 0.0)
    h2 = jnp.maximum((h1 @ p["w2"] + p["b2"]) * p["s2"] + p["t2"], 0.0)
    return h2 @ p["w3"] + p["b3"]


if __name__ == "__main__":
    N, C, fea_map_size, out_channels = 8, 256, 8, 16

    key = jax.random.PRNGKey(0)
    kx, kp = jax.random.split(key)
    x = jax.random.normal(kx, (N, C, fea_map_size, fea_map_size), jnp.float32)
    kernel_params, f32_params = make_params(kp, C, out_channels)

    out = jax.block_until_ready(avg_pool_head2(x, kernel_params))

    ref = reference(x, f32_params)
    assert out.shape == (N, out_channels)
    max_err = float(jnp.max(jnp.abs(out - ref)))
    assert jnp.allclose(out, ref, rtol=2e-2, atol=2e-2), \
        f"mismatch vs JAX reference (max abs err {max_err})"

    print("KERNEL_OK")
</pallas_src>

<mosaic_0001>
module attributes {stable_mosaic.version = 11 : i64} {
  func.func @avg_pool_head2_kernel(%arg0: i32, %arg1: memref<8x256xbf16, #tpu.memory_space<vmem>>, %arg2: memref<256x2048xbf16, #tpu.memory_space<vmem>>, %arg3: memref<1x2048xf32, #tpu.memory_space<vmem>>, %arg4: memref<2048x512xbf16, #tpu.memory_space<vmem>>, %arg5: memref<1x512xf32, #tpu.memory_space<vmem>>, %arg6: memref<512x16xbf16, #tpu.memory_space<vmem>>, %arg7: memref<1x16xf32, #tpu.memory_space<vmem>>, %arg8: memref<8x16xf32, #tpu.memory_space<vmem>>, %arg9: memref<8x2048xbf16, #tpu.memory_space<vmem>>, %arg10: memref<8x16xf32, #tpu.memory_space<vmem>>) attributes {dimension_semantics = [#tpu.dimension_semantics<arbitrary>], iteration_bounds = array<i64: 4>, scalar_prefetch = 0 : i64, scratch_operands = 2 : i64, tpu.core_type = #tpu.core_type<tc>, window_params = [{pipeline_mode = #tpu.pipeline_mode<synchronous>, transform_indices = @transform_0, window_bounds = array<i64: 8, 256>}, {pipeline_mode = #tpu.pipeline_mode<synchronous>, transform_indices = @transform_1, window_bounds = array<i64: 256, 2048>}, {pipeline_mode = #tpu.pipeline_mode<synchronous>, transform_indices = @transform_2, window_bounds = array<i64: 1, 2048>}, {transform_indices = @transform_3, window_bounds = array<i64: 2048, 512>}, {transform_indices = @transform_4, window_bounds = array<i64: 1, 512>}, {transform_indices = @transform_5, window_bounds = array<i64: 512, 16>}, {pipeline_mode = #tpu.pipeline_mode<synchronous>, transform_indices = @transform_6, window_bounds = array<i64: 1, 16>}, {pipeline_mode = #tpu.pipeline_mode<synchronous>, transform_indices = @transform_7, window_bounds = array<i64: 8, 16>}]} {
    %c0_i32 = arith.constant 0 : i32
    %0 = arith.cmpi eq, %arg0, %c0_i32 : i32
    %1 = arith.extui %0 : i1 to i32
    %c0_i32_0 = arith.constant 0 : i32
    %2 = arith.cmpi ne, %1, %c0_i32_0 : i32
    scf.if %2 {
      %c0_15 = arith.constant 0 : index
      %c0_16 = arith.constant 0 : index
      %20 = vector.load %arg1[%c0_15, %c0_16] : memref<8x256xbf16, #tpu.memory_space<vmem>>, vector<8x256xbf16>
      %c0_17 = arith.constant 0 : index
      %c0_18 = arith.constant 0 : index
      %21 = vector.load %arg2[%c0_17, %c0_18] : memref<256x2048xbf16, #tpu.memory_space<vmem>>, vector<256x2048xbf16>
      %cst_19 = arith.constant dense<0.000000e+00> : vector<8x2048xf32>
      %22 = tpu.matmul %20, %21, %cst_19 {dimension_numbers = #tpu.dot_dimension_numbers<[1], [0], [0], [1], [0, 0, 1, 1], [], []>} : vector<8x256xbf16>, vector<256x2048xbf16>, vector<8x2048xf32> -> vector<8x2048xf32>
      %c0_20 = arith.constant 0 : index
      %c0_21 = arith.constant 0 : index
      %23 = vector.load %arg3[%c0_20, %c0_21] : memref<1x2048xf32, #tpu.memory_space<vmem>>, vector<1x2048xf32>
      %24 = vector.broadcast %23 : vector<1x2048xf32> to vector<8x2048xf32>
      %25 = arith.addf %22, %24 : vector<8x2048xf32>
      %cst_22 = arith.constant 0.000000e+00 : f32
      %26 = vector.broadcast %cst_22 : f32 to vector<8x2048xf32>
      %27 = arith.maximumf %25, %26 : vector<8x2048xf32>
      %28 = arith.truncf %27 : vector<8x2048xf32> to vector<8x2048xbf16>
      %c0_23 = arith.constant 0 : index
      %c0_24 = arith.constant 0 : index
      %29 = vector.load %arg9[%c0_23, %c0_24] : memref<8x2048xbf16, #tpu.memory_space<vmem>>, vector<8x2048xbf16>
      tpu.vector_store %arg9[%c0_23, %c0_24], %28 {strides = array<i32>} : memref<8x2048xbf16, #tpu.memory_space<vmem>>, vector<8x2048xbf16>,
      %cst_25 = arith.constant 0.000000e+00 : f32
      %30 = vector.broadcast %cst_25 : f32 to vector<8x16xf32>
      %c0_26 = arith.constant 0 : index
      %c0_27 = arith.constant 0 : index
      %31 = vector.load %arg10[%c0_26, %c0_27] : memref<8x16xf32, #tpu.memory_space<vmem>>, vector<8x16xf32>
      tpu.vector_store %arg10[%c0_26, %c0_27], %30 {strides = array<i32>} : memref<8x16xf32, #tpu.memory_space<vmem>>, vector<8x16xf32>,
    } else {
    }
    %c0 = arith.constant 0 : index
    %c0_1 = arith.constant 0 : index
    %3 = vector.load %arg9[%c0, %c0_1] : memref<8x2048xbf16, #tpu.memory_space<vmem>>, vector<8x2048xbf16>
    %c0_2 = arith.constant 0 : index
    %c0_3 = arith.constant 0 : index
    %4 = vector.load %arg4[%c0_2, %c0_3] : memref<2048x512xbf16, #tpu.memory_space<vmem>>, vector<2048x512xbf16>
    %cst = arith.constant dense<0.000000e+00> : vector<8x512xf32>
    %5 = tpu.matmul %3, %4, %cst {dimension_numbers = #tpu.dot_dimension_numbers<[1], [0], [0], [1], [0, 0, 1, 1], [], []>} : vector<8x2048xbf16>, vector<2048x512xbf16>, vector<8x512xf32> -> vector<8x512xf32>
    %c0_4 = arith.constant 0 : index
    %c0_5 = arith.constant 0 : index
    %6 = vector.load %arg5[%c0_4, %c0_5] : memref<1x512xf32, #tpu.memory_space<vmem>>, vector<1x512xf32>
    %7 = vector.broadcast %6 : vector<1x512xf32> to vector<8x512xf32>
    %8 = arith.addf %5, %7 : vector<8x512xf32>
    %cst_6 = arith.constant 0.000000e+00 : f32
    %9 = vector.broadcast %cst_6 : f32 to vector<8x512xf32>
    %10 = arith.maximumf %8, %9 : vector<8x512xf32>
    %c0_7 = arith.constant 0 : index
    %c0_8 = arith.constant 0 : index
    %11 = vector.load %arg10[%c0_7, %c0_8] : memref<8x16xf32, #tpu.memory_space<vmem>>, vector<8x16xf32>
    %12 = arith.truncf %10 : vector<8x512xf32> to vector<8x512xbf16>
    %c0_9 = arith.constant 0 : index
    %c0_10 = arith.constant 0 : index
    %13 = vector.load %arg6[%c0_9, %c0_10] : memref<512x16xbf16, #tpu.memory_space<vmem>>, vector<512x16xbf16>
    %cst_11 = arith.constant dense<0.000000e+00> : vector<8x16xf32>
    %14 = tpu.matmul %12, %13, %cst_11 {dimension_numbers = #tpu.dot_dimension_numbers<[1], [0], [0], [1], [0, 0, 1, 1], [], []>} : vector<8x512xbf16>, vector<512x16xbf16>, vector<8x16xf32> -> vector<8x16xf32>
    %15 = arith.addf %11, %14 : vector<8x16xf32>
    %c0_12 = arith.constant 0 : index
    %c0_13 = arith.constant 0 : index
    %16 = vector.load %arg10[%c0_12, %c0_13] : memref<8x16xf32, #tpu.memory_space<vmem>>, vector<8x16xf32>
    tpu.vector_store %arg10[%c0_12, %c0_13], %15 {strides = array<i32>} : memref<8x16xf32, #tpu.memory_space<vmem>>, vector<8x16xf32>,
    %c3_i32 = arith.constant 3 : i32
    %17 = arith.cmpi eq, %arg0, %c3_i32 : i32
    %18 = arith.extui %17 : i1 to i32
    %c0_i32_14 = arith.constant 0 : i32
    %19 = arith.cmpi ne, %18, %c0_i32_14 : i32
    scf.if %19 {
      %c0_15 = arith.constant 0 : index
      %c0_16 = arith.constant 0 : index
      %20 = vector.load %arg10[%c0_15, %c0_16] : memref<8x16xf32, #tpu.memory_space<vmem>>, vector<8x16xf32>
      %c0_17 = arith.constant 0 : index
      %c0_18 = arith.constant 0 : index
      %21 = vector.load %arg7[%c0_17, %c0_18] : memref<1x16xf32, #tpu.memory_space<vmem>>, vector<1x16xf32>
      %22 = vector.broadcast %21 : vector<1x16xf32> to vector<8x16xf32>
      %23 = arith.addf %20, %22 : vector<8x16xf32>
      %c0_19 = arith.constant 0 : index
      %c0_20 = arith.constant 0 : index
      %24 = vector.load %arg8[%c0_19, %c0_20] : memref<8x16xf32, #tpu.memory_space<vmem>>, vector<8x16xf32>
      tpu.vector_store %arg8[%c0_19, %c0_20], %23 {strides = array<i32>} : memref<8x16xf32, #tpu.memory_space<vmem>>, vector<8x16xf32>,
    } else {
    }
    return
  }
  func.func @transform_0(%arg0: i32) -> (i32, i32) {
    %c0_i32 = arith.constant 0 : i32
    %c0_i32_0 = arith.constant 0 : i32
    %c0_i32_1 = arith.constant 0 : i32
    return %c0_i32, %c0_i32_0 : i32, i32
  }
  func.func @transform_1(%arg0: i32) -> (i32, i32) {
    %c0_i32 = arith.constant 0 : i32
    %c0_i32_0 = arith.constant 0 : i32
    %c0_i32_1 = arith.constant 0 : i32
    return %c0_i32, %c0_i32_0 : i32, i32
  }
  func.func @transform_2(%arg0: i32) -> (i32, i32) {
    %c0_i32 = arith.constant 0 : i32
    %c0_i32_0 = arith.constant 0 : i32
    %c0_i32_1 = arith.constant 0 : i32
    return %c0_i32, %c0_i32_0 : i32, i32
  }
  func.func @transform_3(%arg0: i32) -> (i32, i32) {
    %c0_i32 = arith.constant 0 : i32
    %c0_i32_0 = arith.constant 0 : i32
    return %c0_i32, %arg0 : i32, i32
  }
  func.func @transform_4(%arg0: i32) -> (i32, i32) {
    %c0_i32 = arith.constant 0 : i32
    %c0_i32_0 = arith.constant 0 : i32
    return %c0_i32, %arg0 : i32, i32
  }
  func.func @transform_5(%arg0: i32) -> (i32, i32) {
    %c0_i32 = arith.constant 0 : i32
    %c0_i32_0 = arith.constant 0 : i32
    return %arg0, %c0_i32 : i32, i32
  }
  func.func @transform_6(%arg0: i32) -> (i32, i32) {
    %c0_i32 = arith.constant 0 : i32
    %c0_i32_0 = arith.constant 0 : i32
    %c0_i32_1 = arith.constant 0 : i32
    return %c0_i32, %c0_i32_0 : i32, i32
  }
  func.func @transform_7(%arg0: i32) -> (i32, i32) {
    %c0_i32 = arith.constant 0 : i32
    %c0_i32_0 = arith.constant 0 : i32
    %c0_i32_1 = arith.constant 0 : i32
    return %c0_i32, %c0_i32_0 : i32, i32
  }
}

</mosaic_0001>

<llo_original>
// kernel: tpu_custom_call.1
$region0: #{tpu_custom_call.1}
  #allocation0 [shape = 'u32[]', space=smem, size = 0x4, offset = 0x4, fixed_abs, tag = 'smem constant byte address 0x4 - core index']
  #allocation1 [shape = 'u32[144,128]{1,0:T(1,128)}', space=vmem, size = 0x12000, scoped, tag = 'internal scratch']
  #allocation2 [shape = 'bf16[8,2048]{1,0:T(8,128)(2,1)}', space=vmem, size = 0x8000, scoped, tag = 'scratch operand']
  #allocation3 [shape = 'f32[8,16]{1,0:T(8,128)}', space=vmem, size = 0x1000, scoped, tag = 'scratch operand']
  %s0 = inlined_call_operand.hbm [shape: bf16[8,256], index: 0, kind: input, shape index: {}]
  %s1 = inlined_call_operand.hbm [shape: bf16[256,2048], index: 1, kind: input, shape index: {}]
  %s2 = inlined_call_operand.hbm [shape: f32[1,2048], index: 2, kind: input, shape index: {}]
  %s3 = inlined_call_operand.hbm [shape: bf16[2048,2048], index: 3, kind: input, shape index: {}]
  %s4 = inlined_call_operand.hbm [shape: f32[1,2048], index: 4, kind: input, shape index: {}]
  %s5 = inlined_call_operand.vmem [shape: bf16[2048,16], index: 5, kind: input, shape index: {}]
  %s6 = inlined_call_operand.hbm [shape: f32[1,16], index: 6, kind: input, shape index: {}]
  %s7 = inlined_call_operand.hbm [shape: f32[8,16], index: 7, kind: output, shape index: {}]
  %s8 = sld [smem:[#allocation0]]
  $region93: #{tpu_custom_call.1} parent=0
    _
  %s10 = ssub.s32 1, %s8
  %s11 = scalar_select 0, %s10, %s8
  $region1: #{tpu_custom_call.1} parent=0
    #allocation4 [shape = 'u8[4096]{0}', space=vmem, size = 0x1000, scoped, tag = 'input window, operand 0, single buffered']
    #allocation5 [shape = 's32[2]{0}', space=sflag, size = 0x8, scoped, tag = 'scoped memory for tpu_custom_call.1']
    #allocation6 [shape = 's32[2]{0}', space=sflag, size = 0x8, scoped, tag = 'scoped memory for tpu_custom_call.1']
    #allocation7 [shape = 'u8[1048576]{0}', space=vmem, size = 0x100000, scoped, tag = 'input window, operand 1, single buffered']
    #allocation8 [shape = 's32[1]{0}', space=sflag, size = 0x4, scoped, tag = 'scoped memory for tpu_custom_call.1']
    #allocation9 [shape = 'u8[8192]{0}', space=vmem, size = 0x2000, scoped, tag = 'input window, operand 2, single buffered']
    #allocation10 [shape = 'u8[4194304]{0}', space=vmem, size = 0x400000, scoped, tag = 'input window, operand 3']
    #allocation11 [shape = 's32[2]{0}', space=sflag, size = 0x8, scoped, tag = 'scoped memory for tpu_custom_call.1']
    #allocation12 [shape = 'u8[4096]{0}', space=vmem, size = 0x1000, scoped, tag = 'input window, operand 4']
    #allocation13 [shape = 'u8[512]{0}', space=vmem, size = 0x400, scoped, tag = 'input window, operand 6, single buffered']
    #allocation14 [shape = 's32[1]{0}', space=sflag, size = 0x4, scoped, tag = 'scoped memory for tpu_custom_call.1']
    #allocation15 [shape = 'u8[4096]{0}', space=vmem, size = 0x1000, scoped, tag = 'output window, operand 0, single buffered']
    %12 = vsyncpa [#allocation5], 0
    %13 = vsyncpa [#allocation8], 0
    %14 = vsyncpa [#allocation11], 0
    %s15 = scalar_lea.sflag [#allocation11], 1
    %16 = vsyncpa %s15, 0
    %17 = vsyncpa [#allocation14], 0
    %18 = vsyncpa [#allocation6], 0
    loop: start=0, step=1, limit=6
    $region2: #{tpu_custom_call.1} parent=1 // loop_pre_header
      _
    $region3: #{tpu_custom_call.1} parent=1 // loop_header
      %s20 = sphi 0, %s24
      %p21 = scmp.ge.s32.totalorder %s20, 6
      %s28 = sphi 0, %s28
      %s30 = sphi 0, %s28
      %s31 = sphi 0, %s30
      %s45 = sphi 0, %s31
      %s49 = sphi 0, %s49
      %s51 = sphi 0, %s49
      %s52 = sphi 0, %s51
      %s66 = sphi 0, %s52
      %s70 = sphi 0, %s70
      %s72 = sphi 0, %s70
      %s73 = sphi 0, %s72
      %s87 = sphi 0, %s73
      %s93 = sphi 0, %s95
      %s96 = sphi 0, %s93
      %s97 = sphi 0, %s96
      %s113 = sphi 0, %s97
      %s119 = sphi 0, %s121
      %s122 = sphi 0, %s119
      %s123 = sphi 0, %s122
      %s139 = sphi 0, %s123
      %s145 = sphi 0, %s147
      %s148 = sphi 0, %s145
      %s149 = sphi 0, %s148
      %s165 = sphi 0, %s149
      %s169 = sphi 0, %s169
      %s171 = sphi 0, %s169
      %s172 = sphi 0, %s171
      %s186 = sphi 0, %s172
      %s190 = sphi 0, %s190
      %s192 = sphi 0, %s190
      %s193 = sphi 0, %s192
      %s207 = sphi 0, %s193
    $region4: #{tpu_custom_call.1} parent=1 // loop_header_branch
      %23 = sbr.rel (%p21) target = $region8
    $region5: #{tpu_custom_call.1} parent=1 // loop_body
      %s25 = ssub.s32 %s20, 1
      %s26 = ssub.s32 %s20, 2
      %s27 = sadd.s32 %s20, 1
      %s29 = sadd.s32 %s28, 1
      %p32 = scmp.eq.s32.totalorder %s20, 3
      %p33 = scmp.ne.s32.totalorder %s28, %s30
      %p34 = scmp.eq.s32.totalorder %s20, 0
      %p35 = por %p33, %p34
      %p36 = scmp.ne.s32.totalorder %s28, %s30
      %p37 = scmp.eq.s32.totalorder %s25, 3
      %p38 = por %p36, %p37
      %p39 = scmp.ne.s32.totalorder %s30, %s31
      %p40 = scmp.eq.s32.totalorder %s25, 0
      %p41 = por %p39, %p40
      %p42 = scmp.ne.s32.totalorder %s30, %s31
      %p43 = scmp.eq.s32.totalorder %s26, 3
      %p44 = por %p42, %p43
      %p46 = scmp.ne.s32.totalorder %s31, %s45
      %p47 = scmp.eq.s32.totalorder %s26, 0
      %p48 = por %p46, %p47
      %s50 = sadd.s32 %s49, 1
      %p53 = scmp.eq.s32.totalorder %s20, 3
      %p54 = scmp.ne.s32.totalorder %s49, %s51
      %p55 = scmp.eq.s32.totalorder %s20, 0
      %p56 = por %p54, %p55
      %p57 = scmp.ne.s32.totalorder %s49, %s51
      %p58 = scmp.eq.s32.totalorder %s25, 3
      %p59 = por %p57, %p58
      %p60 = scmp.ne.s32.totalorder %s51, %s52
      %p61 = scmp.eq.s32.totalorder %s25, 0
      %p62 = por %p60, %p61
      %p63 = scmp.ne.s32.totalorder %s51, %s52
      %p64 = scmp.eq.s32.totalorder %s26, 3
      %p65 = por %p63, %p64
      %p67 = scmp.ne.s32.totalorder %s52, %s66
      %p68 = scmp.eq.s32.totalorder %s26, 0
      %p69 = por %p67, %p68
      %s71 = sadd.s32 %s70, 1
      %p74 = scmp.eq.s32.totalorder %s20, 3
      %p75 = scmp.ne.s32.totalorder %s70, %s72
      %p76 = scmp.eq.s32.totalorder %s20, 0
      %p77 = por %p75, %p76
      %p78 = scmp.ne.s32.totalorder %s70, %s72
      %p79 = scmp.eq.s32.totalorder %s25, 3
      %p80 = por %p78, %p79
      %p81 = scmp.ne.s32.totalorder %s72, %s73
      %p82 = scmp.eq.s32.totalorder %s25, 0
      %p83 = por %p81, %p82
      %p84 = scmp.ne.s32.totalorder %s72, %s73
      %p85 = scmp.eq.s32.totalorder %s26, 3
      %p86 = por %p84, %p85
      %p88 = scmp.ne.s32.totalorder %s73, %s87
      %p89 = scmp.eq.s32.totalorder %s26, 0
      %p90 = por %p88, %p89
      %s91 = ssub.s32 %s20, %s27
      %p92 = scmp.eq.s32.totalorder %s91, 0
      %s94 = sadd.s32 %s93, 1
      %s95 = scalar_select %p92, %s93, %s94
      %p98 = pneg %p92
      %p99 = scmp.eq.s32.totalorder %s20, 3
      %p100 = por %p98, %p99
      %p101 = scmp.ne.s32.totalorder %s93, %s96
      %p102 = scmp.eq.s32.totalorder %s20, 0
      %p103 = por %p101, %p102
      %p104 = scmp.ne.s32.totalorder %s93, %s96
      %p105 = scmp.eq.s32.totalorder %s25, 3
      %p106 = por %p104, %p105
      %p107 = scmp.ne.s32.totalorder %s96, %s97
      %p108 = scmp.eq.s32.totalorder %s25, 0
      %p109 = por %p107, %p108
      %p110 = scmp.ne.s32.totalorder %s96, %s97
      %p111 = scmp.eq.s32.totalorder %s26, 3
      %p112 = por %p110, %p111
      %p114 = scmp.ne.s32.totalorder %s97, %s113
      %p115 = scmp.eq.s32.totalorder %s26, 0
      %p116 = por %p114, %p115
      %s117 = ssub.s32 %s20, %s27
      %p118 = scmp.eq.s32.totalorder %s117, 0
      %s120 = sadd.s32 %s119, 1
      %s121 = scalar_select %p118, %s119, %s120
      %p124 = pneg %p118
      %p125 = scmp.eq.s32.totalorder %s20, 3
      %p126 = por %p124, %p125
      %p127 = scmp.ne.s32.totalorder %s119, %s122
      %p128 = scmp.eq.s32.totalorder %s20, 0
      %p129 = por %p127, %p128
      %p130 = scmp.ne.s32.totalorder %s119, %s122
      %p131 = scmp.eq.s32.totalorder %s25, 3
      %p132 = por %p130, %p131
      %p133 = scmp.ne.s32.totalorder %s122, %s123
      %p134 = scmp.eq.s32.totalorder %s25, 0
      %p135 = por %p133, %p134
      %p136 = scmp.ne.s32.totalorder %s122, %s123
      %p137 = scmp.eq.s32.totalorder %s26, 3
      %p138 = por %p136, %p137
      %p140 = scmp.ne.s32.totalorder %s123, %s139
      %p141 = scmp.eq.s32.totalorder %s26, 0
      %p142 = por %p140, %p141
      %s143 = ssub.s32 %s20, %s27
      %p144 = scmp.eq.s32.totalorder %s143, 0
      %s146 = sadd.s32 %s145, 1
      %s147 = scalar_select %p144, %s145, %s146
      %p150 = pneg %p144
      %p151 = scmp.eq.s32.totalorder %s20, 3
      %p152 = por %p150, %p151
      %p153 = scmp.ne.s32.totalorder %s145, %s148
      %p154 = scmp.eq.s32.totalorder %s20, 0
      %p155 = por %p153, %p154
      %p156 = scmp.ne.s32.totalorder %s145, %s148
      %p157 = scmp.eq.s32.totalorder %s25, 3
      %p158 = por %p156, %p157
      %p159 = scmp.ne.s32.totalorder %s148, %s149
      %p160 = scmp.eq.s32.totalorder %s25, 0
      %p161 = por %p159, %p160
      %p162 = scmp.ne.s32.totalorder %s148, %s149
      %p163 = scmp.eq.s32.totalorder %s26, 3
      %p164 = por %p162, %p163
      %p166 = scmp.ne.s32.totalorder %s149, %s165
      %p167 = scmp.eq.s32.totalorder %s26, 0
      %p168 = por %p166, %p167
      %s170 = sadd.s32 %s169, 1
      %p173 = scmp.eq.s32.totalorder %s20, 3
      %p174 = scmp.ne.s32.totalorder %s169, %s171
      %p175 = scmp.eq.s32.totalorder %s20, 0
      %p176 = por %p174, %p175
      %p177 = scmp.ne.s32.totalorder %s169, %s171
      %p178 = scmp.eq.s32.totalorder %s25, 3
      %p179 = por %p177, %p178
      %p180 = scmp.ne.s32.totalorder %s171, %s172
      %p181 = scmp.eq.s32.totalorder %s25, 0
      %p182 = por %p180, %p181
      %p183 = scmp.ne.s32.totalorder %s171, %s172
      %p184 = scmp.eq.s32.totalorder %s26, 3
      %p185 = por %p183, %p184
      %p187 = scmp.ne.s32.totalorder %s172, %s186
      %p188 = scmp.eq.s32.totalorder %s26, 0
      %p189 = por %p187, %p188
      %s191 = sadd.s32 %s190, 1
      %p194 = scmp.eq.s32.totalorder %s20, 3
      %p195 = scmp.ne.s32.totalorder %s190, %s192
      %p196 = scmp.eq.s32.totalorder %s20, 0
      %p197 = por %p195, %p196
      %p198 = scmp.ne.s32.totalorder %s190, %s192
      %p199 = scmp.eq.s32.totalorder %s25, 3
      %p200 = por %p198, %p199
      %p201 = scmp.ne.s32.totalorder %s192, %s193
      %p202 = scmp.eq.s32.totalorder %s25, 0
      %p203 = por %p201, %p202
      %p204 = scmp.ne.s32.totalorder %s192, %s193
      %p205 = scmp.eq.s32.totalorder %s26, 3
      %p206 = por %p204, %p205
      %p208 = scmp.ne.s32.totalorder %s193, %s207
      %p209 = scmp.eq.s32.totalorder %s26, 0
      %p210 = por %p208, %p209
      %p211 = scmp.le.s32.totalorder 1, %s20
      %p212 = scmp.lt.s32.totalorder %s20, 5
      %p213 = pnand %p211, %p212
      %p214 = pneg %p213
      // Predicated region
      $region9: #{tpu_custom_call.1} parent=5 // pred_check
        _
      $region10: #{tpu_custom_call.1} parent=5 // pred_check_branch
        %216 = sbr.rel (%p213) target = $region12
      $region11: #{tpu_custom_call.1} parent=5 // pred_region
        %s217 = ssub.s32 %s20, 1
        // Predicated region
        $region13: #{tpu_custom_call.1} parent=11 // pred_check
          %p218 = pneg %p41
        $region14: #{tpu_custom_call.1} parent=11 // pred_check_branch
          %220 = sbr.rel (%p218) target = $region16
        $region15: #{tpu_custom_call.1} parent=11 // pred_region
          %s222 = ssub.s32 128, 128
          %223 = vsyncadd [#allocation5], %s222
          %s225 = sshll.u32 [#allocation4], 4
          %s226 = int_to_ptr.vmem [resolvable:$true] %s225
          %228 = dma.hbm_to_vmem [thread:$0]  %s0, 128, %s226, [#allocation5]
        $region16: #{tpu_custom_call.1} parent=11 // pred_fallthru
          _
        // Predicated region
        $region17: #{tpu_custom_call.1} parent=11 // pred_check
          %p229 = pneg %p62
        $region18: #{tpu_custom_call.1} parent=11 // pred_check_branch
          %231 = sbr.rel (%p229) target = $region20
        $region19: #{tpu_custom_call.1} parent=11 // pred_region
          %s233 = ssub.s32 32768, 32768
          %234 = vsyncadd [#allocation8], %s233
          %s235 = sshll.u32 [#allocation7], 4
          %s236 = int_to_ptr.vmem [resolvable:$true] %s235
          %241 = dma.hbm_to_vmem [thread:$0]  %s1, 32768, %s236, [#allocation8], 1024, 1024, 64
        $region20: #{tpu_custom_call.1} parent=11 // pred_fallthru
          _
        // Predicated region
        $region21: #{tpu_custom_call.1} parent=11 // pred_check
          %p242 = pneg %p83
        $region22: #{tpu_custom_call.1} parent=11 // pred_check_branch
          %244 = sbr.rel (%p242) target = $region24
        $region23: #{tpu_custom_call.1} parent=11 // pred_region
          %s246 = ssub.s32 256, 256
          %247 = vsyncadd [#allocation8], %s246
          %s249 = sshll.u32 [#allocation9], 4
          %s250 = int_to_ptr.vmem [resolvable:$true] %s249
          %252 = dma.hbm_to_vmem [thread:$0]  %s2, 256, %s250, [#allocation8]
        $region24: #{tpu_custom_call.1} parent=11 // pred_fallthru
          _
        // Predicated region
        $region25: #{tpu_custom_call.1} parent=11 // pred_check
          %p253 = pneg %p182
        $region26: #{tpu_custom_call.1} parent=11 // pred_check_branch
          %255 = sbr.rel (%p253) target = $region28
        $region27: #{tpu_custom_call.1} parent=11 // pred_region
          %s257 = ssub.s32 16, 16
          %258 = vsyncadd [#allocation14], %s257
          %s260 = sshll.u32 [#allocation13], 4
          %s261 = int_to_ptr.vmem [resolvable:$true] %s260
          %263 = dma.hbm_to_vmem [thread:$0]  %s6, 16, %s261, [#allocation14]
        $region28: #{tpu_custom_call.1} parent=11 // pred_fallthru
          _
      $region12: #{tpu_custom_call.1} parent=5 // pred_fallthru
        _
      %p264 = scmp.lt.s32.totalorder %s20, 4
      // Predicated region
      $region29: #{tpu_custom_call.1} parent=5 // pred_check
        %p265 = pneg %p264
      $region30: #{tpu_custom_call.1} parent=5 // pred_check_branch
        %267 = sbr.rel (%p265) target = $region32
      $region31: #{tpu_custom_call.1} parent=5 // pred_region
        // Predicated region
        $region33: #{tpu_custom_call.1} parent=31 // pred_check
          %p268 = pneg %p103
        $region34: #{tpu_custom_call.1} parent=31 // pred_check_branch
          %270 = sbr.rel (%p268) target = $region36
        $region35: #{tpu_custom_call.1} parent=31 // pred_region
          %s271 = sand.u32 %s20, 1
          %s272 = scalar_lea.sflag [#allocation11], %s271
          %s273 = sand.u32 %s93, 1
          %s274 = smul.addr %s273, 4096
          %s275 = scalar_lea.vmem [#allocation10], %s274
          %s276 = smul.u32 4, %s20
          %s278 = ssub.s32 65536, 65536
          %279 = vsyncadd %s272, %s278
          %s280 = smul.addr %s276, 64
          %s281 = scalar_lea.hbm %s3, %s280
          %s282 = sshll.u32 %s275, 4
          %s283 = int_to_ptr.vmem [resolvable:$true] %s282
          %288 = dma.hbm_to_vmem [thread:$0]  %s281, 65536, %s283, %s272, 1024, 256, 16
        $region36: #{tpu_custom_call.1} parent=31 // pred_fallthru
          _
        // Predicated region
        $region37: #{tpu_custom_call.1} parent=31 // pred_check
          %p289 = pneg %p129
        $region38: #{tpu_custom_call.1} parent=31 // pred_check_branch
          %291 = sbr.rel (%p289) target = $region40
        $region39: #{tpu_custom_call.1} parent=31 // pred_region
          %s292 = sand.u32 %s20, 1
          %s293 = scalar_lea.sflag [#allocation11], %s292
          %s294 = sand.u32 %s119, 1
          %s295 = smul.addr %s294, 4
          %s296 = scalar_lea.vmem [#allocation12], %s295
          %s297 = smul.u32 4, %s20
          %s299 = ssub.s32 64, 64
          %300 = vsyncadd %s293, %s299
          %s301 = smul.addr %s297, 16
          %s302 = scalar_lea.hbm %s4, %s301
          %s304 = sshll.u32 %s296, 4
          %s305 = int_to_ptr.vmem [resolvable:$true] %s304
          %307 = dma.hbm_to_vmem [thread:$0]  %s302, 64, %s305, %s293
        $region40: #{tpu_custom_call.1} parent=31 // pred_fallthru
          _
        // Predicated region
        $region41: #{tpu_custom_call.1} parent=31 // pred_check
          %p308 = pneg %p155
        $region42: #{tpu_custom_call.1} parent=31 // pred_check_branch
          %310 = sbr.rel (%p308) target = $region44
        $region43: #{tpu_custom_call.1} parent=31 // pred_region
          %s311 = smul.u32 64, %s20
          %p312 = scmp.lt.s32.totalorder %s311, 255
          %s313 = scalar_select %p312, %s311, 255
          %s314 = smul.addr %s313, 4
          %s315 = scalar_lea.vmem %s5, %s314
          %s316 = smul.u32 64, %s20
        $region44: #{tpu_custom_call.1} parent=31 // pred_fallthru
          _
      $region32: #{tpu_custom_call.1} parent=5 // pred_fallthru
        _
      %p317 = scmp.le.s32.totalorder 1, %s20
      %p318 = scmp.lt.s32.totalorder %s20, 5
      %p319 = pnand %p317, %p318
      %p320 = pneg %p319
      // Predicated region
      $region45: #{tpu_custom_call.1} parent=5 // pred_check
        _
      $region46: #{tpu_custom_call.1} parent=5 // pred_check_branch
        %322 = sbr.rel (%p319) target = $region48
      $region47: #{tpu_custom_call.1} parent=5 // pred_region
        %s323 = ssub.s32 %s20, 1
        // Predicated region
        $region49: #{tpu_custom_call.1} parent=47 // pred_check
          %p324 = pneg %p41
        $region50: #{tpu_custom_call.1} parent=47 // pred_check_branch
          %326 = sbr.rel (%p324) target = $region52
        $region51: #{tpu_custom_call.1} parent=47 // pred_region
          %327 = dma.done [#allocation5], 128
        $region52: #{tpu_custom_call.1} parent=47 // pred_fallthru
          _
        // Predicated region
        $region53: #{tpu_custom_call.1} parent=47 // pred_check
          %p328 = pneg %p62
        $region54: #{tpu_custom_call.1} parent=47 // pred_check_branch
          %330 = sbr.rel (%p328) target = $region56
        $region55: #{tpu_custom_call.1} parent=47 // pred_region
          %331 = dma.done [#allocation8], 32768
        $region56: #{tpu_custom_call.1} parent=47 // pred_fallthru
          _
        // Predicated region
        $region57: #{tpu_custom_call.1} parent=47 // pred_check
          %p332 = pneg %p83
        $region58: #{tpu_custom_call.1} parent=47 // pred_check_branch
          %334 = sbr.rel (%p332) target = $region60
        $region59: #{tpu_custom_call.1} parent=47 // pred_region
          %335 = dma.done [#allocation8], 256
        $region60: #{tpu_custom_call.1} parent=47 // pred_fallthru
          _
        %s336 = sand.u32 %s25, 1
        %s337 = scalar_lea.sflag [#allocation11], %s336
        %s338 = sand.u32 %s96, 1
        %s339 = smul.addr %s338, 4096
        %s340 = scalar_lea.vmem [#allocation10], %s339
        // Predicated region
        $region61: #{tpu_custom_call.1} parent=47 // pred_check
          %p341 = pneg %p109
        $region62: #{tpu_custom_call.1} parent=47 // pred_check_branch
          %343 = sbr.rel (%p341) target = $region64
        $region63: #{tpu_custom_call.1} parent=47 // pred_region
          %344 = dma.done %s337, 65536
        $region64: #{tpu_custom_call.1} parent=47 // pred_fallthru
          _
        %s345 = sand.u32 %s25, 1
        %s346 = scalar_lea.sflag [#allocation11], %s345
        %s347 = sand.u32 %s122, 1
        %s348 = smul.addr %s347, 4
        %s349 = scalar_lea.vmem [#allocation12], %s348
        // Predicated region
        $region65: #{tpu_custom_call.1} parent=47 // pred_check
          %p350 = pneg %p135
        $region66: #{tpu_custom_call.1} parent=47 // pred_check_branch
          %352 = sbr.rel (%p350) target = $region68
        $region67: #{tpu_custom_call.1} parent=47 // pred_region
          %353 = dma.done %s346, 64
        $region68: #{tpu_custom_call.1} parent=47 // pred_fallthru
          _
        // Predicated region
        $region69: #{tpu_custom_call.1} parent=47 // pred_check
          %p354 = pneg %p182
        $region70: #{tpu_custom_call.1} parent=47 // pred_check_branch
          %356 = sbr.rel (%p354) target = $region72
        $region71: #{tpu_custom_call.1} parent=47 // pred_region
          %357 = dma.done [#allocation14], 16
        $region72: #{tpu_custom_call.1} parent=47 // pred_fallthru
          _
        %p358 = pneg %p41
        %p359 = pneg %p38
        %p360 = pneg %p62
        %p361 = pneg %p59
        %p362 = pneg %p83
        %p363 = pneg %p80
        %s364 = sand.u32 %s25, 1
        %s365 = scalar_lea.sflag [#allocation11], %s364
        %s366 = sand.u32 %s96, 1
        %s367 = smul.addr %s366, 4096
        %s368 = scalar_lea.vmem [#allocation10], %s367
        %p369 = pneg %p109
        %p370 = pneg %p106
        %s371 = sand.u32 %s25, 1
        %s372 = scalar_lea.sflag [#allocation11], %s371
        %s373 = sand.u32 %s122, 1
        %s374 = smul.addr %s373, 4
        %s375 = scalar_lea.vmem [#allocation12], %s374
        %p376 = pneg %p135
        %p377 = pneg %p132
        %s378 = smul.u32 64, %s25
        %p379 = scmp.lt.s32.totalorder %s378, 255
        %s380 = scalar_select %p379, %s378, 255
        %s381 = smul.addr %s380, 4
        %s382 = scalar_lea.vmem %s5, %s381
        %p383 = pneg %p161
        %p384 = pneg %p158
        %p385 = pneg %p182
        %p386 = pneg %p179
        %p387 = pneg %p203
        %p388 = pneg %p200
        %s389 = smul.u32 4, %s25
        %s390 = smul.u32 4, %s25
        %s391 = smul.u32 64, %s25
        %p392 = scmp.lt.s32.totalorder %s391, 255
        %s393 = scalar_select %p392, %s391, 255
        %s394 = smul.addr %s393, 4
        %s395 = scalar_lea.vmem %s5, %s394
        %s396 = smul.u32 64, %s25
        %p398 = scmp.eq.s32.totalorder %s25, 0
        // Predicated region
        $region73: #{tpu_custom_call.1} parent=47 // pred_check
          %p399 = pneg %p398
        $region74: #{tpu_custom_call.1} parent=47 // pred_check_branch
          %401 = sbr.rel (%p399) target = $region76
        $region75: #{tpu_custom_call.1} parent=47 // pred_region
          %v402 = vld [vmem:[#allocation4] sm:$0xff]
          %v403 = vld [vmem:[#allocation7] sm:$0xff]
          %v404 = vld [vmem:[#allocation7 + $0x8] sm:$0xff]
          %v405 = vld [vmem:[#allocation7 + $0x10] sm:$0xff]
          %v406 = vld [vmem:[#allocation7 + $0x18] sm:$0xff]
          %v407 = vld [vmem:[#allocation7 + $0x20] sm:$0xff]
          %v408 = vld [vmem:[#allocation7 + $0x28] sm:$0xff]
          %v409 = vld [vmem:[#allocation7 + $0x30] sm:$0xff]
          %v410 = vld [vmem:[#allocation7 + $0x38] sm:$0xff]
          %v411 = vld [vmem:[#allocation7 + $0x40] sm:$0xff]
          %v412 = vld [vmem:[#allocation7 + $0x48] sm:$0xff]
          %v413 = vld [vmem:[#allocation7 + $0x50] sm:$0xff]
          %v414 = vld [vmem:[#allocation7 + $0x58] sm:$0xff]
          %v415 = vld [vmem:[#allocation7 + $0x60] sm:$0xff]
          %v416 = vld [vmem:[#allocation7 + $0x68] sm:$0xff]
          %v417 = vld [vmem:[#allocation7 + $0x70] sm:$0xff]
          %v418 = vld [vmem:[#allocation7 + $0x78] sm:$0xff]
          %v419 = vld [vmem:[#allocation7 + $0x80] sm:$0xff]
          %v420 = vld [vmem:[#allocation7 + $0x88] sm:$0xff]
          %v421 = vld [vmem:[#allocation7 + $0x90] sm:$0xff]
          %v422 = vld [vmem:[#allocation7 + $0x98] sm:$0xff]
          %v423 = vld [vmem:[#allocation7 + $0xa0] sm:$0xff]
          %v424 = vld [vmem:[#allocation7 + $0xa8] sm:$0xff]
          %v425 = vld [vmem:[#allocation7 + $0xb0] sm:$0xff]
          %v426 = vld [vmem:[#allocation7 + $0xb8] sm:$0xff]
          %v427 = vld [vmem:[#allocation7 + $0xc0] sm:$0xff]
          %v428 = vld [vmem:[#allocation7 + $0xc8] sm:$0xff]
          %v429 = vld [vmem:[#allocation7 + $0xd0] sm:$0xff]
          %v430 = vld [vmem:[#allocation7 + $0xd8] sm:$0xff]
          %v431 = vld [vmem:[#allocation7 + $0xe0] sm:$0xff]
          %v432 = vld [vmem:[#allocation7 + $0xe8] sm:$0xff]
          %v433 = vld [vmem:[#allocation7 + $0xf0] sm:$0xff]
          %v434 = vld [vmem:[#allocation7 + $0xf8] sm:$0xff]
          %v435 = vld [vmem:[#allocation7 + $0x100] sm:$0xff]
          %v436 = vld [vmem:[#allocation7 + $0x108] sm:$0xff]
          %v437 = vld [vmem:[#allocation7 + $0x110] sm:$0xff]
          %v438 = vld [vmem:[#allocation7 + $0x118] sm:$0xff]
          %v439 = vld [vmem:[#allocation7 + $0x120] sm:$0xff]
          %v440 = vld [vmem:[#allocation7 + $0x128] sm:$0xff]
          %v441 = vld [vmem:[#allocation7 + $0x130] sm:$0xff]
          %v442 = vld [vmem:[#allocation7 + $0x138] sm:$0xff]
          %v443 = vld [vmem:[#allocation7 + $0x140] sm:$0xff]
          %v444 = vld [vmem:[#allocation7 + $0x148] sm:$0xff]
          %v445 = vld [vmem:[#allocation7 + $0x150] sm:$0xff]
          %v446 = vld [vmem:[#allocation7 + $0x158] sm:$0xff]
          %v447 = vld [vmem:[#allocation7 + $0x160] sm:$0xff]
          %v448 = vld [vmem:[#allocation7 + $0x168] sm:$0xff]
          %v449 = vld [vmem:[#allocation7 + $0x170] sm:$0xff]
          %v450 = vld [vmem:[#allocation7 + $0x178] sm:$0xff]
          %v451 = vld [vmem:[#allocation7 + $0x180] sm:$0xff]
          %v452 = vld [vmem:[#allocation7 + $0x188] sm:$0xff]
          %v453 = vld [vmem:[#allocation7 + $0x190] sm:$0xff]
          %v454 = vld [vmem:[#allocation7 + $0x198] sm:$0xff]
          %v455 = vld [vmem:[#allocation7 + $0x1a0] sm:$0xff]
          %v456 = vld [vmem:[#allocation7 + $0x1a8] sm:$0xff]
          %v457 = vld [vmem:[#allocation7 + $0x1b0] sm:$0xff]
          %v458 = vld [vmem:[#allocation7 + $0x1b8] sm:$0xff]
          %v459 = vld [vmem:[#allocation7 + $0x1c0] sm:$0xff]
          %v460 = vld [vmem:[#allocation7 + $0x1c8] sm:$0xff]
          %v461 = vld [vmem:[#allocation7 + $0x1d0] sm:$0xff]
          %v462 = vld [vmem:[#allocation7 + $0x1d8] sm:$0xff]
          %v463 = vld [vmem:[#allocation7 + $0x1e0] sm:$0xff]
          %v464 = vld [vmem:[#allocation7 + $0x1e8] sm:$0xff]
          %v465 = vld [vmem:[#allocation7 + $0x1f0] sm:$0xff]
          %v466 = vld [vmem:[#allocation7 + $0x1f8] sm:$0xff]
          %v467 = vld [vmem:[#allocation7 + $0x200] sm:$0xff]
          %v468 = vld [vmem:[#allocation7 + $0x208] sm:$0xff]
          %v469 = vld [vmem:[#allocation7 + $0x210] sm:$0xff]
          %v470 = vld [vmem:[#allocation7 + $0x218] sm:$0xff]
          %v471 = vld [vmem:[#allocation7 + $0x220] sm:$0xff]
          %v472 = vld [vmem:[#allocation7 + $0x228] sm:$0xff]
          %v473 = vld [vmem:[#allocation7 + $0x230] sm:$0xff]
          %v474 = vld [vmem:[#allocation7 + $0x238] sm:$0xff]
          %v475 = vld [vmem:[#allocation7 + $0x240] sm:$0xff]
          %v476 = vld [vmem:[#allocation7 + $0x248] sm:$0xff]
          %v477 = vld [vmem:[#allocation7 + $0x250] sm:$0xff]
          %v478 = vld [vmem:[#allocation7 + $0x258] sm:$0xff]
          %v479 = vld [vmem:[#allocation7 + $0x260] sm:$0xff]
          %v480 = vld [vmem:[#allocation7 + $0x268] sm:$0xff]
          %v481 = vld [vmem:[#allocation7 + $0x270] sm:$0xff]
          %v482 = vld [vmem:[#allocation7 + $0x278] sm:$0xff]
          %v483 = vld [vmem:[#allocation7 + $0x280] sm:$0xff]
          %v484 = vld [vmem:[#allocation7 + $0x288] sm:$0xff]
          %v485 = vld [vmem:[#allocation7 + $0x290] sm:$0xff]
          %v486 = vld [vmem:[#allocation7 + $0x298] sm:$0xff]
          %v487 = vld [vmem:[#allocation7 + $0x2a0] sm:$0xff]
          %v488 = vld [vmem:[#allocation7 + $0x2a8] sm:$0xff]
          %v489 = vld [vmem:[#allocation7 + $0x2b0] sm:$0xff]
          %v490 = vld [vmem:[#allocation7 + $0x2b8] sm:$0xff]
          %v491 = vld [vmem:[#allocation7 + $0x2c0] sm:$0xff]
          %v492 = vld [vmem:[#allocation7 + $0x2c8] sm:$0xff]
          %v493 = vld [vmem:[#allocation7 + $0x2d0] sm:$0xff]
          %v494 = vld [vmem:[#allocation7 + $0x2d8] sm:$0xff]
          %v495 = vld [vmem:[#allocation7 + $0x2e0] sm:$0xff]
          %v496 = vld [vmem:[#allocation7 + $0x2e8] sm:$0xff]
          %v497 = vld [vmem:[#allocation7 + $0x2f0] sm:$0xff]
          %v498 = vld [vmem:[#allocation7 + $0x2f8] sm:$0xff]
          %v499 = vld [vmem:[#allocation7 + $0x300] sm:$0xff]
          %v500 = vld [vmem:[#allocation7 + $0x308] sm:$0xff]
          %v501 = vld [vmem:[#allocation7 + $0x310] sm:$0xff]
          %v502 = vld [vmem:[#allocation7 + $0x318] sm:$0xff]
          %v503 = vld [vmem:[#allocation7 + $0x320] sm:$0xff]
          %v504 = vld [vmem:[#allocation7 + $0x328] sm:$0xff]
          %v505 = vld [vmem:[#allocation7 + $0x330] sm:$0xff]
          %v506 = vld [vmem:[#allocation7 + $0x338] sm:$0xff]
          %v507 = vld [vmem:[#allocation7 + $0x340] sm:$0xff]
          %v508 = vld [vmem:[#allocation7 + $0x348] sm:$0xff]
          %v509 = vld [vmem:[#allocation7 + $0x350] sm:$0xff]
          %v510 = vld [vmem:[#allocation7 + $0x358] sm:$0xff]
          %v511 = vld [vmem:[#allocation7 + $0x360] sm:$0xff]
          %v512 = vld [vmem:[#allocation7 + $0x368] sm:$0xff]
          %v513 = vld [vmem:[#allocation7 + $0x370] sm:$0xff]
          %v514 = vld [vmem:[#allocation7 + $0x378] sm:$0xff]
          %v515 = vld [vmem:[#allocation7 + $0x380] sm:$0xff]
          %v516 = vld [vmem:[#allocation7 + $0x388] sm:$0xff]
          %v517 = vld [vmem:[#allocation7 + $0x390] sm:$0xff]
          %v518 = vld [vmem:[#allocation7 + $0x398] sm:$0xff]
          %v519 = vld [vmem:[#allocation7 + $0x3a0] sm:$0xff]
          %v520 = vld [vmem:[#allocation7 + $0x3a8] sm:$0xff]
          %v521 = vld [vmem:[#allocation7 + $0x3b0] sm:$0xff]
          %v522 = vld [vmem:[#allocation7 + $0x3b8] sm:$0xff]
          %v523 = vld [vmem:[#allocation7 + $0x3c0] sm:$0xff]
          %v524 = vld [vmem:[#allocation7 + $0x3c8] sm:$0xff]
          %v525 = vld [vmem:[#allocation7 + $0x3d0] sm:$0xff]
          %v526 = vld [vmem:[#allocation7 + $0x3d8] sm:$0xff]
          %v527 = vld [vmem:[#allocation7 + $0x3e0] sm:$0xff]
          %v528 = vld [vmem:[#allocation7 + $0x3e8] sm:$0xff]
          %v529 = vld [vmem:[#allocation7 + $0x3f0] sm:$0xff]
          %v530 = vld [vmem:[#allocation7 + $0x3f8] sm:$0xff]
          %v531 = vld [vmem:[#allocation7 + $0x400] sm:$0xff]
          %v532 = vld [vmem:[#allocation7 + $0x408] sm:$0xff]
          %v533 = vld [vmem:[#allocation7 + $0x410] sm:$0xff]
          %v534 = vld [vmem:[#allocation7 + $0x418] sm:$0xff]
          %v535 = vld [vmem:[#allocation7 + $0x420] sm:$0xff]
          %v536 = vld [vmem:[#allocation7 + $0x428] sm:$0xff]
          %v537 = vld [vmem:[#allocation7 + $0x430] sm:$0xff]
          %v538 = vld [vmem:[#allocation7 + $0x438] sm:$0xff]
          %v539 = vld [vmem:[#allocation7 + $0x440] sm:$0xff]
          %v540 = vld [vmem:[#allocation7 + $0x448] sm:$0xff]
          %v541 = vld [vmem:[#allocation7 + $0x450] sm:$0xff]
          %v542 = vld [vmem:[#allocation7 + $0x458] sm:$0xff]
          %v543 = vld [vmem:[#allocation7 + $0x460] sm:$0xff]
          %v544 = vld [vmem:[#allocation7 + $0x468] sm:$0xff]
          %v545 = vld [vmem:[#allocation7 + $0x470] sm:$0xff]
          %v546 = vld [vmem:[#allocation7 + $0x478] sm:$0xff]
          %v547 = vld [vmem:[#allocation7 + $0x480] sm:$0xff]
          %v548 = vld [vmem:[#allocation7 + $0x488] sm:$0xff]
          %v549 = vld [vmem:[#allocation7 + $0x490] sm:$0xff]
          %v550 = vld [vmem:[#allocation7 + $0x498] sm:$0xff]
          %v551 = vld [vmem:[#allocation7 + $0x4a0] sm:$0xff]
          %v552 = vld [vmem:[#allocation7 + $0x4a8] sm:$0xff]
          %v553 = vld [vmem:[#allocation7 + $0x4b0] sm:$0xff]
          %v554 = vld [vmem:[#allocation7 + $0x4b8] sm:$0xff]
          %v555 = vld [vmem:[#allocation7 + $0x4c0] sm:$0xff]
          %v556 = vld [vmem:[#allocation7 + $0x4c8] sm:$0xff]
          %v557 = vld [vmem:[#allocation7 + $0x4d0] sm:$0xff]
          %v558 = vld [vmem:[#allocation7 + $0x4d8] sm:$0xff]
          %v559 = vld [vmem:[#allocation7 + $0x4e0] sm:$0xff]
          %v560 = vld [vmem:[#allocation7 + $0x4e8] sm:$0xff]
          %v561 = vld [vmem:[#allocation7 + $0x4f0] sm:$0xff]
          %v562 = vld [vmem:[#allocation7 + $0x4f8] sm:$0xff]
          %v563 = vld [vmem:[#allocation7 + $0x500] sm:$0xff]
          %v564 = vld [vmem:[#allocation7 + $0x508] sm:$0xff]
          %v565 = vld [vmem:[#allocation7 + $0x510] sm:$0xff]
          %v566 = vld [vmem:[#allocation7 + $0x518] sm:$0xff]
          %v567 = vld [vmem:[#allocation7 + $0x520] sm:$0xff]
          %v568 = vld [vmem:[#allocation7 + $0x528] sm:$0xff]
          %v569 = vld [vmem:[#allocation7 + $0x530] sm:$0xff]
          %v570 = vld [vmem:[#allocation7 + $0x538] sm:$0xff]
          %v571 = vld [vmem:[#allocation7 + $0x540] sm:$0xff]
          %v572 = vld [vmem:[#allocation7 + $0x548] sm:$0xff]
          %v573 = vld [vmem:[#allocation7 + $0x550] sm:$0xff]
          %v574 = vld [vmem:[#allocation7 + $0x558] sm:$0xff]
          %v575 = vld [vmem:[#allocation7 + $0x560] sm:$0xff]
          %v576 = vld [vmem:[#allocation7 + $0x568] sm:$0xff]
          %v577 = vld [vmem:[#allocation7 + $0x570] sm:$0xff]
          %v578 = vld [vmem:[#allocation7 + $0x578] sm:$0xff]
          %v579 = vld [vmem:[#allocation7 + $0x580] sm:$0xff]
          %v580 = vld [vmem:[#allocation7 + $0x588] sm:$0xff]
          %v581 = vld [vmem:[#allocation7 + $0x590] sm:$0xff]
          %v582 = vld [vmem:[#allocation7 + $0x598] sm:$0xff]
          %v583 = vld [vmem:[#allocation7 + $0x5a0] sm:$0xff]
          %v584 = vld [vmem:[#allocation7 + $0x5a8] sm:$0xff]
          %v585 = vld [vmem:[#allocation7 + $0x5b0] sm:$0xff]
          %v586 = vld [vmem:[#allocation7 + $0x5b8] sm:$0xff]
          %v587 = vld [vmem:[#allocation7 + $0x5c0] sm:$0xff]
          %v588 = vld [vmem:[#allocation7 + $0x5c8] sm:$0xff]
          %v589 = vld [vmem:[#allocation7 + $0x5d0] sm:$0xff]
          %v590 = vld [vmem:[#allocation7 + $0x5d8] sm:$0xff]
          %v591 = vld [vmem:[#allocation7 + $0x5e0] sm:$0xff]
          %v592 = vld [vmem:[#allocation7 + $0x5e8] sm:$0xff]
          %v593 = vld [vmem:[#allocation7 + $0x5f0] sm:$0xff]
          %v594 = vld [vmem:[#allocation7 + $0x5f8] sm:$0xff]
          %v595 = vld [vmem:[#allocation7 + $0x600] sm:$0xff]
          %v596 = vld [vmem:[#allocation7 + $0x608] sm:$0xff]
          %v597 = vld [vmem:[#allocation7 + $0x610] sm:$0xff]
          %v598 = vld [vmem:[#allocation7 + $0x618] sm:$0xff]
          %v599 = vld [vmem:[#allocation7 + $0x620] sm:$0xff]
          %v600 = vld [vmem:[#allocation7 + $0x628] sm:$0xff]
          %v601 = vld [vmem:[#allocation7 + $0x630] sm:$0xff]
          %v602 = vld [vmem:[#allocation7 + $0x638] sm:$0xff]
          %v603 = vld [vmem:[#allocation7 + $0x640] sm:$0xff]
          %v604 = vld [vmem:[#allocation7 + $0x648] sm:$0xff]
          %v605 = vld [vmem:[#allocation7 + $0x650] sm:$0xff]
          %v606 = vld [vmem:[#allocation7 + $0x658] sm:$0xff]
          %v607 = vld [vmem:[#allocation7 + $0x660] sm:$0xff]
          %v608 = vld [vmem:[#allocation7 + $0x668] sm:$0xff]
          %v609 = vld [vmem:[#allocation7 + $0x670] sm:$0xff]
          %v610 = vld [vmem:[#allocation7 + $0x678] sm:$0xff]
          %v611 = vld [vmem:[#allocation7 + $0x680] sm:$0xff]
          %v612 = vld [vmem:[#allocation7 + $0x688] sm:$0xff]
          %v613 = vld [vmem:[#allocation7 + $0x690] sm:$0xff]
          %v614 = vld [vmem:[#allocation7 + $0x698] sm:$0xff]
          %v615 = vld [vmem:[#allocation7 + $0x6a0] sm:$0xff]
          %v616 = vld [vmem:[#allocation7 + $0x6a8] sm:$0xff]
          %v617 = vld [vmem:[#allocation7 + $0x6b0] sm:$0xff]
          %v618 = vld [vmem:[#allocation7 + $0x6b8] sm:$0xff]
          %v619 = vld [vmem:[#allocation7 + $0x6c0] sm:$0xff]
          %v620 = vld [vmem:[#allocation7 + $0x6c8] sm:$0xff]
          %v621 = vld [vmem:[#allocation7 + $0x6d0] sm:$0xff]
          %v622 = vld [vmem:[#allocation7 + $0x6d8] sm:$0xff]
          %v623 = vld [vmem:[#allocation7 + $0x6e0] sm:$0xff]
          %v624 = vld [vmem:[#allocation7 + $0x6e8] sm:$0xff]
          %v625 = vld [vmem:[#allocation7 + $0x6f0] sm:$0xff]
          %v626 = vld [vmem:[#allocation7 + $0x6f8] sm:$0xff]
          %v627 = vld [vmem:[#allocation7 + $0x700] sm:$0xff]
          %v628 = vld [vmem:[#allocation7 + $0x708] sm:$0xff]
          %v629 = vld [vmem:[#allocation7 + $0x710] sm:$0xff]
          %v630 = vld [vmem:[#allocation7 + $0x718] sm:$0xff]
          %v631 = vld [vmem:[#allocation7 + $0x720] sm:$0xff]
          %v632 = vld [vmem:[#allocation7 + $0x728] sm:$0xff]
          %v633 = vld [vmem:[#allocation7 + $0x730] sm:$0xff]
          %v634 = vld [vmem:[#allocation7 + $0x738] sm:$0xff]
          %v635 = vld [vmem:[#allocation7 + $0x740] sm:$0xff]
          %v636 = vld [vmem:[#allocation7 + $0x748] sm:$0xff]
          %v637 = vld [vmem:[#allocation7 + $0x750] sm:$0xff]
          %v638 = vld [vmem:[#allocation7 + $0x758] sm:$0xff]
          %v639 = vld [vmem:[#allocation7 + $0x760] sm:$0xff]
          %v640 = vld [vmem:[#allocation7 + $0x768] sm:$0xff]
          %v641 = vld [vmem:[#allocation7 + $0x770] sm:$0xff]
          %v642 = vld [vmem:[#allocation7 + $0x778] sm:$0xff]
          %v643 = vld [vmem:[#allocation7 + $0x780] sm:$0xff]
          %v644 = vld [vmem:[#allocation7 + $0x788] sm:$0xff]
          %v645 = vld [vmem:[#allocation7 + $0x790] sm:$0xff]
          %v646 = vld [vmem:[#allocation7 + $0x798] sm:$0xff]
          %v647 = vld [vmem:[#allocation7 + $0x7a0] sm:$0xff]
          %v648 = vld [vmem:[#allocation7 + $0x7a8] sm:$0xff]
          %v649 = vld [vmem:[#allocation7 + $0x7b0] sm:$0xff]
          %v650 = vld [vmem:[#allocation7 + $0x7b8] sm:$0xff]
          %v651 = vld [vmem:[#allocation7 + $0x7c0] sm:$0xff]
          %v652 = vld [vmem:[#allocation7 + $0x7c8] sm:$0xff]
          %v653 = vld [vmem:[#allocation7 + $0x7d0] sm:$0xff]
          %v654 = vld [vmem:[#allocation7 + $0x7d8] sm:$0xff]
          %v655 = vld [vmem:[#allocation7 + $0x7e0] sm:$0xff]
          %v656 = vld [vmem:[#allocation7 + $0x7e8] sm:$0xff]
          %v657 = vld [vmem:[#allocation7 + $0x7f0] sm:$0xff]
          %v658 = vld [vmem:[#allocation7 + $0x7f8] sm:$0xff]
          %v659 = vld [vmem:[#allocation9] sm:$0xff]
          %v660 = vld [vmem:[#allocation9 + $0x8] sm:$0xff]
          %v663 = vlaneseq
          %v664 = vshrl.u32 %v663, 7
          %v665 = vsub.s32 0, %v664
          %v666 = vrot.slane %v659, %v665
          %v667 = vlaneseq
          %v668 = vshrl.u32 %v667, 7
          %v669 = vsub.s32 1, %v668
          %v670 = vrot.slane %v659, %v669
          %v671 = vlaneseq
          %v672 = vshrl.u32 %v671, 7
          %v673 = vsub.s32 2, %v672
          %v674 = vrot.slane %v659, %v673
          %v675 = vlaneseq
          %v676 = vshrl.u32 %v675, 7
          %v677 = vsub.s32 3, %v676
          %v678 = vrot.slane %v659, %v677
          %v679 = vlaneseq
          %v680 = vshrl.u32 %v679, 7
          %v681 = vsub.s32 4, %v680
          %v682 = vrot.slane %v659, %v681
          %v683 = vlaneseq
          %v684 = vshrl.u32 %v683, 7
          %v685 = vsub.s32 5, %v684
          %v686 = vrot.slane %v659, %v685
          %v687 = vlaneseq
          %v688 = vshrl.u32 %v687, 7
          %v689 = vsub.s32 6, %v688
          %v690 = vrot.slane %v659, %v689
          %v691 = vlaneseq
          %v692 = vshrl.u32 %v691, 7
          %v693 = vsub.s32 7, %v692
          %v694 = vrot.slane %v659, %v693
          %v695 = vlaneseq
          %v696 = vshrl.u32 %v695, 7
          %v697 = vsub.s32 0, %v696
          %v698 = vrot.slane %v660, %v697
          %v699 = vlaneseq
          %v700 = vshrl.u32 %v699, 7
          %v701 = vsub.s32 1, %v700
          %v702 = vrot.slane %v660, %v701
          %v703 = vlaneseq
          %v704 = vshrl.u32 %v703, 7
          %v705 = vsub.s32 2, %v704
          %v706 = vrot.slane %v660, %v705
          %v707 = vlaneseq
          %v708 = vshrl.u32 %v707, 7
          %v709 = vsub.s32 3, %v708
          %v710 = vrot.slane %v660, %v709
          %v711 = vlaneseq
          %v712 = vshrl.u32 %v711, 7
          %v713 = vsub.s32 4, %v712
          %v714 = vrot.slane %v660, %v713
          %v715 = vlaneseq
          %v716 = vshrl.u32 %v715, 7
          %v717 = vsub.s32 5, %v716
          %v718 = vrot.slane %v660, %v717
          %v719 = vlaneseq
          %v720 = vshrl.u32 %v719, 7
          %v721 = vsub.s32 6, %v720
          %v722 = vrot.slane %v660, %v721
          %v723 = vlaneseq
          %v724 = vshrl.u32 %v723, 7
          %v725 = vsub.s32 7, %v724
          %v726 = vrot.slane %v660, %v725
          %v744 = vunpack.c.l.b16 %v402
          %v745 = vunpack.c.h.b16 %v402
          %v746 = vpack.c.b16 %v744, %v744
          %v747 = vpack.c.b16 %v745, %v745
          %v1006 = vunpack.c.l.b16 %v403
          %v1007 = vunpack.c.h.b16 %v403
          %v1008 = vunpack.c.l.b16 %v404
          %v1009 = vunpack.c.h.b16 %v404
          %v1010 = vunpack.c.l.b16 %v405
          %v1011 = vunpack.c.h.b16 %v405
          %v1012 = vunpack.c.l.b16 %v406
          %v1013 = vunpack.c.h.b16 %v406
          %v1014 = vunpack.c.l.b16 %v407
          %v1015 = vunpack.c.h.b16 %v407
          %v1016 = vunpack.c.l.b16 %v408
          %v1017 = vunpack.c.h.b16 %v408
          %v1018 = vunpack.c.l.b16 %v409
          %v1019 = vunpack.c.h.b16 %v409
          %v1020 = vunpack.c.l.b16 %v410
          %v1021 = vunpack.c.h.b16 %v410
          %v1022 = vunpack.c.l.b16 %v411
          %v1023 = vunpack.c.h.b16 %v411
          %v1024 = vunpack.c.l.b16 %v412
          %v1025 = vunpack.c.h.b16 %v412
          %v1026 = vunpack.c.l.b16 %v413
          %v1027 = vunpack.c.h.b16 %v413
          %v1028 = vunpack.c.l.b16 %v414
          %v1029 = vunpack.c.h.b16 %v414
          %v1030 = vunpack.c.l.b16 %v415
          %v1031 = vunpack.c.h.b16 %v415
          %v1032 = vunpack.c.l.b16 %v416
          %v1033 = vunpack.c.h.b16 %v416
          %v1034 = vunpack.c.l.b16 %v417
          %v1035 = vunpack.c.h.b16 %v417
          %v1036 = vunpack.c.l.b16 %v418
          %v1037 = vunpack.c.h.b16 %v418
          %v1038 = vunpack.c.l.b16 %v419
          %v1039 = vunpack.c.h.b16 %v419
          %v1040 = vunpack.c.l.b16 %v420
          %v1041 = vunpack.c.h.b16 %v420
          %v1042 = vunpack.c.l.b16 %v421
          %v1043 = vunpack.c.h.b16 %v421
          %v1044 = vunpack.c.l.b16 %v422
          %v1045 = vunpack.c.h.b16 %v422
          %v1046 = vunpack.c.l.b16 %v423
          %v1047 = vunpack.c.h.b16 %v423
          %v1048 = vunpack.c.l.b16 %v424
          %v1049 = vunpack.c.h.b16 %v424
          %v1050 = vunpack.c.l.b16 %v425
          %v1051 = vunpack.c.h.b16 %v425
          %v1052 = vunpack.c.l.b16 %v426
          %v1053 = vunpack.c.h.b16 %v426
          %v1054 = vunpack.c.l.b16 %v427
          %v1055 = vunpack.c.h.b16 %v427
          %v1056 = vunpack.c.l.b16 %v428
          %v1057 = vunpack.c.h.b16 %v428
          %v1058 = vunpack.c.l.b16 %v429
          %v1059 = vunpack.c.h.b16 %v429
          %v1060 = vunpack.c.l.b16 %v430
          %v1061 = vunpack.c.h.b16 %v430
          %v1062 = vunpack.c.l.b16 %v431
          %v1063 = vunpack.c.h.b16 %v431
          %v1064 = vunpack.c.l.b16 %v432
          %v1065 = vunpack.c.h.b16 %v432
          %v1066 = vunpack.c.l.b16 %v433
          %v1067 = vunpack.c.h.b16 %v433
          %v1068 = vunpack.c.l.b16 %v434
          %v1069 = vunpack.c.h.b16 %v434
          %v1070 = vunpack.c.l.b16 %v435
          %v1071 = vunpack.c.h.b16 %v435
          %v1072 = vunpack.c.l.b16 %v436
          %v1073 = vunpack.c.h.b16 %v436
          %v1074 = vunpack.c.l.b16 %v437
          %v1075 = vunpack.c.h.b16 %v437
          %v1076 = vunpack.c.l.b16 %v438
          %v1077 = vunpack.c.h.b16 %v438
          %v1078 = vunpack.c.l.b16 %v439
          %v1079 = vunpack.c.h.b16 %v439
          %v1080 = vunpack.c.l.b16 %v440
          %v1081 = vunpack.c.h.b16 %v440
          %v1082 = vunpack.c.l.b16 %v441
          %v1083 = vunpack.c.h.b16 %v441
          %v1084 = vunpack.c.l.b16 %v442
          %v1085 = vunpack.c.h.b16 %v442
          %v1086 = vunpack.c.l.b16 %v443
          %v1087 = vunpack.c.h.b16 %v443
          %v1088 = vunpack.c.l.b16 %v444
          %v1089 = vunpack.c.h.b16 %v444
          %v1090 = vunpack.c.l.b16 %v445
          %v1091 = vunpack.c.h.b16 %v445
          %v1092 = vunpack.c.l.b16 %v446
          %v1093 = vunpack.c.h.b16 %v446
          %v1094 = vunpack.c.l.b16 %v447
          %v1095 = vunpack.c.h.b16 %v447
          %v1096 = vunpack.c.l.b16 %v448
          %v1097 = vunpack.c.h.b16 %v448
          %v1098 = vunpack.c.l.b16 %v449
          %v1099 = vunpack.c.h.b16 %v449
          %v1100 = vunpack.c.l.b16 %v450
          %v1101 = vunpack.c.h.b16 %v450
          %v1102 = vunpack.c.l.b16 %v451
          %v1103 = vunpack.c.h.b16 %v451
          %v1104 = vunpack.c.l.b16 %v452
          %v1105 = vunpack.c.h.b16 %v452
          %v1106 = vunpack.c.l.b16 %v453
          %v1107 = vunpack.c.h.b16 %v453
          %v1108 = vunpack.c.l.b16 %v454
          %v1109 = vunpack.c.h.b16 %v454
          %v1110 = vunpack.c.l.b16 %v455
          %v1111 = vunpack.c.h.b16 %v455
          %v1112 = vunpack.c.l.b16 %v456
          %v1113 = vunpack.c.h.b16 %v456
          %v1114 = vunpack.c.l.b16 %v457
          %v1115 = vunpack.c.h.b16 %v457
          %v1116 = vunpack.c.l.b16 %v458
          %v1117 = vunpack.c.h.b16 %v458
          %v1118 = vunpack.c.l.b16 %v459
          %v1119 = vunpack.c.h.b16 %v459
          %v1120 = vunpack.c.l.b16 %v460
          %v1121 = vunpack.c.h.b16 %v460
          %v1122 = vunpack.c.l.b16 %v461
          %v1123 = vunpack.c.h.b16 %v461
          %v1124 = vunpack.c.l.b16 %v462
          %v1125 = vunpack.c.h.b16 %v462
          %v1126 = vunpack.c.l.b16 %v463
          %v1127 = vunpack.c.h.b16 %v463
          %v1128 = vunpack.c.l.b16 %v464
          %v1129 = vunpack.c.h.b16 %v464
          %v1130 = vunpack.c.l.b16 %v465
          %v1131 = vunpack.c.h.b16 %v465
          %v1132 = vunpack.c.l.b16 %v466
          %v1133 = vunpack.c.h.b16 %v466
          %v1134 = vunpack.c.l.b16 %v467
          %v1135 = vunpack.c.h.b16 %v467
          %v1136 = vunpack.c.l.b16 %v468
          %v1137 = vunpack.c.h.b16 %v468
          %v1138 = vunpack.c.l.b16 %v469
          %v1139 = vunpack.c.h.b16 %v469
          %v1140 = vunpack.c.l.b16 %v470
          %v1141 = vunpack.c.h.b16 %v470
          %v1142 = vunpack.c.l.b16 %v471
          %v1143 = vunpack.c.h.b16 %v471
          %v1144 = vunpack.c.l.b16 %v472
          %v1145 = vunpack.c.h.b16 %v472
          %v1146 = vunpack.c.l.b16 %v473
          %v1147 = vunpack.c.h.b16 %v473
          %v1148 = vunpack.c.l.b16 %v474
          %v1149 = vunpack.c.h.b16 %v474
          %v1150 = vunpack.c.l.b16 %v475
          %v1151 = vunpack.c.h.b16 %v475
          %v1152 = vunpack.c.l.b16 %v476
          %v1153 = vunpack.c.h.b16 %v476
          %v1154 = vunpack.c.l.b16 %v477
          %v1155 = vunpack.c.h.b16 %v477
          %v1156 = vunpack.c.l.b16 %v478
          %v1157 = vunpack.c.h.b16 %v478
          %v1158 = vunpack.c.l.b16 %v479
          %v1159 = vunpack.c.h.b16 %v479
          %v1160 = vunpack.c.l.b16 %v480
          %v1161 = vunpack.c.h.b16 %v480
          %v1162 = vunpack.c.l.b16 %v481
          %v1163 = vunpack.c.h.b16 %v481
          %v1164 = vunpack.c.l.b16 %v482
          %v1165 = vunpack.c.h.b16 %v482
          %v1166 = vunpack.c.l.b16 %v483
          %v1167 = vunpack.c.h.b16 %v483
          %v1168 = vunpack.c.l.b16 %v484
          %v1169 = vunpack.c.h.b16 %v484
          %v1170 = vunpack.c.l.b16 %v485
          %v1171 = vunpack.c.h.b16 %v485
          %v1172 = vunpack.c.l.b16 %v486
          %v1173 = vunpack.c.h.b16 %v486
          %v1174 = vunpack.c.l.b16 %v487
          %v1175 = vunpack.c.h.b16 %v487
          %v1176 = vunpack.c.l.b16 %v488
          %v1177 = vunpack.c.h.b16 %v488
          %v1178 = vunpack.c.l.b16 %v489
          %v1179 = vunpack.c.h.b16 %v489
          %v1180 = vunpack.c.l.b16 %v490
          %v1181 = vunpack.c.h.b16 %v490
          %v1182 = vunpack.c.l.b16 %v491
          %v1183 = vunpack.c.h.b16 %v491
          %v1184 = vunpack.c.l.b16 %v492
          %v1185 = vunpack.c.h.b16 %v492
          %v1186 = vunpack.c.l.b16 %v493
          %v1187 = vunpack.c.h.b16 %v493
          %v1188 = vunpack.c.l.b16 %v494
          %v1189 = vunpack.c.h.b16 %v494
          %v1190 = vunpack.c.l.b16 %v495
          %v1191 = vunpack.c.h.b16 %v495
          %v1192 = vunpack.c.l.b16 %v496
          %v1193 = vunpack.c.h.b16 %v496
          %v1194 = vunpack.c.l.b16 %v497
          %v1195 = vunpack.c.h.b16 %v497
          %v1196 = vunpack.c.l.b16 %v498
          %v1197 = vunpack.c.h.b16 %v498
          %v1198 = vunpack.c.l.b16 %v499
          %v1199 = vunpack.c.h.b16 %v499
          %v1200 = vunpack.c.l.b16 %v500
          %v1201 = vunpack.c.h.b16 %v500
          %v1202 = vunpack.c.l.b16 %v501
          %v1203 = vunpack.c.h.b16 %v501
          %v1204 = vunpack.c.l.b16 %v502
          %v1205 = vunpack.c.h.b16 %v502
          %v1206 = vunpack.c.l.b16 %v503
          %v1207 = vunpack.c.h.b16 %v503
          %v1208 = vunpack.c.l.b16 %v504
          %v1209 = vunpack.c.h.b16 %v504
          %v1210 = vunpack.c.l.b16 %v505
          %v1211 = vunpack.c.h.b16 %v505
          %v1212 = vunpack.c.l.b16 %v506
          %v1213 = vunpack.c.h.b16 %v506
          %v1214 = vunpack.c.l.b16 %v507
          %v1215 = vunpack.c.h.b16 %v507
          %v1216 = vunpack.c.l.b16 %v508
          %v1217 = vunpack.c.h.b16 %v508
          %v1218 = vunpack.c.l.b16 %v509
          %v1219 = vunpack.c.h.b16 %v509
          %v1220 = vunpack.c.l.b16 %v510
          %v1221 = vunpack.c.h.b16 %v510
          %v1222 = vunpack.c.l.b16 %v511
          %v1223 = vunpack.c.h.b16 %v511
          %v1224 = vunpack.c.l.b16 %v512
          %v1225 = vunpack.c.h.b16 %v512
          %v1226 = vunpack.c.l.b16 %v513
          %v1227 = vunpack.c.h.b16 %v513
          %v1228 = vunpack.c.l.b16 %v514
          %v1229 = vunpack.c.h.b16 %v514
          %v1230 = vunpack.c.l.b16 %v515
          %v1231 = vunpack.c.h.b16 %v515
          %v1232 = vunpack.c.l.b16 %v516
          %v1233 = vunpack.c.h.b16 %v516
          %v1234 = vunpack.c.l.b16 %v517
          %v1235 = vunpack.c.h.b16 %v517
          %v1236 = vunpack.c.l.b16 %v518
          %v1237 = vunpack.c.h.b16 %v518
          %v1238 = vunpack.c.l.b16 %v519
          %v1239 = vunpack.c.h.b16 %v519
          %v1240 = vunpack.c.l.b16 %v520
          %v1241 = vunpack.c.h.b16 %v520
          %v1242 = vunpack.c.l.b16 %v521
          %v1243 = vunpack.c.h.b16 %v521
          %v1244 = vunpack.c.l.b16 %v522
          %v1245 = vunpack.c.h.b16 %v522
          %v1246 = vunpack.c.l.b16 %v523
          %v1247 = vunpack.c.h.b16 %v523
          %v1248 = vunpack.c.l.b16 %v524
          %v1249 = vunpack.c.h.b16 %v524
          %v1250 = vunpack.c.l.b16 %v525
          %v1251 = vunpack.c.h.b16 %v525
          %v1252 = vunpack.c.l.b16 %v526
          %v1253 = vunpack.c.h.b16 %v526
          %v1254 = vunpack.c.l.b16 %v527
          %v1255 = vunpack.c.h.b16 %v527
          %v1256 = vunpack.c.l.b16 %v528
          %v1257 = vunpack.c.h.b16 %v528
          %v1258 = vunpack.c.l.b16 %v529
          %v1259 = vunpack.c.h.b16 %v529
          %v1260 = vunpack.c.l.b16 %v530
          %v1261 = vunpack.c.h.b16 %v530
          %v1262 = vunpack.c.l.b16 %v531
          %v1263 = vunpack.c.h.b16 %v531
          %v1264 = vunpack.c.l.b16 %v532
          %v1265 = vunpack.c.h.b16 %v532
          %v1266 = vunpack.c.l.b16 %v533
          %v1267 = vunpack.c.h.b16 %v533
          %v1268 = vunpack.c.l.b16 %v534
          %v1269 = vunpack.c.h.b16 %v534
          %v1270 = vunpack.c.l.b16 %v535
          %v1271 = vunpack.c.h.b16 %v535
          %v1272 = vunpack.c.l.b16 %v536
          %v1273 = vunpack.c.h.b16 %v536
          %v1274 = vunpack.c.l.b16 %v537
          %v1275 = vunpack.c.h.b16 %v537
          %v1276 = vunpack.c.l.b16 %v538
          %v1277 = vunpack.c.h.b16 %v538
          %v1278 = vunpack.c.l.b16 %v539
          %v1279 = vunpack.c.h.b16 %v539
          %v1280 = vunpack.c.l.b16 %v540
          %v1281 = vunpack.c.h.b16 %v540
          %v1282 = vunpack.c.l.b16 %v541
          %v1283 = vunpack.c.h.b16 %v541
          %v1284 = vunpack.c.l.b16 %v542
          %v1285 = vunpack.c.h.b16 %v542
          %v1286 = vunpack.c.l.b16 %v543
          %v1287 = vunpack.c.h.b16 %v543
          %v1288 = vunpack.c.l.b16 %v544
          %v1289 = vunpack.c.h.b16 %v544
          %v1290 = vunpack.c.l.b16 %v545
          %v1291 = vunpack.c.h.b16 %v545
          %v1292 = vunpack.c.l.b16 %v546
          %v1293 = vunpack.c.h.b16 %v546
          %v1294 = vunpack.c.l.b16 %v547
          %v1295 = vunpack.c.h.b16 %v547
          %v1296 = vunpack.c.l.b16 %v548
          %v1297 = vunpack.c.h.b16 %v548
          %v1298 = vunpack.c.l.b16 %v549
          %v1299 = vunpack.c.h.b16 %v549
          %v1300 = vunpack.c.l.b16 %v550
          %v1301 = vunpack.c.h.b16 %v550
          %v1302 = vunpack.c.l.b16 %v551
          %v1303 = vunpack.c.h.b16 %v551
          %v1304 = vunpack.c.l.b16 %v552
          %v1305 = vunpack.c.h.b16 %v552
          %v1306 = vunpack.c.l.b16 %v553
          %v1307 = vunpack.c.h.b16 %v553
          %v1308 = vunpack.c.l.b16 %v554
          %v1309 = vunpack.c.h.b16 %v554
          %v1310 = vunpack.c.l.b16 %v555
          %v1311 = vunpack.c.h.b16 %v555
          %v1312 = vunpack.c.l.b16 %v556
          %v1313 = vunpack.c.h.b16 %v556
          %v1314 = vunpack.c.l.b16 %v557
          %v1315 = vunpack.c.h.b16 %v557
          %v1316 = vunpack.c.l.b16 %v558
          %v1317 = vunpack.c.h.b16 %v558
          %v1318 = vunpack.c.l.b16 %v559
          %v1319 = vunpack.c.h.b16 %v559
          %v1320 = vunpack.c.l.b16 %v560
          %v1321 = vunpack.c.h.b16 %v560
          %v1322 = vunpack.c.l.b16 %v561
          %v1323 = vunpack.c.h.b16 %v561
          %v1324 = vunpack.c.l.b16 %v562
          %v1325 = vunpack.c.h.b16 %v562
          %v1326 = vunpack.c.l.b16 %v563
          %v1327 = vunpack.c.h.b16 %v563
          %v1328 = vunpack.c.l.b16 %v564
          %v1329 = vunpack.c.h.b16 %v564
          %v1330 = vunpack.c.l.b16 %v565
          %v1331 = vunpack.c.h.b16 %v565
          %v1332 = vunpack.c.l.b16 %v566
          %v1333 = vunpack.c.h.b16 %v566
          %v1334 = vunpack.c.l.b16 %v567
          %v1335 = vunpack.c.h.b16 %v567
          %v1336 = vunpack.c.l.b16 %v568
          %v1337 = vunpack.c.h.b16 %v568
          %v1338 = vunpack.c.l.b16 %v569
          %v1339 = vunpack.c.h.b16 %v569
          %v1340 = vunpack.c.l.b16 %v570
          %v1341 = vunpack.c.h.b16 %v570
          %v1342 = vunpack.c.l.b16 %v571
          %v1343 = vunpack.c.h.b16 %v571
          %v1344 = vunpack.c.l.b16 %v572
          %v1345 = vunpack.c.h.b16 %v572
          %v1346 = vunpack.c.l.b16 %v573
          %v1347 = vunpack.c.h.b16 %v573
          %v1348 = vunpack.c.l.b16 %v574
          %v1349 = vunpack.c.h.b16 %v574
          %v1350 = vunpack.c.l.b16 %v575
          %v1351 = vunpack.c.h.b16 %v575
          %v1352 = vunpack.c.l.b16 %v576
          %v1353 = vunpack.c.h.b16 %v576
          %v1354 = vunpack.c.l.b16 %v577
          %v1355 = vunpack.c.h.b16 %v577
          %v1356 = vunpack.c.l.b16 %v578
          %v1357 = vunpack.c.h.b16 %v578
          %v1358 = vunpack.c.l.b16 %v579
          %v1359 = vunpack.c.h.b16 %v579
          %v1360 = vunpack.c.l.b16 %v580
          %v1361 = vunpack.c.h.b16 %v580
          %v1362 = vunpack.c.l.b16 %v581
          %v1363 = vunpack.c.h.b16 %v581
          %v1364 = vunpack.c.l.b16 %v582
          %v1365 = vunpack.c.h.b16 %v582
          %v1366 = vunpack.c.l.b16 %v583
          %v1367 = vunpack.c.h.b16 %v583
          %v1368 = vunpack.c.l.b16 %v584
          %v1369 = vunpack.c.h.b16 %v584
          %v1370 = vunpack.c.l.b16 %v585
          %v1371 = vunpack.c.h.b16 %v585
          %v1372 = vunpack.c.l.b16 %v586
          %v1373 = vunpack.c.h.b16 %v586
          %v1374 = vunpack.c.l.b16 %v587
          %v1375 = vunpack.c.h.b16 %v587
          %v1376 = vunpack.c.l.b16 %v588
          %v1377 = vunpack.c.h.b16 %v588
          %v1378 = vunpack.c.l.b16 %v589
          %v1379 = vunpack.c.h.b16 %v589
          %v1380 = vunpack.c.l.b16 %v590
          %v1381 = vunpack.c.h.b16 %v590
          %v1382 = vunpack.c.l.b16 %v591
          %v1383 = vunpack.c.h.b16 %v591
          %v1384 = vunpack.c.l.b16 %v592
          %v1385 = vunpack.c.h.b16 %v592
          %v1386 = vunpack.c.l.b16 %v593
          %v1387 = vunpack.c.h.b16 %v593
          %v1388 = vunpack.c.l.b16 %v594
          %v1389 = vunpack.c.h.b16 %v594
          %v1390 = vunpack.c.l.b16 %v595
          %v1391 = vunpack.c.h.b16 %v595
          %v1392 = vunpack.c.l.b16 %v596
          %v1393 = vunpack.c.h.b16 %v596
          %v1394 = vunpack.c.l.b16 %v597
          %v1395 = vunpack.c.h.b16 %v597
          %v1396 = vunpack.c.l.b16 %v598
          %v1397 = vunpack.c.h.b16 %v598
          %v1398 = vunpack.c.l.b16 %v599
          %v1399 = vunpack.c.h.b16 %v599
          %v1400 = vunpack.c.l.b16 %v600
          %v1401 = vunpack.c.h.b16 %v600
          %v1402 = vunpack.c.l.b16 %v601
          %v1403 = vunpack.c.h.b16 %v601
          %v1404 = vunpack.c.l.b16 %v602
          %v1405 = vunpack.c.h.b16 %v602
          %v1406 = vunpack.c.l.b16 %v603
          %v1407 = vunpack.c.h.b16 %v603
          %v1408 = vunpack.c.l.b16 %v604
          %v1409 = vunpack.c.h.b16 %v604
          %v1410 = vunpack.c.l.b16 %v605
          %v1411 = vunpack.c.h.b16 %v605
          %v1412 = vunpack.c.l.b16 %v606
          %v1413 = vunpack.c.h.b16 %v606
          %v1414 = vunpack.c.l.b16 %v607
          %v1415 = vunpack.c.h.b16 %v607
          %v1416 = vunpack.c.l.b16 %v608
          %v1417 = vunpack.c.h.b16 %v608
          %v1418 = vunpack.c.l.b16 %v609
          %v1419 = vunpack.c.h.b16 %v609
          %v1420 = vunpack.c.l.b16 %v610
          %v1421 = vunpack.c.h.b16 %v610
          %v1422 = vunpack.c.l.b16 %v611
          %v1423 = vunpack.c.h.b16 %v611
          %v1424 = vunpack.c.l.b16 %v612
          %v1425 = vunpack.c.h.b16 %v612
          %v1426 = vunpack.c.l.b16 %v613
          %v1427 = vunpack.c.h.b16 %v613
          %v1428 = vunpack.c.l.b16 %v614
          %v1429 = vunpack.c.h.b16 %v614
          %v1430 = vunpack.c.l.b16 %v615
          %v1431 = vunpack.c.h.b16 %v615
          %v1432 = vunpack.c.l.b16 %v616
          %v1433 = vunpack.c.h.b16 %v616
          %v1434 = vunpack.c.l.b16 %v617
          %v1435 = vunpack.c.h.b16 %v617
          %v1436 = vunpack.c.l.b16 %v618
          %v1437 = vunpack.c.h.b16 %v618
          %v1438 = vunpack.c.l.b16 %v619
          %v1439 = vunpack.c.h.b16 %v619
          %v1440 = vunpack.c.l.b16 %v620
          %v1441 = vunpack.c.h.b16 %v620
          %v1442 = vunpack.c.l.b16 %v621
          %v1443 = vunpack.c.h.b16 %v621
          %v1444 = vunpack.c.l.b16 %v622
          %v1445 = vunpack.c.h.b16 %v622
          %v1446 = vunpack.c.l.b16 %v623
          %v1447 = vunpack.c.h.b16 %v623
          %v1448 = vunpack.c.l.b16 %v624
          %v1449 = vunpack.c.h.b16 %v624
          %v1450 = vunpack.c.l.b16 %v625
          %v1451 = vunpack.c.h.b16 %v625
          %v1452 = vunpack.c.l.b16 %v626
          %v1453 = vunpack.c.h.b16 %v626
          %v1454 = vunpack.c.l.b16 %v627
          %v1455 = vunpack.c.h.b16 %v627
          %v1456 = vunpack.c.l.b16 %v628
          %v1457 = vunpack.c.h.b16 %v628
          %v1458 = vunpack.c.l.b16 %v629
          %v1459 = vunpack.c.h.b16 %v629
          %v1460 = vunpack.c.l.b16 %v630
          %v1461 = vunpack.c.h.b16 %v630
          %v1462 = vunpack.c.l.b16 %v631
          %v1463 = vunpack.c.h.b16 %v631
          %v1464 = vunpack.c.l.b16 %v632
          %v1465 = vunpack.c.h.b16 %v632
          %v1466 = vunpack.c.l.b16 %v633
          %v1467 = vunpack.c.h.b16 %v633
          %v1468 = vunpack.c.l.b16 %v634
          %v1469 = vunpack.c.h.b16 %v634
          %v1470 = vunpack.c.l.b16 %v635
          %v1471 = vunpack.c.h.b16 %v635
          %v1472 = vunpack.c.l.b16 %v636
          %v1473 = vunpack.c.h.b16 %v636
          %v1474 = vunpack.c.l.b16 %v637
          %v1475 = vunpack.c.h.b16 %v637
          %v1476 = vunpack.c.l.b16 %v638
          %v1477 = vunpack.c.h.b16 %v638
          %v1478 = vunpack.c.l.b16 %v639
          %v1479 = vunpack.c.h.b16 %v639
          %v1480 = vunpack.c.l.b16 %v640
          %v1481 = vunpack.c.h.b16 %v640
          %v1482 = vunpack.c.l.b16 %v641
          %v1483 = vunpack.c.h.b16 %v641
          %v1484 = vunpack.c.l.b16 %v642
          %v1485 = vunpack.c.h.b16 %v642
          %v1486 = vunpack.c.l.b16 %v643
          %v1487 = vunpack.c.h.b16 %v643
          %v1488 = vunpack.c.l.b16 %v644
          %v1489 = vunpack.c.h.b16 %v644
          %v1490 = vunpack.c.l.b16 %v645
          %v1491 = vunpack.c.h.b16 %v645
          %v1492 = vunpack.c.l.b16 %v646
          %v1493 = vunpack.c.h.b16 %v646
          %v1494 = vunpack.c.l.b16 %v647
          %v1495 = vunpack.c.h.b16 %v647
          %v1496 = vunpack.c.l.b16 %v648
          %v1497 = vunpack.c.h.b16 %v648
          %v1498 = vunpack.c.l.b16 %v649
          %v1499 = vunpack.c.h.b16 %v649
          %v1500 = vunpack.c.l.b16 %v650
          %v1501 = vunpack.c.h.b16 %v650
          %v1502 = vunpack.c.l.b16 %v651
          %v1503 = vunpack.c.h.b16 %v651
          %v1504 = vunpack.c.l.b16 %v652
          %v1505 = vunpack.c.h.b16 %v652
          %v1506 = vunpack.c.l.b16 %v653
          %v1507 = vunpack.c.h.b16 %v653
          %v1508 = vunpack.c.l.b16 %v654
          %v1509 = vunpack.c.h.b16 %v654
          %v1510 = vunpack.c.l.b16 %v655
          %v1511 = vunpack.c.h.b16 %v655
          %v1512 = vunpack.c.l.b16 %v656
          %v1513 = vunpack.c.h.b16 %v656
          %v1514 = vunpack.c.l.b16 %v657
          %v1515 = vunpack.c.h.b16 %v657
          %v1516 = vunpack.c.l.b16 %v658
          %v1517 = vunpack.c.h.b16 %v658
          %v1518 = vpack.c.b16 %v1022, %v1006
          %v1519 = vpack.c.b16 %v1023, %v1007
          %v1520 = vpack.c.b16 %v1024, %v1008
          %v1521 = vpack.c.b16 %v1025, %v1009
          %v1522 = vpack.c.b16 %v1026, %v1010
          %v1523 = vpack.c.b16 %v1027, %v1011
          %v1524 = vpack.c.b16 %v1028, %v1012
          %v1525 = vpack.c.b16 %v1029, %v1013
          %v1526 = vpack.c.b16 %v1030, %v1014
          %v1527 = vpack.c.b16 %v1031, %v1015
          %v1528 = vpack.c.b16 %v1032, %v1016
          %v1529 = vpack.c.b16 %v1033, %v1017
          %v1530 = vpack.c.b16 %v1034, %v1018
          %v1531 = vpack.c.b16 %v1035, %v1019
          %v1532 = vpack.c.b16 %v1036, %v1020
          %v1533 = vpack.c.b16 %v1037, %v1021
          %v1534 = vpack.c.b16 %v1054, %v1038
          %v1535 = vpack.c.b16 %v1055, %v1039
          %v1536 = vpack.c.b16 %v1056, %v1040
          %v1537 = vpack.c.b16 %v1057, %v1041
          %v1538 = vpack.c.b16 %v1058, %v1042
          %v1539 = vpack.c.b16 %v1059, %v1043
          %v1540 = vpack.c.b16 %v1060, %v1044
          %v1541 = vpack.c.b16 %v1061, %v1045
          %v1542 = vpack.c.b16 %v1062, %v1046
          %v1543 = vpack.c.b16 %v1063, %v1047
          %v1544 = vpack.c.b16 %v1064, %v1048
          %v1545 = vpack.c.b16 %v1065, %v1049
          %v1546 = vpack.c.b16 %v1066, %v1050
          %v1547 = vpack.c.b16 %v1067, %v1051
          %v1548 = vpack.c.b16 %v1068, %v1052
          %v1549 = vpack.c.b16 %v1069, %v1053
          %v1550 = vpack.c.b16 %v1086, %v1070
          %v1551 = vpack.c.b16 %v1087, %v1071
          %v1552 = vpack.c.b16 %v1088, %v1072
          %v1553 = vpack.c.b16 %v1089, %v1073
          %v1554 = vpack.c.b16 %v1090, %v1074
          %v1555 = vpack.c.b16 %v1091, %v1075
          %v1556 = vpack.c.b16 %v1092, %v1076
          %v1557 = vpack.c.b16 %v1093, %v1077
          %v1558 = vpack.c.b16 %v1094, %v1078
          %v1559 = vpack.c.b16 %v1095, %v1079
          %v1560 = vpack.c.b16 %v1096, %v1080
          %v1561 = vpack.c.b16 %v1097, %v1081
          %v1562 = vpack.c.b16 %v1098, %v1082
          %v1563 = vpack.c.b16 %v1099, %v1083
          %v1564 = vpack.c.b16 %v1100, %v1084
          %v1565 = vpack.c.b16 %v1101, %v1085
          %v1566 = vpack.c.b16 %v1118, %v1102
          %v1567 = vpack.c.b16 %v1119, %v1103
          %v1568 = vpack.c.b16 %v1120, %v1104
          %v1569 = vpack.c.b16 %v1121, %v1105
          %v1570 = vpack.c.b16 %v1122, %v1106
          %v1571 = vpack.c.b16 %v1123, %v1107
          %v1572 = vpack.c.b16 %v1124, %v1108
          %v1573 = vpack.c.b16 %v1125, %v1109
          %v1574 = vpack.c.b16 %v1126, %v1110
          %v1575 = vpack.c.b16 %v1127, %v1111
          %v1576 = vpack.c.b16 %v1128, %v1112
          %v1577 = vpack.c.b16 %v1129, %v1113
          %v1578 = vpack.c.b16 %v1130, %v1114
          %v1579 = vpack.c.b16 %v1131, %v1115
          %v1580 = vpack.c.b16 %v1132, %v1116
          %v1581 = vpack.c.b16 %v1133, %v1117
          %v1582 = vpack.c.b16 %v1150, %v1134
          %v1583 = vpack.c.b16 %v1151, %v1135
          %v1584 = vpack.c.b16 %v1152, %v1136
          %v1585 = vpack.c.b16 %v1153, %v1137
          %v1586 = vpack.c.b16 %v1154, %v1138
          %v1587 = vpack.c.b16 %v1155, %v1139
          %v1588 = vpack.c.b16 %v1156, %v1140
          %v1589 = vpack.c.b16 %v1157, %v1141
          %v1590 = vpack.c.b16 %v1158, %v1142
          %v1591 = vpack.c.b16 %v1159, %v1143
          %v1592 = vpack.c.b16 %v1160, %v1144
          %v1593 = vpack.c.b16 %v1161, %v1145
          %v1594 = vpack.c.b16 %v1162, %v1146
          %v1595 = vpack.c.b16 %v1163, %v1147
          %v1596 = vpack.c.b16 %v1164, %v1148
          %v1597 = vpack.c.b16 %v1165, %v1149
          %v1598 = vpack.c.b16 %v1182, %v1166
          %v1599 = vpack.c.b16 %v1183, %v1167
          %v1600 = vpack.c.b16 %v1184, %v1168
          %v1601 = vpack.c.b16 %v1185, %v1169
          %v1602 = vpack.c.b16 %v1186, %v1170
          %v1603 = vpack.c.b16 %v1187, %v1171
          %v1604 = vpack.c.b16 %v1188, %v1172
          %v1605 = vpack.c.b16 %v1189, %v1173
          %v1606 = vpack.c.b16 %v1190, %v1174
          %v1607 = vpack.c.b16 %v1191, %v1175
          %v1608 = vpack.c.b16 %v1192, %v1176
          %v1609 = vpack.c.b16 %v1193, %v1177
          %v1610 = vpack.c.b16 %v1194, %v1178
          %v1611 = vpack.c.b16 %v1195, %v1179
          %v1612 = vpack.c.b16 %v1196, %v1180
          %v1613 = vpack.c.b16 %v1197, %v1181
          %v1614 = vpack.c.b16 %v1214, %v1198
          %v1615 = vpack.c.b16 %v1215, %v1199
          %v1616 = vpack.c.b16 %v1216, %v1200
          %v1617 = vpack.c.b16 %v1217, %v1201
          %v1618 = vpack.c.b16 %v1218, %v1202
          %v1619 = vpack.c.b16 %v1219, %v1203
          %v1620 = vpack.c.b16 %v1220, %v1204
          %v1621 = vpack.c.b16 %v1221, %v1205
          %v1622 = vpack.c.b16 %v1222, %v1206
          %v1623 = vpack.c.b16 %v1223, %v1207
          %v1624 = vpack.c.b16 %v1224, %v1208
          %v1625 = vpack.c.b16 %v1225, %v1209
          %v1626 = vpack.c.b16 %v1226, %v1210
          %v1627 = vpack.c.b16 %v1227, %v1211
          %v1628 = vpack.c.b16 %v1228, %v1212
          %v1629 = vpack.c.b16 %v1229, %v1213
          %v1630 = vpack.c.b16 %v1246, %v1230
          %v1631 = vpack.c.b16 %v1247, %v1231
          %v1632 = vpack.c.b16 %v1248, %v1232
          %v1633 = vpack.c.b16 %v1249, %v1233
          %v1634 = vpack.c.b16 %v1250, %v1234
          %v1635 = vpack.c.b16 %v1251, %v1235
          %v1636 = vpack.c.b16 %v1252, %v1236
          %v1637 = vpack.c.b16 %v1253, %v1237
          %v1638 = vpack.c.b16 %v1254, %v1238
          %v1639 = vpack.c.b16 %v1255, %v1239
          %v1640 = vpack.c.b16 %v1256, %v1240
          %v1641 = vpack.c.b16 %v1257, %v1241
          %v1642 = vpack.c.b16 %v1258, %v1242
          %v1643 = vpack.c.b16 %v1259, %v1243
          %v1644 = vpack.c.b16 %v1260, %v1244
          %v1645 = vpack.c.b16 %v1261, %v1245
          %v1646 = vpack.c.b16 %v1278, %v1262
          %v1647 = vpack.c.b16 %v1279, %v1263
          %v1648 = vpack.c.b16 %v1280, %v1264
          %v1649 = vpack.c.b16 %v1281, %v1265
          %v1650 = vpack.c.b16 %v1282, %v1266
          %v1651 = vpack.c.b16 %v1283, %v1267
          %v1652 = vpack.c.b16 %v1284, %v1268
          %v1653 = vpack.c.b16 %v1285, %v1269
          %v1654 = vpack.c.b16 %v1286, %v1270
          %v1655 = vpack.c.b16 %v1287, %v1271
          %v1656 = vpack.c.b16 %v1288, %v1272
          %v1657 = vpack.c.b16 %v1289, %v1273
          %v1658 = vpack.c.b16 %v1290, %v1274
          %v1659 = vpack.c.b16 %v1291, %v1275
          %v1660 = vpack.c.b16 %v1292, %v1276
          %v1661 = vpack.c.b16 %v1293, %v1277
          %v1662 = vpack.c.b16 %v1310, %v1294
          %v1663 = vpack.c.b16 %v1311, %v1295
          %v1664 = vpack.c.b16 %v1312, %v1296
          %v1665 = vpack.c.b16 %v1313, %v1297
          %v1666 = vpack.c.b16 %v1314, %v1298
          %v1667 = vpack.c.b16 %v1315, %v1299
          %v1668 = vpack.c.b16 %v1316, %v1300
          %v1669 = vpack.c.b16 %v1317, %v1301
          %v1670 = vpack.c.b16 %v1318, %v1302
          %v1671 = vpack.c.b16 %v1319, %v1303
          %v1672 = vpack.c.b16 %v1320, %v1304
          %v1673 = vpack.c.b16 %v1321, %v1305
          %v1674 = vpack.c.b16 %v1322, %v1306
          %v1675 = vpack.c.b16 %v1323, %v1307
          %v1676 = vpack.c.b16 %v1324, %v1308
          %v1677 = vpack.c.b16 %v1325, %v1309
          %v1678 = vpack.c.b16 %v1342, %v1326
          %v1679 = vpack.c.b16 %v1343, %v1327
          %v1680 = vpack.c.b16 %v1344, %v1328
          %v1681 = vpack.c.b16 %v1345, %v1329
          %v1682 = vpack.c.b16 %v1346, %v1330
          %v1683 = vpack.c.b16 %v1347, %v1331
          %v1684 = vpack.c.b16 %v1348, %v1332
          %v1685 = vpack.c.b16 %v1349, %v1333
          %v1686 = vpack.c.b16 %v1350, %v1334
          %v1687 = vpack.c.b16 %v1351, %v1335
          %v1688 = vpack.c.b16 %v1352, %v1336
          %v1689 = vpack.c.b16 %v1353, %v1337
          %v1690 = vpack.c.b16 %v1354, %v1338
          %v1691 = vpack.c.b16 %v1355, %v1339
          %v1692 = vpack.c.b16 %v1356, %v1340
          %v1693 = vpack.c.b16 %v1357, %v1341
          %v1694 = vpack.c.b16 %v1374, %v1358
          %v1695 = vpack.c.b16 %v1375, %v1359
          %v1696 = vpack.c.b16 %v1376, %v1360
          %v1697 = vpack.c.b16 %v1377, %v1361
          %v1698 = vpack.c.b16 %v1378, %v1362
          %v1699 = vpack.c.b16 %v1379, %v1363
          %v1700 = vpack.c.b16 %v1380, %v1364
          %v1701 = vpack.c.b16 %v1381, %v1365
          %v1702 = vpack.c.b16 %v1382, %v1366
          %v1703 = vpack.c.b16 %v1383, %v1367
          %v1704 = vpack.c.b16 %v1384, %v1368
          %v1705 = vpack.c.b16 %v1385, %v1369
          %v1706 = vpack.c.b16 %v1386, %v1370
          %v1707 = vpack.c.b16 %v1387, %v1371
          %v1708 = vpack.c.b16 %v1388, %v1372
          %v1709 = vpack.c.b16 %v1389, %v1373
          %v1710 = vpack.c.b16 %v1406, %v1390
          %v1711 = vpack.c.b16 %v1407, %v1391
          %v1712 = vpack.c.b16 %v1408, %v1392
          %v1713 = vpack.c.b16 %v1409, %v1393
          %v1714 = vpack.c.b16 %v1410, %v1394
          %v1715 = vpack.c.b16 %v1411, %v1395
          %v1716 = vpack.c.b16 %v1412, %v1396
          %v1717 = vpack.c.b16 %v1413, %v1397
          %v1718 = vpack.c.b16 %v1414, %v1398
          %v1719 = vpack.c.b16 %v1415, %v1399
          %v1720 = vpack.c.b16 %v1416, %v1400
          %v1721 = vpack.c.b16 %v1417, %v1401
          %v1722 = vpack.c.b16 %v1418, %v1402
          %v1723 = vpack.c.b16 %v1419, %v1403
          %v1724 = vpack.c.b16 %v1420, %v1404
          %v1725 = vpack.c.b16 %v1421, %v1405
          %v1726 = vpack.c.b16 %v1438, %v1422
          %v1727 = vpack.c.b16 %v1439, %v1423
          %v1728 = vpack.c.b16 %v1440, %v1424
          %v1729 = vpack.c.b16 %v1441, %v1425
          %v1730 = vpack.c.b16 %v1442, %v1426
          %v1731 = vpack.c.b16 %v1443, %v1427
          %v1732 = vpack.c.b16 %v1444, %v1428
          %v1733 = vpack.c.b16 %v1445, %v1429
          %v1734 = vpack.c.b16 %v1446, %v1430
          %v1735 = vpack.c.b16 %v1447, %v1431
          %v1736 = vpack.c.b16 %v1448, %v1432
          %v1737 = vpack.c.b16 %v1449, %v1433
          %v1738 = vpack.c.b16 %v1450, %v1434
          %v1739 = vpack.c.b16 %v1451, %v1435
          %v1740 = vpack.c.b16 %v1452, %v1436
          %v1741 = vpack.c.b16 %v1453, %v1437
          %v1742 = vpack.c.b16 %v1470, %v1454
          %v1743 = vpack.c.b16 %v1471, %v1455
          %v1744 = vpack.c.b16 %v1472, %v1456
          %v1745 = vpack.c.b16 %v1473, %v1457
          %v1746 = vpack.c.b16 %v1474, %v1458
          %v1747 = vpack.c.b16 %v1475, %v1459
          %v1748 = vpack.c.b16 %v1476, %v1460
          %v1749 = vpack.c.b16 %v1477, %v1461
          %v1750 = vpack.c.b16 %v1478, %v1462
          %v1751 = vpack.c.b16 %v1479, %v1463
          %v1752 = vpack.c.b16 %v1480, %v1464
          %v1753 = vpack.c.b16 %v1481, %v1465
          %v1754 = vpack.c.b16 %v1482, %v1466
          %v1755 = vpack.c.b16 %v1483, %v1467
          %v1756 = vpack.c.b16 %v1484, %v1468
          %v1757 = vpack.c.b16 %v1485, %v1469
          %v1758 = vpack.c.b16 %v1502, %v1486
          %v1759 = vpack.c.b16 %v1503, %v1487
          %v1760 = vpack.c.b16 %v1504, %v1488
          %v1761 = vpack.c.b16 %v1505, %v1489
          %v1762 = vpack.c.b16 %v1506, %v1490
          %v1763 = vpack.c.b16 %v1507, %v1491
          %v1764 = vpack.c.b16 %v1508, %v1492
          %v1765 = vpack.c.b16 %v1509, %v1493
          %v1766 = vpack.c.b16 %v1510, %v1494
          %v1767 = vpack.c.b16 %v1511, %v1495
          %v1768 = vpack.c.b16 %v1512, %v1496
          %v1769 = vpack.c.b16 %v1513, %v1497
          %v1770 = vpack.c.b16 %v1514, %v1498
          %v1771 = vpack.c.b16 %v1515, %v1499
          %v1772 = vpack.c.b16 %v1516, %v1500
          %v1773 = vpack.c.b16 %v1517, %v1501
          %2030 = vmatprep.subr.bf16.mxu0 %v1519
          %2031 = vmatpush1.bf16.msra.mxu0 %v1518
          %2032 = vmatprep.subr.bf16.mxu0 %v1535
          %2033 = vmatpush1.bf16.msra.mxu0 %v1534
          %2034 = vmatprep.subr.bf16.mxu0 %v1551
          %2035 = vmatpush1.bf16.msra.mxu0 %v1550
          %2036 = vmatprep.subr.bf16.mxu0 %v1567
          %2037 = vmatpush1.bf16.msra.mxu0 %v1566
          %2038 = vmatprep.subr.bf16.mxu0 %v1583
          %2039 = vmatpush1.bf16.msra.mxu0 %v1582
          %2040 = vmatprep.subr.bf16.mxu0 %v1599
          %2041 = vmatpush1.bf16.msra.mxu0 %v1598
          %2042 = vmatprep.subr.bf16.mxu0 %v1615
          %2043 = vmatpush1.bf16.msra.mxu0 %v1614
          %2044 = vmatprep.subr.bf16.mxu0 %v1631
          %2045 = vmatpush1.bf16.msra.mxu0 %v1630
          %2046 = vmatprep.subr.bf16.mxu0 %v1647
          %2047 = vmatpush1.bf16.msra.mxu0 %v1646
          %2048 = vmatprep.subr.bf16.mxu0 %v1663
          %2049 = vmatpush1.bf16.msra.mxu0 %v1662
          %2050 = vmatprep.subr.bf16.mxu0 %v1679
          %2051 = vmatpush1.bf16.msra.mxu0 %v1678
          %2052 = vmatprep.subr.bf16.mxu0 %v1695
          %2053 = vmatpush1.bf16.msra.mxu0 %v1694
          %2054 = vmatprep.subr.bf16.mxu0 %v1711
          %2055 = vmatpush1.bf16.msra.mxu0 %v1710
          %2056 = vmatprep.subr.bf16.mxu0 %v1727
          %2057 = vmatpush1.bf16.msra.mxu0 %v1726
          %2058 = vmatprep.subr.bf16.mxu0 %v1743
          %2059 = vmatpush1.bf16.msra.mxu0 %v1742
          %2060 = vmatprep.subr.bf16.mxu0 %v1759
          %2061 = vmatpush1.bf16.msra.mxu0 %v1758
          %2062 = vmatprep.mubr.bf16.mxu0 %v747
          %2063 = vmatmul.mubr.bf16.gmra.mrb[0].mxu0 %v746
          %v2064 = vpop.f32.mrb[0].mxu0
          %v2065 = vadd.f32 %v666, %v2064
          %v2066 = vpop.f32.mrb[0].mxu0
          %v2067 = vadd.f32 %v670, %v2066
          %v2068 = vpop.f32.mrb[0].mxu0
          %v2069 = vpop.f32.mrb[0].mxu0
          %2070 = vdwg.mxu0
          %2071 = vmatprep.subr.bf16.mxu0 %v1521
          %2072 = vmatpush1.bf16.msra.mxu0 %v1520
          %2073 = vmatprep.subr.bf16.mxu0 %v1537
          %2074 = vmatpush1.bf16.msra.mxu0 %v1536
          %2075 = vmatprep.subr.bf16.mxu0 %v1553
          %2076 = vmatpush1.bf16.msra.mxu0 %v1552
          %2077 = vmatprep.subr.bf16.mxu0 %v1569
          %2078 = vmatpush1.bf16.msra.mxu0 %v1568
          %2079 = vmatprep.subr.bf16.mxu0 %v1585
          %2080 = vmatpush1.bf16.msra.mxu0 %v1584
          %2081 = vmatprep.subr.bf16.mxu0 %v1601
          %2082 = vmatpush1.bf16.msra.mxu0 %v1600
          %2083 = vmatprep.subr.bf16.mxu0 %v1617
          %2084 = vmatpush1.bf16.msra.mxu0 %v1616
          %2085 = vmatprep.subr.bf16.mxu0 %v1633
          %2086 = vmatpush1.bf16.msra.mxu0 %v1632
          %2087 = vmatprep.subr.bf16.mxu0 %v1649
          %2088 = vmatpush1.bf16.msra.mxu0 %v1648
          %2089 = vmatprep.subr.bf16.mxu0 %v1665
          %2090 = vmatpush1.bf16.msra.mxu0 %v1664
          %2091 = vmatprep.subr.bf16.mxu0 %v1681
          %2092 = vmatpush1.bf16.msra.mxu0 %v1680
          %2093 = vmatprep.subr.bf16.mxu0 %v1697
          %2094 = vmatpush1.bf16.msra.mxu0 %v1696
          %2095 = vmatprep.subr.bf16.mxu0 %v1713
          %2096 = vmatpush1.bf16.msra.mxu0 %v1712
          %2097 = vmatprep.subr.bf16.mxu0 %v1729
          %2098 = vmatpush1.bf16.msra.mxu0 %v1728
          %2099 = vmatprep.subr.bf16.mxu0 %v1745
          %2100 = vmatpush1.bf16.msra.mxu0 %v1744
          %2101 = vmatprep.subr.bf16.mxu0 %v1761
          %2102 = vmatpush1.bf16.msra.mxu0 %v1760
          %2103 = vmatprep.mubr.bf16.mxu0 %v747
          %2104 = vmatmul.mubr.bf16.gmra.mrb[0].mxu0 %v746
          %v2105 = vpop.f32.mrb[0].mxu0
          %v2106 = vadd.f32 %v674, %v2105
          %v2107 = vpop.f32.mrb[0].mxu0
          %v2108 = vadd.f32 %v678, %v2107
          %v2109 = vpop.f32.mrb[0].mxu0
          %v2110 = vpop.f32.mrb[0].mxu0
          %2111 = vdwg.mxu0
          %2112 = vmatprep.subr.bf16.mxu0 %v1523
          %2113 = vmatpush1.bf16.msra.mxu0 %v1522
          %2114 = vmatprep.subr.bf16.mxu0 %v1539
          %2115 = vmatpush1.bf16.msra.mxu0 %v1538
          %2116 = vmatprep.subr.bf16.mxu0 %v1555
          %2117 = vmatpush1.bf16.msra.mxu0 %v1554
          %2118 = vmatprep.subr.bf16.mxu0 %v1571
          %2119 = vmatpush1.bf16.msra.mxu0 %v1570
          %2120 = vmatprep.subr.bf16.mxu0 %v1587
          %2121 = vmatpush1.bf16.msra.mxu0 %v1586
          %2122 = vmatprep.subr.bf16.mxu0 %v1603
          %2123 = vmatpush1.bf16.msra.mxu0 %v1602
          %2124 = vmatprep.subr.bf16.mxu0 %v1619
          %2125 = vmatpush1.bf16.msra.mxu0 %v1618
          %2126 = vmatprep.subr.bf16.mxu0 %v1635
          %2127 = vmatpush1.bf16.msra.mxu0 %v1634
          %2128 = vmatprep.subr.bf16.mxu0 %v1651
          %2129 = vmatpush1.bf16.msra.mxu0 %v1650
          %2130 = vmatprep.subr.bf16.mxu0 %v1667
          %2131 = vmatpush1.bf16.msra.mxu0 %v1666
          %2132 = vmatprep.subr.bf16.mxu0 %v1683
          %2133 = vmatpush1.bf16.msra.mxu0 %v1682
          %2134 = vmatprep.subr.bf16.mxu0 %v1699
          %2135 = vmatpush1.bf16.msra.mxu0 %v1698
          %2136 = vmatprep.subr.bf16.mxu0 %v1715
          %2137 = vmatpush1.bf16.msra.mxu0 %v1714
          %2138 = vmatprep.subr.bf16.mxu0 %v1731
          %2139 = vmatpush1.bf16.msra.mxu0 %v1730
          %2140 = vmatprep.subr.bf16.mxu0 %v1747
          %2141 = vmatpush1.bf16.msra.mxu0 %v1746
          %2142 = vmatprep.subr.bf16.mxu0 %v1763
          %2143 = vmatpush1.bf16.msra.mxu0 %v1762
          %2144 = vmatprep.mubr.bf16.mxu0 %v747
          %2145 = vmatmul.mubr.bf16.gmra.mrb[0].mxu0 %v746
          %v2146 = vpop.f32.mrb[0].mxu0
          %v2147 = vadd.f32 %v682, %v2146
          %v2148 = vpop.f32.mrb[0].mxu0
          %v2149 = vadd.f32 %v686, %v2148
          %v2150 = vpop.f32.mrb[0].mxu0
          %v2151 = vpop.f32.mrb[0].mxu0
          %2152 = vdwg.mxu0
          %2153 = vmatprep.subr.bf16.mxu0 %v1525
          %2154 = vmatpush1.bf16.msra.mxu0 %v1524
          %2155 = vmatprep.subr.bf16.mxu0 %v1541
          %2156 = vmatpush1.bf16.msra.mxu0 %v1540
          %2157 = vmatprep.subr.bf16.mxu0 %v1557
          %2158 = vmatpush1.bf16.msra.mxu0 %v1556
          %2159 = vmatprep.subr.bf16.mxu0 %v1573
          %2160 = vmatpush1.bf16.msra.mxu0 %v1572
          %2161 = vmatprep.subr.bf16.mxu0 %v1589
          %2162 = vmatpush1.bf16.msra.mxu0 %v1588
          %2163 = vmatprep.subr.bf16.mxu0 %v1605
          %2164 = vmatpush1.bf16.msra.mxu0 %v1604
          %2165 = vmatprep.subr.bf16.mxu0 %v1621
          %2166 = vmatpush1.bf16.msra.mxu0 %v1620
          %2167 = vmatprep.subr.bf16.mxu0 %v1637
          %2168 = vmatpush1.bf16.msra.mxu0 %v1636
          %2169 = vmatprep.subr.bf16.mxu0 %v1653
          %2170 = vmatpush1.bf16.msra.mxu0 %v1652
          %2171 = vmatprep.subr.bf16.mxu0 %v1669
          %2172 = vmatpush1.bf16.msra.mxu0 %v1668
          %2173 = vmatprep.subr.bf16.mxu0 %v1685
          %2174 = vmatpush1.bf16.msra.mxu0 %v1684
          %2175 = vmatprep.subr.bf16.mxu0 %v1701
          %2176 = vmatpush1.bf16.msra.mxu0 %v1700
          %2177 = vmatprep.subr.bf16.mxu0 %v1717
          %2178 = vmatpush1.bf16.msra.mxu0 %v1716
          %2179 = vmatprep.subr.bf16.mxu0 %v1733
          %2180 = vmatpush1.bf16.msra.mxu0 %v1732
          %2181 = vmatprep.subr.bf16.mxu0 %v1749
          %2182 = vmatpush1.bf16.msra.mxu0 %v1748
          %2183 = vmatprep.subr.bf16.mxu0 %v1765
          %2184 = vmatpush1.bf16.msra.mxu0 %v1764
          %2185 = vmatprep.mubr.bf16.mxu0 %v747
          %2186 = vmatmul.mubr.bf16.gmra.mrb[0].mxu0 %v746
          %v2187 = vpop.f32.mrb[0].mxu0
          %v2188 = vadd.f32 %v690, %v2187
          %v2189 = vpop.f32.mrb[0].mxu0
          %v2190 = vadd.f32 %v694, %v2189
          %v2191 = vpop.f32.mrb[0].mxu0
          %v2192 = vpop.f32.mrb[0].mxu0
          %2193 = vdwg.mxu0
          %2194 = vmatprep.subr.bf16.mxu0 %v1527
          %2195 = vmatpush1.bf16.msra.mxu0 %v1526
          %2196 = vmatprep.subr.bf16.mxu0 %v1543
          %2197 = vmatpush1.bf16.msra.mxu0 %v1542
          %2198 = vmatprep.subr.bf16.mxu0 %v1559
          %2199 = vmatpush1.bf16.msra.mxu0 %v1558
          %2200 = vmatprep.subr.bf16.mxu0 %v1575
          %2201 = vmatpush1.bf16.msra.mxu0 %v1574
          %2202 = vmatprep.subr.bf16.mxu0 %v1591
          %2203 = vmatpush1.bf16.msra.mxu0 %v1590
          %2204 = vmatprep.subr.bf16.mxu0 %v1607
          %2205 = vmatpush1.bf16.msra.mxu0 %v1606
          %2206 = vmatprep.subr.bf16.mxu0 %v1623
          %2207 = vmatpush1.bf16.msra.mxu0 %v1622
          %2208 = vmatprep.subr.bf16.mxu0 %v1639
          %2209 = vmatpush1.bf16.msra.mxu0 %v1638
          %2210 = vmatprep.subr.bf16.mxu0 %v1655
          %2211 = vmatpush1.bf16.msra.mxu0 %v1654
          %2212 = vmatprep.subr.bf16.mxu0 %v1671
          %2213 = vmatpush1.bf16.msra.mxu0 %v1670
          %2214 = vmatprep.subr.bf16.mxu0 %v1687
          %2215 = vmatpush1.bf16.msra.mxu0 %v1686
          %2216 = vmatprep.subr.bf16.mxu0 %v1703
          %2217 = vmatpush1.bf16.msra.mxu0 %v1702
          %2218 = vmatprep.subr.bf16.mxu0 %v1719
          %2219 = vmatpush1.bf16.msra.mxu0 %v1718
          %2220 = vmatprep.subr.bf16.mxu0 %v1735
          %2221 = vmatpush1.bf16.msra.mxu0 %v1734
          %2222 = vmatprep.subr.bf16.mxu0 %v1751
          %2223 = vmatpush1.bf16.msra.mxu0 %v1750
          %2224 = vmatprep.subr.bf16.mxu0 %v1767
          %2225 = vmatpush1.bf16.msra.mxu0 %v1766
          %2226 = vmatprep.mubr.bf16.mxu0 %v747
          %2227 = vmatmul.mubr.bf16.gmra.mrb[0].mxu0 %v746
          %v2228 = vpop.f32.mrb[0].mxu0
          %v2229 = vadd.f32 %v698, %v2228
          %v2230 = vpop.f32.mrb[0].mxu0
          %v2231 = vadd.f32 %v702, %v2230
          %v2232 = vpop.f32.mrb[0].mxu0
          %v2233 = vpop.f32.mrb[0].mxu0
          %2234 = vdwg.mxu0
          %2235 = vmatprep.subr.bf16.mxu0 %v1529
          %2236 = vmatpush1.bf16.msra.mxu0 %v1528
          %2237 = vmatprep.subr.bf16.mxu0 %v1545
          %2238 = vmatpush1.bf16.msra.mxu0 %v1544
          %2239 = vmatprep.subr.bf16.mxu0 %v1561
          %2240 = vmatpush1.bf16.msra.mxu0 %v1560
          %2241 = vmatprep.subr.bf16.mxu0 %v1577
          %2242 = vmatpush1.bf16.msra.mxu0 %v1576
          %2243 = vmatprep.subr.bf16.mxu0 %v1593
          %2244 = vmatpush1.bf16.msra.mxu0 %v1592
          %2245 = vmatprep.subr.bf16.mxu0 %v1609
          %2246 = vmatpush1.bf16.msra.mxu0 %v1608
          %2247 = vmatprep.subr.bf16.mxu0 %v1625
          %2248 = vmatpush1.bf16.msra.mxu0 %v1624
          %2249 = vmatprep.subr.bf16.mxu0 %v1641
          %2250 = vmatpush1.bf16.msra.mxu0 %v1640
          %2251 = vmatprep.subr.bf16.mxu0 %v1657
          %2252 = vmatpush1.bf16.msra.mxu0 %v1656
          %2253 = vmatprep.subr.bf16.mxu0 %v1673
          %2254 = vmatpush1.bf16.msra.mxu0 %v1672
          %2255 = vmatprep.subr.bf16.mxu0 %v1689
          %2256 = vmatpush1.bf16.msra.mxu0 %v1688
          %2257 = vmatprep.subr.bf16.mxu0 %v1705
          %2258 = vmatpush1.bf16.msra.mxu0 %v1704
          %2259 = vmatprep.subr.bf16.mxu0 %v1721
          %2260 = vmatpush1.bf16.msra.mxu0 %v1720
          %2261 = vmatprep.subr.bf16.mxu0 %v1737
          %2262 = vmatpush1.bf16.msra.mxu0 %v1736
          %2263 = vmatprep.subr.bf16.mxu0 %v1753
          %2264 = vmatpush1.bf16.msra.mxu0 %v1752
          %2265 = vmatprep.subr.bf16.mxu0 %v1769
          %2266 = vmatpush1.bf16.msra.mxu0 %v1768
          %2267 = vmatprep.mubr.bf16.mxu0 %v747
          %2268 = vmatmul.mubr.bf16.gmra.mrb[0].mxu0 %v746
          %v2269 = vpop.f32.mrb[0].mxu0
          %v2270 = vadd.f32 %v706, %v2269
          %v2271 = vpop.f32.mrb[0].mxu0
          %v2272 = vadd.f32 %v710, %v2271
          %v2273 = vpop.f32.mrb[0].mxu0
          %v2274 = vpop.f32.mrb[0].mxu0
          %2275 = vdwg.mxu0
          %2276 = vmatprep.subr.bf16.mxu0 %v1531
          %2277 = vmatpush1.bf16.msra.mxu0 %v1530
          %2278 = vmatprep.subr.bf16.mxu0 %v1547
          %2279 = vmatpush1.bf16.msra.mxu0 %v1546
          %2280 = vmatprep.subr.bf16.mxu0 %v1563
          %2281 = vmatpush1.bf16.msra.mxu0 %v1562
          %2282 = vmatprep.subr.bf16.mxu0 %v1579
          %2283 = vmatpush1.bf16.msra.mxu0 %v1578
          %2284 = vmatprep.subr.bf16.mxu0 %v1595
          %2285 = vmatpush1.bf16.msra.mxu0 %v1594
          %2286 = vmatprep.subr.bf16.mxu0 %v1611
          %2287 = vmatpush1.bf16.msra.mxu0 %v1610
          %2288 = vmatprep.subr.bf16.mxu0 %v1627
          %2289 = vmatpush1.bf16.msra.mxu0 %v1626
          %2290 = vmatprep.subr.bf16.mxu0 %v1643
          %2291 = vmatpush1.bf16.msra.mxu0 %v1642
          %2292 = vmatprep.subr.bf16.mxu0 %v1659
          %2293 = vmatpush1.bf16.msra.mxu0 %v1658
          %2294 = vmatprep.subr.bf16.mxu0 %v1675
          %2295 = vmatpush1.bf16.msra.mxu0 %v1674
          %2296 = vmatprep.subr.bf16.mxu0 %v1691
          %2297 = vmatpush1.bf16.msra.mxu0 %v1690
          %2298 = vmatprep.subr.bf16.mxu0 %v1707
          %2299 = vmatpush1.bf16.msra.mxu0 %v1706
          %2300 = vmatprep.subr.bf16.mxu0 %v1723
          %2301 = vmatpush1.bf16.msra.mxu0 %v1722
          %2302 = vmatprep.subr.bf16.mxu0 %v1739
          %2303 = vmatpush1.bf16.msra.mxu0 %v1738
          %2304 = vmatprep.subr.bf16.mxu0 %v1755
          %2305 = vmatpush1.bf16.msra.mxu0 %v1754
          %2306 = vmatprep.subr.bf16.mxu0 %v1771
          %2307 = vmatpush1.bf16.msra.mxu0 %v1770
          %2308 = vmatprep.mubr.bf16.mxu0 %v747
          %2309 = vmatmul.mubr.bf16.gmra.mrb[0].mxu0 %v746
          %v2310 = vpop.f32.mrb[0].mxu0
          %v2311 = vadd.f32 %v714, %v2310
          %v2312 = vpop.f32.mrb[0].mxu0
          %v2313 = vadd.f32 %v718, %v2312
          %v2314 = vpop.f32.mrb[0].mxu0
          %v2315 = vpop.f32.mrb[0].mxu0
          %2316 = vdwg.mxu0
          %2317 = vmatprep.subr.bf16.mxu0 %v1533
          %2318 = vmatpush1.bf16.msra.mxu0 %v1532
          %2319 = vmatprep.subr.bf16.mxu0 %v1549
          %2320 = vmatpush1.bf16.msra.mxu0 %v1548
          %2321 = vmatprep.subr.bf16.mxu0 %v1565
          %2322 = vmatpush1.bf16.msra.mxu0 %v1564
          %2323 = vmatprep.subr.bf16.mxu0 %v1581
          %2324 = vmatpush1.bf16.msra.mxu0 %v1580
          %2325 = vmatprep.subr.bf16.mxu0 %v1597
          %2326 = vmatpush1.bf16.msra.mxu0 %v1596
          %2327 = vmatprep.subr.bf16.mxu0 %v1613
          %2328 = vmatpush1.bf16.msra.mxu0 %v1612
          %2329 = vmatprep.subr.bf16.mxu0 %v1629
          %2330 = vmatpush1.bf16.msra.mxu0 %v1628
          %2331 = vmatprep.subr.bf16.mxu0 %v1645
          %2332 = vmatpush1.bf16.msra.mxu0 %v1644
          %2333 = vmatprep.subr.bf16.mxu0 %v1661
          %2334 = vmatpush1.bf16.msra.mxu0 %v1660
          %2335 = vmatprep.subr.bf16.mxu0 %v1677
          %2336 = vmatpush1.bf16.msra.mxu0 %v1676
          %2337 = vmatprep.subr.bf16.mxu0 %v1693
          %2338 = vmatpush1.bf16.msra.mxu0 %v1692
          %2339 = vmatprep.subr.bf16.mxu0 %v1709
          %2340 = vmatpush1.bf16.msra.mxu0 %v1708
          %2341 = vmatprep.subr.bf16.mxu0 %v1725
          %2342 = vmatpush1.bf16.msra.mxu0 %v1724
          %2343 = vmatprep.subr.bf16.mxu0 %v1741
          %2344 = vmatpush1.bf16.msra.mxu0 %v1740
          %2345 = vmatprep.subr.bf16.mxu0 %v1757
          %2346 = vmatpush1.bf16.msra.mxu0 %v1756
          %2347 = vmatprep.subr.bf16.mxu0 %v1773
          %2348 = vmatpush1.bf16.msra.mxu0 %v1772
          %2349 = vmatprep.mubr.bf16.mxu0 %v747
          %2350 = vmatmul.mubr.bf16.gmra.mrb[0].mxu0 %v746
          %v2351 = vpop.f32.mrb[0].mxu0
          %v2352 = vadd.f32 %v722, %v2351
          %v2353 = vpop.f32.mrb[0].mxu0
          %v2354 = vadd.f32 %v726, %v2353
          %v2355 = vpop.f32.mrb[0].mxu0
          %v2356 = vpop.f32.mrb[0].mxu0
          %2357 = vdwg.mxu0
          %v2358 = vmax.f32 %v2065, 0.0
          %v2359 = vmax.f32 %v2067, 0.0
          %v2360 = vmax.f32 %v2106, 0.0
          %v2361 = vmax.f32 %v2108, 0.0
          %v2362 = vmax.f32 %v2147, 0.0
          %v2363 = vmax.f32 %v2149, 0.0
          %v2364 = vmax.f32 %v2188, 0.0
          %v2365 = vmax.f32 %v2190, 0.0
          %v2366 = vmax.f32 %v2229, 0.0
          %v2367 = vmax.f32 %v2231, 0.0
          %v2368 = vmax.f32 %v2270, 0.0
          %v2369 = vmax.f32 %v2272, 0.0
          %v2370 = vmax.f32 %v2311, 0.0
          %v2371 = vmax.f32 %v2313, 0.0
          %v2372 = vmax.f32 %v2352, 0.0
          %v2373 = vmax.f32 %v2354, 0.0
          %v2374 = vpack.c.bf16 %v2358, %v2358
          %v2375 = vpack.c.bf16 %v2359, %v2359
          %v2376 = vpack.c.bf16 %v2360, %v2360
          %v2377 = vpack.c.bf16 %v2361, %v2361
          %v2378 = vpack.c.bf16 %v2362, %v2362
          %v2379 = vpack.c.bf16 %v2363, %v2363
          %v2380 = vpack.c.bf16 %v2364, %v2364
          %v2381 = vpack.c.bf16 %v2365, %v2365
          %v2382 = vpack.c.bf16 %v2366, %v2366
          %v2383 = vpack.c.bf16 %v2367, %v2367
          %v2384 = vpack.c.bf16 %v2368, %v2368
          %v2385 = vpack.c.bf16 %v2369, %v2369
          %v2386 = vpack.c.bf16 %v2370, %v2370
          %v2387 = vpack.c.bf16 %v2371, %v2371
          %v2388 = vpack.c.bf16 %v2372, %v2372
          %v2389 = vpack.c.bf16 %v2373, %v2373
          %v2406 = vunpack.c.l.b16 %v2374
          %v2407 = vunpack.c.l.b16 %v2375
          %v2408 = vunpack.c.l.b16 %v2376
          %v2409 = vunpack.c.l.b16 %v2377
          %v2410 = vunpack.c.l.b16 %v2378
          %v2411 = vunpack.c.l.b16 %v2379
          %v2412 = vunpack.c.l.b16 %v2380
          %v2413 = vunpack.c.l.b16 %v2381
          %v2414 = vunpack.c.l.b16 %v2382
          %v2415 = vunpack.c.l.b16 %v2383
          %v2416 = vunpack.c.l.b16 %v2384
          %v2417 = vunpack.c.l.b16 %v2385
          %v2418 = vunpack.c.l.b16 %v2386
          %v2419 = vunpack.c.l.b16 %v2387
          %v2420 = vunpack.c.l.b16 %v2388
          %v2421 = vunpack.c.l.b16 %v2389
          %v2422 = vpack.c.b16 %v2407, %v2406
          %v2423 = vpack.c.b16 %v2409, %v2408
          %v2424 = vpack.c.b16 %v2411, %v2410
          %v2425 = vpack.c.b16 %v2413, %v2412
          %v2426 = vpack.c.b16 %v2415, %v2414
          %v2427 = vpack.c.b16 %v2417, %v2416
          %v2428 = vpack.c.b16 %v2419, %v2418
          %v2429 = vpack.c.b16 %v2421, %v2420
          %2438 = vst [vmem:[#allocation2] sm:$0xff] %v2422
          %2439 = vst [vmem:[#allocation2 + $0x8] sm:$0xff] %v2423
          %2440 = vst [vmem:[#allocation2 + $0x10] sm:$0xff] %v2424
          %2441 = vst [vmem:[#allocation2 + $0x18] sm:$0xff] %v2425
          %2442 = vst [vmem:[#allocation2 + $0x20] sm:$0xff] %v2426
          %2443 = vst [vmem:[#allocation2 + $0x28] sm:$0xff] %v2427
          %2444 = vst [vmem:[#allocation2 + $0x30] sm:$0xff] %v2428
          %2445 = vst [vmem:[#allocation2 + $0x38] sm:$0xff] %v2429
          %vm2446 = vcmask 130048
          %2447 = vst.msk [vmem:[#allocation3] sm:$0xff] %vm2446, 0.0
        $region76: #{tpu_custom_call.1} parent=47 // pred_fallthru
          _
        %v2448 = vld [vmem:[#allocation2] sm:$0xff]
        %v2449 = vld [vmem:[#allocation2 + $0x8] sm:$0xff]
        %v2450 = vld [vmem:[#allocation2 + $0x10] sm:$0xff]
        %v2451 = vld [vmem:[#allocation2 + $0x18] sm:$0xff]
        %v2452 = vld [vmem:[#allocation2 + $0x20] sm:$0xff]
        %v2453 = vld [vmem:[#allocation2 + $0x28] sm:$0xff]
        %v2454 = vld [vmem:[#allocation2 + $0x30] sm:$0xff]
        %v2455 = vld [vmem:[#allocation2 + $0x38] sm:$0xff]
        %v2456 = vld [vmem:[%s340] sm:$0xff]
        %v2457 = vld [vmem:[%s340 + $0x8] sm:$0xff]
        %v2458 = vld [vmem:[%s340 + $0x10] sm:$0xff]
        %v2459 = vld [vmem:[%s340 + $0x18] sm:$0xff]
        %v2460 = vld [vmem:[%s340 + $0x20] sm:$0xff]
        %v2461 = vld [vmem:[%s340 + $0x28] sm:$0xff]
        %v2462 = vld [vmem:[%s340 + $0x30] sm:$0xff]
        %v2463 = vld [vmem:[%s340 + $0x38] sm:$0xff]
        %v2464 = vld [vmem:[%s340 + $0x40] sm:$0xff]
        %v2465 = vld [vmem:[%s340 + $0x48] sm:$0xff]
        %v2466 = vld [vmem:[%s340 + $0x50] sm:$0xff]
        %v2467 = vld [vmem:[%s340 + $0x58] sm:$0xff]
        %v2468 = vld [vmem:[%s340 + $0x60] sm:$0xff]
        %v2469 = vld [vmem:[%s340 + $0x68] sm:$0xff]
        %v2470 = vld [vmem:[%s340 + $0x70] sm:$0xff]
        %v2471 = vld [vmem:[%s340 + $0x78] sm:$0xff]
        %v2472 = vld [vmem:[%s340 + $0x80] sm:$0xff]
        %v2473 = vld [vmem:[%s340 + $0x88] sm:$0xff]
        %v2474 = vld [vmem:[%s340 + $0x90] sm:$0xff]
        %v2475 = vld [vmem:[%s340 + $0x98] sm:$0xff]
        %v2476 = vld [vmem:[%s340 + $0xa0] sm:$0xff]
        %v2477 = vld [vmem:[%s340 + $0xa8] sm:$0xff]
        %v2478 = vld [vmem:[%s340 + $0xb0] sm:$0xff]
        %v2479 = vld [vmem:[%s340 + $0xb8] sm:$0xff]
        %v2480 = vld [vmem:[%s340 + $0xc0] sm:$0xff]
        %v2481 = vld [vmem:[%s340 + $0xc8] sm:$0xff]
        %v2482 = vld [vmem:[%s340 + $0xd0] sm:$0xff]
        %v2483 = vld [vmem:[%s340 + $0xd8] sm:$0xff]
        %v2484 = vld [vmem:[%s340 + $0xe0] sm:$0xff]
        %v2485 = vld [vmem:[%s340 + $0xe8] sm:$0xff]
        %v2486 = vld [vmem:[%s340 + $0xf0] sm:$0xff]
        %v2487 = vld [vmem:[%s340 + $0xf8] sm:$0xff]
        %v2488 = vld [vmem:[%s340 + $0x100] sm:$0xff]
        %v2489 = vld [vmem:[%s340 + $0x108] sm:$0xff]
        %v2490 = vld [vmem:[%s340 + $0x110] sm:$0xff]
        %v2491 = vld [vmem:[%s340 + $0x118] sm:$0xff]
        %v2492 = vld [vmem:[%s340 + $0x120] sm:$0xff]
        %v2493 = vld [vmem:[%s340 + $0x128] sm:$0xff]
        %v2494 = vld [vmem:[%s340 + $0x130] sm:$0xff]
        %v2495 = vld [vmem:[%s340 + $0x138] sm:$0xff]
        %v2496 = vld [vmem:[%s340 + $0x140] sm:$0xff]
        %v2497 = vld [vmem:[%s340 + $0x148] sm:$0xff]
        %v2498 = vld [vmem:[%s340 + $0x150] sm:$0xff]
        %v2499 = vld [vmem:[%s340 + $0x158] sm:$0xff]
        %v2500 = vld [vmem:[%s340 + $0x160] sm:$0xff]
        %v2501 = vld [vmem:[%s340 + $0x168] sm:$0xff]
        %v2502 = vld [vmem:[%s340 + $0x170] sm:$0xff]
        %v2503 = vld [vmem:[%s340 + $0x178] sm:$0xff]
        %v2504 = vld [vmem:[%s340 + $0x180] sm:$0xff]
        %v2505 = vld [vmem:[%s340 + $0x188] sm:$0xff]
        %v2506 = vld [vmem:[%s340 + $0x190] sm:$0xff]
        %v2507 = vld [vmem:[%s340 + $0x198] sm:$0xff]
        %v2508 = vld [vmem:[%s340 + $0x1a0] sm:$0xff]
        %v2509 = vld [vmem:[%s340 + $0x1a8] sm:$0xff]
        %v2510 = vld [vmem:[%s340 + $0x1b0] sm:$0xff]
        %v2511 = vld [vmem:[%s340 + $0x1b8] sm:$0xff]
        %v2512 = vld [vmem:[%s340 + $0x1c0] sm:$0xff]
        %v2513 = vld [vmem:[%s340 + $0x1c8] sm:$0xff]
        %v2514 = vld [vmem:[%s340 + $0x1d0] sm:$0xff]
        %v2515 = vld [vmem:[%s340 + $0x1d8] sm:$0xff]
        %v2516 = vld [vmem:[%s340 + $0x1e0] sm:$0xff]
        %v2517 = vld [vmem:[%s340 + $0x1e8] sm:$0xff]
        %v2518 = vld [vmem:[%s340 + $0x1f0] sm:$0xff]
        %v2519 = vld [vmem:[%s340 + $0x1f8] sm:$0xff]
        %v2520 = vld [vmem:[%s340 + $0x200] sm:$0xff]
        %v2521 = vld [vmem:[%s340 + $0x208] sm:$0xff]
        %v2522 = vld [vmem:[%s340 + $0x210] sm:$0xff]
        %v2523 = vld [vmem:[%s340 + $0x218] sm:$0xff]
        %v2524 = vld [vmem:[%s340 + $0x220] sm:$0xff]
        %v2525 = vld [vmem:[%s340 + $0x228] sm:$0xff]
        %v2526 = vld [vmem:[%s340 + $0x230] sm:$0xff]
        %v2527 = vld [vmem:[%s340 + $0x238] sm:$0xff]
        %v2528 = vld [vmem:[%s340 + $0x240] sm:$0xff]
        %v2529 = vld [vmem:[%s340 + $0x248] sm:$0xff]
        %v2530 = vld [vmem:[%s340 + $0x250] sm:$0xff]
        %v2531 = vld [vmem:[%s340 + $0x258] sm:$0xff]
        %v2532 = vld [vmem:[%s340 + $0x260] sm:$0xff]
        %v2533 = vld [vmem:[%s340 + $0x268] sm:$0xff]
        %v2534 = vld [vmem:[%s340 + $0x270] sm:$0xff]
        %v2535 = vld [vmem:[%s340 + $0x278] sm:$0xff]
        %v2536 = vld [vmem:[%s340 + $0x280] sm:$0xff]
        %v2537 = vld [vmem:[%s340 + $0x288] sm:$0xff]
        %v2538 = vld [vmem:[%s340 + $0x290] sm:$0xff]
        %v2539 = vld [vmem:[%s340 + $0x298] sm:$0xff]
        %v2540 = vld [vmem:[%s340 + $0x2a0] sm:$0xff]
        %v2541 = vld [vmem:[%s340 + $0x2a8] sm:$0xff]
        %v2542 = vld [vmem:[%s340 + $0x2b0] sm:$0xff]
        %v2543 = vld [vmem:[%s340 + $0x2b8] sm:$0xff]
        %v2544 = vld [vmem:[%s340 + $0x2c0] sm:$0xff]
        %v2545 = vld [vmem:[%s340 + $0x2c8] sm:$0xff]
        %v2546 = vld [vmem:[%s340 + $0x2d0] sm:$0xff]
        %v2547 = vld [vmem:[%s340 + $0x2d8] sm:$0xff]
        %v2548 = vld [vmem:[%s340 + $0x2e0] sm:$0xff]
        %v2549 = vld [vmem:[%s340 + $0x2e8] sm:$0xff]
        %v2550 = vld [vmem:[%s340 + $0x2f0] sm:$0xff]
        %v2551 = vld [vmem:[%s340 + $0x2f8] sm:$0xff]
        %v2552 = vld [vmem:[%s340 + $0x300] sm:$0xff]
        %v2553 = vld [vmem:[%s340 + $0x308] sm:$0xff]
        %v2554 = vld [vmem:[%s340 + $0x310] sm:$0xff]
        %v2555 = vld [vmem:[%s340 + $0x318] sm:$0xff]
        %v2556 = vld [vmem:[%s340 + $0x320] sm:$0xff]
        %v2557 = vld [vmem:[%s340 + $0x328] sm:$0xff]
        %v2558 = vld [vmem:[%s340 + $0x330] sm:$0xff]
        %v2559 = vld [vmem:[%s340 + $0x338] sm:$0xff]
        %v2560 = vld [vmem:[%s340 + $0x340] sm:$0xff]
        %v2561 = vld [vmem:[%s340 + $0x348] sm:$0xff]
        %v2562 = vld [vmem:[%s340 + $0x350] sm:$0xff]
        %v2563 = vld [vmem:[%s340 + $0x358] sm:$0xff]
        %v2564 = vld [vmem:[%s340 + $0x360] sm:$0xff]
        %v2565 = vld [vmem:[%s340 + $0x368] sm:$0xff]
        %v2566 = vld [vmem:[%s340 + $0x370] sm:$0xff]
        %v2567 = vld [vmem:[%s340 + $0x378] sm:$0xff]
        %v2568 = vld [vmem:[%s340 + $0x380] sm:$0xff]
        %v2569 = vld [vmem:[%s340 + $0x388] sm:$0xff]
        %v2570 = vld [vmem:[%s340 + $0x390] sm:$0xff]
        %v2571 = vld [vmem:[%s340 + $0x398] sm:$0xff]
        %v2572 = vld [vmem:[%s340 + $0x3a0] sm:$0xff]
        %v2573 = vld [vmem:[%s340 + $0x3a8] sm:$0xff]
        %v2574 = vld [vmem:[%s340 + $0x3b0] sm:$0xff]
        %v2575 = vld [vmem:[%s340 + $0x3b8] sm:$0xff]
        %v2576 = vld [vmem:[%s340 + $0x3c0] sm:$0xff]
        %v2577 = vld [vmem:[%s340 + $0x3c8] sm:$0xff]
        %v2578 = vld [vmem:[%s340 + $0x3d0] sm:$0xff]
        %v2579 = vld [vmem:[%s340 + $0x3d8] sm:$0xff]
        %v2580 = vld [vmem:[%s340 + $0x3e0] sm:$0xff]
        %v2581 = vld [vmem:[%s340 + $0x3e8] sm:$0xff]
        %v2582 = vld [vmem:[%s340 + $0x3f0] sm:$0xff]
        %v2583 = vld [vmem:[%s340 + $0x3f8] sm:$0xff]
        %v2584 = vld [vmem:[%s340 + $0x400] sm:$0xff]
        %v2585 = vld [vmem:[%s340 + $0x408] sm:$0xff]
        %v2586 = vld [vmem:[%s340 + $0x410] sm:$0xff]
        %v2587 = vld [vmem:[%s340 + $0x418] sm:$0xff]
        %v2588 = vld [vmem:[%s340 + $0x420] sm:$0xff]
        %v2589 = vld [vmem:[%s340 + $0x428] sm:$0xff]
        %v2590 = vld [vmem:[%s340 + $0x430] sm:$0xff]
        %v2591 = vld [vmem:[%s340 + $0x438] sm:$0xff]
        %v2592 = vld [vmem:[%s340 + $0x440] sm:$0xff]
        %v2593 = vld [vmem:[%s340 + $0x448] sm:$0xff]
        %v2594 = vld [vmem:[%s340 + $0x450] sm:$0xff]
        %v2595 = vld [vmem:[%s340 + $0x458] sm:$0xff]
        %v2596 = vld [vmem:[%s340 + $0x460] sm:$0xff]
        %v2597 = vld [vmem:[%s340 + $0x468] sm:$0xff]
        %v2598 = vld [vmem:[%s340 + $0x470] sm:$0xff]
        %v2599 = vld [vmem:[%s340 + $0x478] sm:$0xff]
        %v2600 = vld [vmem:[%s340 + $0x480] sm:$0xff]
        %v2601 = vld [vmem:[%s340 + $0x488] sm:$0xff]
        %v2602 = vld [vmem:[%s340 + $0x490] sm:$0xff]
        %v2603 = vld [vmem:[%s340 + $0x498] sm:$0xff]
        %v2604 = vld [vmem:[%s340 + $0x4a0] sm:$0xff]
        %v2605 = vld [vmem:[%s340 + $0x4a8] sm:$0xff]
        %v2606 = vld [vmem:[%s340 + $0x4b0] sm:$0xff]
        %v2607 = vld [vmem:[%s340 + $0x4b8] sm:$0xff]
        %v2608 = vld [vmem:[%s340 + $0x4c0] sm:$0xff]
        %v2609 = vld [vmem:[%s340 + $0x4c8] sm:$0xff]
        %v2610 = vld [vmem:[%s340 + $0x4d0] sm:$0xff]
        %v2611 = vld [vmem:[%s340 + $0x4d8] sm:$0xff]
        %v2612 = vld [vmem:[%s340 + $0x4e0] sm:$0xff]
        %v2613 = vld [vmem:[%s340 + $0x4e8] sm:$0xff]
        %v2614 = vld [vmem:[%s340 + $0x4f0] sm:$0xff]
        %v2615 = vld [vmem:[%s340 + $0x4f8] sm:$0xff]
        %v2616 = vld [vmem:[%s340 + $0x500] sm:$0xff]
        %v2617 = vld [vmem:[%s340 + $0x508] sm:$0xff]
        %v2618 = vld [vmem:[%s340 + $0x510] sm:$0xff]
        %v2619 = vld [vmem:[%s340 + $0x518] sm:$0xff]
        %v2620 = vld [vmem:[%s340 + $0x520] sm:$0xff]
        %v2621 = vld [vmem:[%s340 + $0x528] sm:$0xff]
        %v2622 = vld [vmem:[%s340 + $0x530] sm:$0xff]
        %v2623 = vld [vmem:[%s340 + $0x538] sm:$0xff]
        %v2624 = vld [vmem:[%s340 + $0x540] sm:$0xff]
        %v2625 = vld [vmem:[%s340 + $0x548] sm:$0xff]
        %v2626 = vld [vmem:[%s340 + $0x550] sm:$0xff]
        %v2627 = vld [vmem:[%s340 + $0x558] sm:$0xff]
        %v2628 = vld [vmem:[%s340 + $0x560] sm:$0xff]
        %v2629 = vld [vmem:[%s340 + $0x568] sm:$0xff]
        %v2630 = vld [vmem:[%s340 + $0x570] sm:$0xff]
        %v2631 = vld [vmem:[%s340 + $0x578] sm:$0xff]
        %v2632 = vld [vmem:[%s340 + $0x580] sm:$0xff]
        %v2633 = vld [vmem:[%s340 + $0x588] sm:$0xff]
        %v2634 = vld [vmem:[%s340 + $0x590] sm:$0xff]
        %v2635 = vld [vmem:[%s340 + $0x598] sm:$0xff]
        %v2636 = vld [vmem:[%s340 + $0x5a0] sm:$0xff]
        %v2637 = vld [vmem:[%s340 + $0x5a8] sm:$0xff]
        %v2638 = vld [vmem:[%s340 + $0x5b0] sm:$0xff]
        %v2639 = vld [vmem:[%s340 + $0x5b8] sm:$0xff]
        %v2640 = vld [vmem:[%s340 + $0x5c0] sm:$0xff]
        %v2641 = vld [vmem:[%s340 + $0x5c8] sm:$0xff]
        %v2642 = vld [vmem:[%s340 + $0x5d0] sm:$0xff]
        %v2643 = vld [vmem:[%s340 + $0x5d8] sm:$0xff]
        %v2644 = vld [vmem:[%s340 + $0x5e0] sm:$0xff]
        %v2645 = vld [vmem:[%s340 + $0x5e8] sm:$0xff]
        %v2646 = vld [vmem:[%s340 + $0x5f0] sm:$0xff]
        %v2647 = vld [vmem:[%s340 + $0x5f8] sm:$0xff]
        %v2648 = vld [vmem:[%s340 + $0x600] sm:$0xff]
        %v2649 = vld [vmem:[%s340 + $0x608] sm:$0xff]
        %v2650 = vld [vmem:[%s340 + $0x610] sm:$0xff]
        %v2651 = vld [vmem:[%s340 + $0x618] sm:$0xff]
        %v2652 = vld [vmem:[%s340 + $0x620] sm:$0xff]
        %v2653 = vld [vmem:[%s340 + $0x628] sm:$0xff]
        %v2654 = vld [vmem:[%s340 + $0x630] sm:$0xff]
        %v2655 = vld [vmem:[%s340 + $0x638] sm:$0xff]
        %v2656 = vld [vmem:[%s340 + $0x640] sm:$0xff]
        %v2657 = vld [vmem:[%s340 + $0x648] sm:$0xff]
        %v2658 = vld [vmem:[%s340 + $0x650] sm:$0xff]
        %v2659 = vld [vmem:[%s340 + $0x658] sm:$0xff]
        %v2660 = vld [vmem:[%s340 + $0x660] sm:$0xff]
        %v2661 = vld [vmem:[%s340 + $0x668] sm:$0xff]
        %v2662 = vld [vmem:[%s340 + $0x670] sm:$0xff]
        %v2663 = vld [vmem:[%s340 + $0x678] sm:$0xff]
        %v2664 = vld [vmem:[%s340 + $0x680] sm:$0xff]
        %v2665 = vld [vmem:[%s340 + $0x688] sm:$0xff]
        %v2666 = vld [vmem:[%s340 + $0x690] sm:$0xff]
        %v2667 = vld [vmem:[%s340 + $0x698] sm:$0xff]
        %v2668 = vld [vmem:[%s340 + $0x6a0] sm:$0xff]
        %v2669 = vld [vmem:[%s340 + $0x6a8] sm:$0xff]
        %v2670 = vld [vmem:[%s340 + $0x6b0] sm:$0xff]
        %v2671 = vld [vmem:[%s340 + $0x6b8] sm:$0xff]
        %v2672 = vld [vmem:[%s340 + $0x6c0] sm:$0xff]
        %v2673 = vld [vmem:[%s340 + $0x6c8] sm:$0xff]
        %v2674 = vld [vmem:[%s340 + $0x6d0] sm:$0xff]
        %v2675 = vld [vmem:[%s340 + $0x6d8] sm:$0xff]
        %v2676 = vld [vmem:[%s340 + $0x6e0] sm:$0xff]
        %v2677 = vld [vmem:[%s340 + $0x6e8] sm:$0xff]
        %v2678 = vld [vmem:[%s340 + $0x6f0] sm:$0xff]
        %v2679 = vld [vmem:[%s340 + $0x6f8] sm:$0xff]
        %v2680 = vld [vmem:[%s340 + $0x700] sm:$0xff]
        %v2681 = vld [vmem:[%s340 + $0x708] sm:$0xff]
        %v2682 = vld [vmem:[%s340 + $0x710] sm:$0xff]
        %v2683 = vld [vmem:[%s340 + $0x718] sm:$0xff]
        %v2684 = vld [vmem:[%s340 + $0x720] sm:$0xff]
        %v2685 = vld [vmem:[%s340 + $0x728] sm:$0xff]
        %v2686 = vld [vmem:[%s340 + $0x730] sm:$0xff]
        %v2687 = vld [vmem:[%s340 + $0x738] sm:$0xff]
        %v2688 = vld [vmem:[%s340 + $0x740] sm:$0xff]
        %v2689 = vld [vmem:[%s340 + $0x748] sm:$0xff]
        %v2690 = vld [vmem:[%s340 + $0x750] sm:$0xff]
        %v2691 = vld [vmem:[%s340 + $0x758] sm:$0xff]
        %v2692 = vld [vmem:[%s340 + $0x760] sm:$0xff]
        %v2693 = vld [vmem:[%s340 + $0x768] sm:$0xff]
        %v2694 = vld [vmem:[%s340 + $0x770] sm:$0xff]
        %v2695 = vld [vmem:[%s340 + $0x778] sm:$0xff]
        %v2696 = vld [vmem:[%s340 + $0x780] sm:$0xff]
        %v2697 = vld [vmem:[%s340 + $0x788] sm:$0xff]
        %v2698 = vld [vmem:[%s340 + $0x790] sm:$0xff]
        %v2699 = vld [vmem:[%s340 + $0x798] sm:$0xff]
        %v2700 = vld [vmem:[%s340 + $0x7a0] sm:$0xff]
        %v2701 = vld [vmem:[%s340 + $0x7a8] sm:$0xff]
        %v2702 = vld [vmem:[%s340 + $0x7b0] sm:$0xff]
        %v2703 = vld [vmem:[%s340 + $0x7b8] sm:$0xff]
        %v2704 = vld [vmem:[%s340 + $0x7c0] sm:$0xff]
        %v2705 = vld [vmem:[%s340 + $0x7c8] sm:$0xff]
        %v2706 = vld [vmem:[%s340 + $0x7d0] sm:$0xff]
        %v2707 = vld [vmem:[%s340 + $0x7d8] sm:$0xff]
        %v2708 = vld [vmem:[%s340 + $0x7e0] sm:$0xff]
        %v2709 = vld [vmem:[%s340 + $0x7e8] sm:$0xff]
        %v2710 = vld [vmem:[%s340 + $0x7f0] sm:$0xff]
        %v2711 = vld [vmem:[%s340 + $0x7f8] sm:$0xff]
        %v2712 = vld [vmem:[%s340 + $0x800] sm:$0xff]
        %v2713 = vld [vmem:[%s340 + $0x808] sm:$0xff]
        %v2714 = vld [vmem:[%s340 + $0x810] sm:$0xff]
        %v2715 = vld [vmem:[%s340 + $0x818] sm:$0xff]
        %v2716 = vld [vmem:[%s340 + $0x820] sm:$0xff]
        %v2717 = vld [vmem:[%s340 + $0x828] sm:$0xff]
        %v2718 = vld [vmem:[%s340 + $0x830] sm:$0xff]
        %v2719 = vld [vmem:[%s340 + $0x838] sm:$0xff]
        %v2720 = vld [vmem:[%s340 + $0x840] sm:$0xff]
        %v2721 = vld [vmem:[%s340 + $0x848] sm:$0xff]
        %v2722 = vld [vmem:[%s340 + $0x850] sm:$0xff]
        %v2723 = vld [vmem:[%s340 + $0x858] sm:$0xff]
        %v2724 = vld [vmem:[%s340 + $0x860] sm:$0xff]
        %v2725 = vld [vmem:[%s340 + $0x868] sm:$0xff]
        %v2726 = vld [vmem:[%s340 + $0x870] sm:$0xff]
        %v2727 = vld [vmem:[%s340 + $0x878] sm:$0xff]
        %v2728 = vld [vmem:[%s340 + $0x880] sm:$0xff]
        %v2729 = vld [vmem:[%s340 + $0x888] sm:$0xff]
        %v2730 = vld [vmem:[%s340 + $0x890] sm:$0xff]
        %v2731 = vld [vmem:[%s340 + $0x898] sm:$0xff]
        %v2732 = vld [vmem:[%s340 + $0x8a0] sm:$0xff]
        %v2733 = vld [vmem:[%s340 + $0x8a8] sm:$0xff]
        %v2734 = vld [vmem:[%s340 + $0x8b0] sm:$0xff]
        %v2735 = vld [vmem:[%s340 + $0x8b8] sm:$0xff]
        %v2736 = vld [vmem:[%s340 + $0x8c0] sm:$0xff]
        %v2737 = vld [vmem:[%s340 + $0x8c8] sm:$0xff]
        %v2738 = vld [vmem:[%s340 + $0x8d0] sm:$0xff]
        %v2739 = vld [vmem:[%s340 + $0x8d8] sm:$0xff]
        %v2740 = vld [vmem:[%s340 + $0x8e0] sm:$0xff]
        %v2741 = vld [vmem:[%s340 + $0x8e8] sm:$0xff]
        %v2742 = vld [vmem:[%s340 + $0x8f0] sm:$0xff]
        %v2743 = vld [vmem:[%s340 + $0x8f8] sm:$0xff]
        %v2744 = vld [vmem:[%s340 + $0x900] sm:$0xff]
        %v2745 = vld [vmem:[%s340 + $0x908] sm:$0xff]
        %v2746 = vld [vmem:[%s340 + $0x910] sm:$0xff]
        %v2747 = vld [vmem:[%s340 + $0x918] sm:$0xff]
        %v2748 = vld [vmem:[%s340 + $0x920] sm:$0xff]
        %v2749 = vld [vmem:[%s340 + $0x928] sm:$0xff]
        %v2750 = vld [vmem:[%s340 + $0x930] sm:$0xff]
        %v2751 = vld [vmem:[%s340 + $0x938] sm:$0xff]
        %v2752 = vld [vmem:[%s340 + $0x940] sm:$0xff]
        %v2753 = vld [vmem:[%s340 + $0x948] sm:$0xff]
        %v2754 = vld [vmem:[%s340 + $0x950] sm:$0xff]
        %v2755 = vld [vmem:[%s340 + $0x958] sm:$0xff]
        %v2756 = vld [vmem:[%s340 + $0x960] sm:$0xff]
        %v2757 = vld [vmem:[%s340 + $0x968] sm:$0xff]
        %v2758 = vld [vmem:[%s340 + $0x970] sm:$0xff]
        %v2759 = vld [vmem:[%s340 + $0x978] sm:$0xff]
        %v2760 = vld [vmem:[%s340 + $0x980] sm:$0xff]
        %v2761 = vld [vmem:[%s340 + $0x988] sm:$0xff]
        %v2762 = vld [vmem:[%s340 + $0x990] sm:$0xff]
        %v2763 = vld [vmem:[%s340 + $0x998] sm:$0xff]
        %v2764 = vld [vmem:[%s340 + $0x9a0] sm:$0xff]
        %v2765 = vld [vmem:[%s340 + $0x9a8] sm:$0xff]
        %v2766 = vld [vmem:[%s340 + $0x9b0] sm:$0xff]
        %v2767 = vld [vmem:[%s340 + $0x9b8] sm:$0xff]
        %v2768 = vld [vmem:[%s340 + $0x9c0] sm:$0xff]
        %v2769 = vld [vmem:[%s340 + $0x9c8] sm:$0xff]
        %v2770 = vld [vmem:[%s340 + $0x9d0] sm:$0xff]
        %v2771 = vld [vmem:[%s340 + $0x9d8] sm:$0xff]
        %v2772 = vld [vmem:[%s340 + $0x9e0] sm:$0xff]
        %v2773 = vld [vmem:[%s340 + $0x9e8] sm:$0xff]
        %v2774 = vld [vmem:[%s340 + $0x9f0] sm:$0xff]
        %v2775 = vld [vmem:[%s340 + $0x9f8] sm:$0xff]
        %v2776 = vld [vmem:[%s340 + $0xa00] sm:$0xff]
        %v2777 = vld [vmem:[%s340 + $0xa08] sm:$0xff]
        %v2778 = vld [vmem:[%s340 + $0xa10] sm:$0xff]
        %v2779 = vld [vmem:[%s340 + $0xa18] sm:$0xff]
        %v2780 = vld [vmem:[%s340 + $0xa20] sm:$0xff]
        %v2781 = vld [vmem:[%s340 + $0xa28] sm:$0xff]
        %v2782 = vld [vmem:[%s340 + $0xa30] sm:$0xff]
        %v2783 = vld [vmem:[%s340 + $0xa38] sm:$0xff]
        %v2784 = vld [vmem:[%s340 + $0xa40] sm:$0xff]
        %v2785 = vld [vmem:[%s340 + $0xa48] sm:$0xff]
        %v2786 = vld [vmem:[%s340 + $0xa50] sm:$0xff]
        %v2787 = vld [vmem:[%s340 + $0xa58] sm:$0xff]
        %v2788 = vld [vmem:[%s340 + $0xa60] sm:$0xff]
        %v2789 = vld [vmem:[%s340 + $0xa68] sm:$0xff]
        %v2790 = vld [vmem:[%s340 + $0xa70] sm:$0xff]
        %v2791 = vld [vmem:[%s340 + $0xa78] sm:$0xff]
        %v2792 = vld [vmem:[%s340 + $0xa80] sm:$0xff]
        %v2793 = vld [vmem:[%s340 + $0xa88] sm:$0xff]
        %v2794 = vld [vmem:[%s340 + $0xa90] sm:$0xff]
        %v2795 = vld [vmem:[%s340 + $0xa98] sm:$0xff]
        %v2796 = vld [vmem:[%s340 + $0xaa0] sm:$0xff]
        %v2797 = vld [vmem:[%s340 + $0xaa8] sm:$0xff]
        %v2798 = vld [vmem:[%s340 + $0xab0] sm:$0xff]
        %v2799 = vld [vmem:[%s340 + $0xab8] sm:$0xff]
        %v2800 = vld [vmem:[%s340 + $0xac0] sm:$0xff]
        %v2801 = vld [vmem:[%s340 + $0xac8] sm:$0xff]
        %v2802 = vld [vmem:[%s340 + $0xad0] sm:$0xff]
        %v2803 = vld [vmem:[%s340 + $0xad8] sm:$0xff]
        %v2804 = vld [vmem:[%s340 + $0xae0] sm:$0xff]
        %v2805 = vld [vmem:[%s340 + $0xae8] sm:$0xff]
        %v2806 = vld [vmem:[%s340 + $0xaf0] sm:$0xff]
        %v2807 = vld [vmem:[%s340 + $0xaf8] sm:$0xff]
        %v2808 = vld [vmem:[%s340 + $0xb00] sm:$0xff]
        %v2809 = vld [vmem:[%s340 + $0xb08] sm:$0xff]
        %v2810 = vld [vmem:[%s340 + $0xb10] sm:$0xff]
        %v2811 = vld [vmem:[%s340 + $0xb18] sm:$0xff]
        %v2812 = vld [vmem:[%s340 + $0xb20] sm:$0xff]
        %v2813 = vld [vmem:[%s340 + $0xb28] sm:$0xff]
        %v2814 = vld [vmem:[%s340 + $0xb30] sm:$0xff]
        %v2815 = vld [vmem:[%s340 + $0xb38] sm:$0xff]
        %v2816 = vld [vmem:[%s340 + $0xb40] sm:$0xff]
        %v2817 = vld [vmem:[%s340 + $0xb48] sm:$0xff]
        %v2818 = vld [vmem:[%s340 + $0xb50] sm:$0xff]
        %v2819 = vld [vmem:[%s340 + $0xb58] sm:$0xff]
        %v2820 = vld [vmem:[%s340 + $0xb60] sm:$0xff]
        %v2821 = vld [vmem:[%s340 + $0xb68] sm:$0xff]
        %v2822 = vld [vmem:[%s340 + $0xb70] sm:$0xff]
        %v2823 = vld [vmem:[%s340 + $0xb78] sm:$0xff]
        %v2824 = vld [vmem:[%s340 + $0xb80] sm:$0xff]
        %v2825 = vld [vmem:[%s340 + $0xb88] sm:$0xff]
        %v2826 = vld [vmem:[%s340 + $0xb90] sm:$0xff]
        %v2827 = vld [vmem:[%s340 + $0xb98] sm:$0xff]
        %v2828 = vld [vmem:[%s340 + $0xba0] sm:$0xff]
        %v2829 = vld [vmem:[%s340 + $0xba8] sm:$0xff]
        %v2830 = vld [vmem:[%s340 + $0xbb0] sm:$0xff]
        %v2831 = vld [vmem:[%s340 + $0xbb8] sm:$0xff]
        %v2832 = vld [vmem:[%s340 + $0xbc0] sm:$0xff]
        %v2833 = vld [vmem:[%s340 + $0xbc8] sm:$0xff]
        %v2834 = vld [vmem:[%s340 + $0xbd0] sm:$0xff]
        %v2835 = vld [vmem:[%s340 + $0xbd8] sm:$0xff]
        %v2836 = vld [vmem:[%s340 + $0xbe0] sm:$0xff]
        %v2837 = vld [vmem:[%s340 + $0xbe8] sm:$0xff]
        %v2838 = vld [vmem:[%s340 + $0xbf0] sm:$0xff]
        %v2839 = vld [vmem:[%s340 + $0xbf8] sm:$0xff]
        %v2840 = vld [vmem:[%s340 + $0xc00] sm:$0xff]
        %v2841 = vld [vmem:[%s340 + $0xc08] sm:$0xff]
        %v2842 = vld [vmem:[%s340 + $0xc10] sm:$0xff]
        %v2843 = vld [vmem:[%s340 + $0xc18] sm:$0xff]
        %v2844 = vld [vmem:[%s340 + $0xc20] sm:$0xff]
        %v2845 = vld [vmem:[%s340 + $0xc28] sm:$0xff]
        %v2846 = vld [vmem:[%s340 + $0xc30] sm:$0xff]
        %v2847 = vld [vmem:[%s340 + $0xc38] sm:$0xff]
        %v2848 = vld [vmem:[%s340 + $0xc40] sm:$0xff]
        %v2849 = vld [vmem:[%s340 + $0xc48] sm:$0xff]
        %v2850 = vld [vmem:[%s340 + $0xc50] sm:$0xff]
        %v2851 = vld [vmem:[%s340 + $0xc58] sm:$0xff]
        %v2852 = vld [vmem:[%s340 + $0xc60] sm:$0xff]
        %v2853 = vld [vmem:[%s340 + $0xc68] sm:$0xff]
        %v2854 = vld [vmem:[%s340 + $0xc70] sm:$0xff]
        %v2855 = vld [vmem:[%s340 + $0xc78] sm:$0xff]
        %v2856 = vld [vmem:[%s340 + $0xc80] sm:$0xff]
        %v2857 = vld [vmem:[%s340 + $0xc88] sm:$0xff]
        %v2858 = vld [vmem:[%s340 + $0xc90] sm:$0xff]
        %v2859 = vld [vmem:[%s340 + $0xc98] sm:$0xff]
        %v2860 = vld [vmem:[%s340 + $0xca0] sm:$0xff]
        %v2861 = vld [vmem:[%s340 + $0xca8] sm:$0xff]
        %v2862 = vld [vmem:[%s340 + $0xcb0] sm:$0xff]
        %v2863 = vld [vmem:[%s340 + $0xcb8] sm:$0xff]
        %v2864 = vld [vmem:[%s340 + $0xcc0] sm:$0xff]
        %v2865 = vld [vmem:[%s340 + $0xcc8] sm:$0xff]
        %v2866 = vld [vmem:[%s340 + $0xcd0] sm:$0xff]
        %v2867 = vld [vmem:[%s340 + $0xcd8] sm:$0xff]
        %v2868 = vld [vmem:[%s340 + $0xce0] sm:$0xff]
        %v2869 = vld [vmem:[%s340 + $0xce8] sm:$0xff]
        %v2870 = vld [vmem:[%s340 + $0xcf0] sm:$0xff]
        %v2871 = vld [vmem:[%s340 + $0xcf8] sm:$0xff]
        %v2872 = vld [vmem:[%s340 + $0xd00] sm:$0xff]
        %v2873 = vld [vmem:[%s340 + $0xd08] sm:$0xff]
        %v2874 = vld [vmem:[%s340 + $0xd10] sm:$0xff]
        %v2875 = vld [vmem:[%s340 + $0xd18] sm:$0xff]
        %v2876 = vld [vmem:[%s340 + $0xd20] sm:$0xff]
        %v2877 = vld [vmem:[%s340 + $0xd28] sm:$0xff]
        %v2878 = vld [vmem:[%s340 + $0xd30] sm:$0xff]
        %v2879 = vld [vmem:[%s340 + $0xd38] sm:$0xff]
        %v2880 = vld [vmem:[%s340 + $0xd40] sm:$0xff]
        %v2881 = vld [vmem:[%s340 + $0xd48] sm:$0xff]
        %v2882 = vld [vmem:[%s340 + $0xd50] sm:$0xff]
        %v2883 = vld [vmem:[%s340 + $0xd58] sm:$0xff]
        %v2884 = vld [vmem:[%s340 + $0xd60] sm:$0xff]
        %v2885 = vld [vmem:[%s340 + $0xd68] sm:$0xff]
        %v2886 = vld [vmem:[%s340 + $0xd70] sm:$0xff]
        %v2887 = vld [vmem:[%s340 + $0xd78] sm:$0xff]
        %v2888 = vld [vmem:[%s340 + $0xd80] sm:$0xff]
        %v2889 = vld [vmem:[%s340 + $0xd88] sm:$0xff]
        %v2890 = vld [vmem:[%s340 + $0xd90] sm:$0xff]
        %v2891 = vld [vmem:[%s340 + $0xd98] sm:$0xff]
        %v2892 = vld [vmem:[%s340 + $0xda0] sm:$0xff]
        %v2893 = vld [vmem:[%s340 + $0xda8] sm:$0xff]
        %v2894 = vld [vmem:[%s340 + $0xdb0] sm:$0xff]
        %v2895 = vld [vmem:[%s340 + $0xdb8] sm:$0xff]
        %v2896 = vld [vmem:[%s340 + $0xdc0] sm:$0xff]
        %v2897 = vld [vmem:[%s340 + $0xdc8] sm:$0xff]
        %v2898 = vld [vmem:[%s340 + $0xdd0] sm:$0xff]
        %v2899 = vld [vmem:[%s340 + $0xdd8] sm:$0xff]
        %v2900 = vld [vmem:[%s340 + $0xde0] sm:$0xff]
        %v2901 = vld [vmem:[%s340 + $0xde8] sm:$0xff]
        %v2902 = vld [vmem:[%s340 + $0xdf0] sm:$0xff]
        %v2903 = vld [vmem:[%s340 + $0xdf8] sm:$0xff]
        %v2904 = vld [vmem:[%s340 + $0xe00] sm:$0xff]
        %v2905 = vld [vmem:[%s340 + $0xe08] sm:$0xff]
        %v2906 = vld [vmem:[%s340 + $0xe10] sm:$0xff]
        %v2907 = vld [vmem:[%s340 + $0xe18] sm:$0xff]
        %v2908 = vld [vmem:[%s340 + $0xe20] sm:$0xff]
        %v2909 = vld [vmem:[%s340 + $0xe28] sm:$0xff]
        %v2910 = vld [vmem:[%s340 + $0xe30] sm:$0xff]
        %v2911 = vld [vmem:[%s340 + $0xe38] sm:$0xff]
        %v2912 = vld [vmem:[%s340 + $0xe40] sm:$0xff]
        %v2913 = vld [vmem:[%s340 + $0xe48] sm:$0xff]
        %v2914 = vld [vmem:[%s340 + $0xe50] sm:$0xff]
        %v2915 = vld [vmem:[%s340 + $0xe58] sm:$0xff]
        %v2916 = vld [vmem:[%s340 + $0xe60] sm:$0xff]
        %v2917 = vld [vmem:[%s340 + $0xe68] sm:$0xff]
        %v2918 = vld [vmem:[%s340 + $0xe70] sm:$0xff]
        %v2919 = vld [vmem:[%s340 + $0xe78] sm:$0xff]
        %v2920 = vld [vmem:[%s340 + $0xe80] sm:$0xff]
        %v2921 = vld [vmem:[%s340 + $0xe88] sm:$0xff]
        %v2922 = vld [vmem:[%s340 + $0xe90] sm:$0xff]
        %v2923 = vld [vmem:[%s340 + $0xe98] sm:$0xff]
        %v2924 = vld [vmem:[%s340 + $0xea0] sm:$0xff]
        %v2925 = vld [vmem:[%s340 + $0xea8] sm:$0xff]
        %v2926 = vld [vmem:[%s340 + $0xeb0] sm:$0xff]
        %v2927 = vld [vmem:[%s340 + $0xeb8] sm:$0xff]
        %v2928 = vld [vmem:[%s340 + $0xec0] sm:$0xff]
        %v2929 = vld [vmem:[%s340 + $0xec8] sm:$0xff]
        %v2930 = vld [vmem:[%s340 + $0xed0] sm:$0xff]
        %v2931 = vld [vmem:[%s340 + $0xed8] sm:$0xff]
        %v2932 = vld [vmem:[%s340 + $0xee0] sm:$0xff]
        %v2933 = vld [vmem:[%s340 + $0xee8] sm:$0xff]
        %v2934 = vld [vmem:[%s340 + $0xef0] sm:$0xff]
        %v2935 = vld [vmem:[%s340 + $0xef8] sm:$0xff]
        %v2936 = vld [vmem:[%s340 + $0xf00] sm:$0xff]
        %v2937 = vld [vmem:[%s340 + $0xf08] sm:$0xff]
        %v2938 = vld [vmem:[%s340 + $0xf10] sm:$0xff]
        %v2939 = vld [vmem:[%s340 + $0xf18] sm:$0xff]
        %v2940 = vld [vmem:[%s340 + $0xf20] sm:$0xff]
        %v2941 = vld [vmem:[%s340 + $0xf28] sm:$0xff]
        %v2942 = vld [vmem:[%s340 + $0xf30] sm:$0xff]
        %v2943 = vld [vmem:[%s340 + $0xf38] sm:$0xff]
        %v2944 = vld [vmem:[%s340 + $0xf40] sm:$0xff]
        %v2945 = vld [vmem:[%s340 + $0xf48] sm:$0xff]
        %v2946 = vld [vmem:[%s340 + $0xf50] sm:$0xff]
        %v2947 = vld [vmem:[%s340 + $0xf58] sm:$0xff]
        %v2948 = vld [vmem:[%s340 + $0xf60] sm:$0xff]
        %v2949 = vld [vmem:[%s340 + $0xf68] sm:$0xff]
        %v2950 = vld [vmem:[%s340 + $0xf70] sm:$0xff]
        %v2951 = vld [vmem:[%s340 + $0xf78] sm:$0xff]
        %v2952 = vld [vmem:[%s340 + $0xf80] sm:$0xff]
        %v2953 = vld [vmem:[%s340 + $0xf88] sm:$0xff]
        %v2954 = vld [vmem:[%s340 + $0xf90] sm:$0xff]
        %v2955 = vld [vmem:[%s340 + $0xf98] sm:$0xff]
        %v2956 = vld [vmem:[%s340 + $0xfa0] sm:$0xff]
        %v2957 = vld [vmem:[%s340 + $0xfa8] sm:$0xff]
        %v2958 = vld [vmem:[%s340 + $0xfb0] sm:$0xff]
        %v2959 = vld [vmem:[%s340 + $0xfb8] sm:$0xff]
        %v2960 = vld [vmem:[%s340 + $0xfc0] sm:$0xff]
        %v2961 = vld [vmem:[%s340 + $0xfc8] sm:$0xff]
        %v2962 = vld [vmem:[%s340 + $0xfd0] sm:$0xff]
        %v2963 = vld [vmem:[%s340 + $0xfd8] sm:$0xff]
        %v2964 = vld [vmem:[%s340 + $0xfe0] sm:$0xff]
        %v2965 = vld [vmem:[%s340 + $0xfe8] sm:$0xff]
        %v2966 = vld [vmem:[%s340 + $0xff0] sm:$0xff]
        %v2967 = vld [vmem:[%s340 + $0xff8] sm:$0xff]
        %v2968 = vld [vmem:[%s349] sm:$0xf]
        %v2970 = vlaneseq
        %v2971 = vshrl.u32 %v2970, 7
        %v2972 = vsub.s32 0, %v2971
        %v2973 = vrot.slane %v2968, %v2972
        %v2974 = vlaneseq
        %v2975 = vshrl.u32 %v2974, 7
        %v2976 = vsub.s32 1, %v2975
        %v2977 = vrot.slane %v2968, %v2976
        %v2978 = vlaneseq
        %v2979 = vshrl.u32 %v2978, 7
        %v2980 = vsub.s32 2, %v2979
        %v2981 = vrot.slane %v2968, %v2980
        %v2982 = vlaneseq
        %v2983 = vshrl.u32 %v2982, 7
        %v2984 = vsub.s32 3, %v2983
        %v2985 = vrot.slane %v2968, %v2984
        %v2998 = vunpack.c.l.b16 %v2448
        %v2999 = vunpack.c.h.b16 %v2448
        %v3000 = vunpack.c.l.b16 %v2449
        %v3001 = vunpack.c.h.b16 %v2449
        %v3002 = vunpack.c.l.b16 %v2450
        %v3003 = vunpack.c.h.b16 %v2450
        %v3004 = vunpack.c.l.b16 %v2451
        %v3005 = vunpack.c.h.b16 %v2451
        %v3006 = vunpack.c.l.b16 %v2452
        %v3007 = vunpack.c.h.b16 %v2452
        %v3008 = vunpack.c.l.b16 %v2453
        %v3009 = vunpack.c.h.b16 %v2453
        %v3010 = vunpack.c.l.b16 %v2454
        %v3011 = vunpack.c.h.b16 %v2454
        %v3012 = vunpack.c.l.b16 %v2455
        %v3013 = vunpack.c.h.b16 %v2455
        %v3014 = vpack.c.b16 %v2998, %v2998
        %v3015 = vpack.c.b16 %v2999, %v2999
        %v3016 = vpack.c.b16 %v3000, %v3000
        %v3017 = vpack.c.b16 %v3001, %v3001
        %v3018 = vpack.c.b16 %v3002, %v3002
        %v3019 = vpack.c.b16 %v3003, %v3003
        %v3020 = vpack.c.b16 %v3004, %v3004
        %v3021 = vpack.c.b16 %v3005, %v3005
        %v3022 = vpack.c.b16 %v3006, %v3006
        %v3023 = vpack.c.b16 %v3007, %v3007
        %v3024 = vpack.c.b16 %v3008, %v3008
        %v3025 = vpack.c.b16 %v3009, %v3009
        %v3026 = vpack.c.b16 %v3010, %v3010
        %v3027 = vpack.c.b16 %v3011, %v3011
        %v3028 = vpack.c.b16 %v3012, %v3012
        %v3029 = vpack.c.b16 %v3013, %v3013
        %v3558 = vunpack.c.l.b16 %v2456
        %v3559 = vunpack.c.h.b16 %v2456
        %v3560 = vunpack.c.l.b16 %v2457
        %v3561 = vunpack.c.h.b16 %v2457
        %v3562 = vunpack.c.l.b16 %v2458
        %v3563 = vunpack.c.h.b16 %v2458
        %v3564 = vunpack.c.l.b16 %v2459
        %v3565 = vunpack.c.h.b16 %v2459
        %v3566 = vunpack.c.l.b16 %v2460
        %v3567 = vunpack.c.h.b16 %v2460
        %v3568 = vunpack.c.l.b16 %v2461
        %v3569 = vunpack.c.h.b16 %v2461
        %v3570 = vunpack.c.l.b16 %v2462
        %v3571 = vunpack.c.h.b16 %v2462
        %v3572 = vunpack.c.l.b16 %v2463
        %v3573 = vunpack.c.h.b16 %v2463
        %v3574 = vunpack.c.l.b16 %v2464
        %v3575 = vunpack.c.h.b16 %v2464
        %v3576 = vunpack.c.l.b16 %v2465
        %v3577 = vunpack.c.h.b16 %v2465
        %v3578 = vunpack.c.l.b16 %v2466
        %v3579 = vunpack.c.h.b16 %v2466
        %v3580 = vunpack.c.l.b16 %v2467
        %v3581 = vunpack.c.h.b16 %v2467
        %v3582 = vunpack.c.l.b16 %v2468
        %v3583 = vunpack.c.h.b16 %v2468
        %v3584 = vunpack.c.l.b16 %v2469
        %v3585 = vunpack.c.h.b16 %v2469
        %v3586 = vunpack.c.l.b16 %v2470
        %v3587 = vunpack.c.h.b16 %v2470
        %v3588 = vunpack.c.l.b16 %v2471
        %v3589 = vunpack.c.h.b16 %v2471
        %v3590 = vunpack.c.l.b16 %v2472
        %v3591 = vunpack.c.h.b16 %v2472
        %v3592 = vunpack.c.l.b16 %v2473
        %v3593 = vunpack.c.h.b16 %v2473
        %v3594 = vunpack.c.l.b16 %v2474
        %v3595 = vunpack.c.h.b16 %v2474
        %v3596 = vunpack.c.l.b16 %v2475
        %v3597 = vunpack.c.h.b16 %v2475
        %v3598 = vunpack.c.l.b16 %v2476
        %v3599 = vunpack.c.h.b16 %v2476
        %v3600 = vunpack.c.l.b16 %v2477
        %v3601 = vunpack.c.h.b16 %v2477
        %v3602 = vunpack.c.l.b16 %v2478
        %v3603 = vunpack.c.h.b16 %v2478
        %v3604 = vunpack.c.l.b16 %v2479
        %v3605 = vunpack.c.h.b16 %v2479
        %v3606 = vunpack.c.l.b16 %v2480
        %v3607 = vunpack.c.h.b16 %v2480
        %v3608 = vunpack.c.l.b16 %v2481
        %v3609 = vunpack.c.h.b16 %v2481
        %v3610 = vunpack.c.l.b16 %v2482
        %v3611 = vunpack.c.h.b16 %v2482
        %v3612 = vunpack.c.l.b16 %v2483
        %v3613 = vunpack.c.h.b16 %v2483
        %v3614 = vunpack.c.l.b16 %v2484
        %v3615 = vunpack.c.h.b16 %v2484
        %v3616 = vunpack.c.l.b16 %v2485
        %v3617 = vunpack.c.h.b16 %v2485
        %v3618 = vunpack.c.l.b16 %v2486
        %v3619 = vunpack.c.h.b16 %v2486
        %v3620 = vunpack.c.l.b16 %v2487
        %v3621 = vunpack.c.h.b16 %v2487
        %v3622 = vunpack.c.l.b16 %v2488
        %v3623 = vunpack.c.h.b16 %v2488
        %v3624 = vunpack.c.l.b16 %v2489
        %v3625 = vunpack.c.h.b16 %v2489
        %v3626 = vunpack.c.l.b16 %v2490
        %v3627 = vunpack.c.h.b16 %v2490
        %v3628 = vunpack.c.l.b16 %v2491
        %v3629 = vunpack.c.h.b16 %v2491
        %v3630 = vunpack.c.l.b16 %v2492
        %v3631 = vunpack.c.h.b16 %v2492
        %v3632 = vunpack.c.l.b16 %v2493
        %v3633 = vunpack.c.h.b16 %v2493
        %v3634 = vunpack.c.l.b16 %v2494
        %v3635 = vunpack.c.h.b16 %v2494
        %v3636 = vunpack.c.l.b16 %v2495
        %v3637 = vunpack.c.h.b16 %v2495
        %v3638 = vunpack.c.l.b16 %v2496
        %v3639 = vunpack.c.h.b16 %v2496
        %v3640 = vunpack.c.l.b16 %v2497
        %v3641 = vunpack.c.h.b16 %v2497
        %v3642 = vunpack.c.l.b16 %v2498
        %v3643 = vunpack.c.h.b16 %v2498
        %v3644 = vunpack.c.l.b16 %v2499
        %v3645 = vunpack.c.h.b16 %v2499
        %v3646 = vunpack.c.l.b16 %v2500
        %v3647 = vunpack.c.h.b16 %v2500
        %v3648 = vunpack.c.l.b16 %v2501
        %v3649 = vunpack.c.h.b16 %v2501
        %v3650 = vunpack.c.l.b16 %v2502
        %v3651 = vunpack.c.h.b16 %v2502
        %v3652 = vunpack.c.l.b16 %v2503
        %v3653 = vunpack.c.h.b16 %v2503
        %v3654 = vunpack.c.l.b16 %v2504
        %v3655 = vunpack.c.h.b16 %v2504
        %v3656 = vunpack.c.l.b16 %v2505
        %v3657 = vunpack.c.h.b16 %v2505
        %v3658 = vunpack.c.l.b16 %v2506
        %v3659 = vunpack.c.h.b16 %v2506
        %v3660 = vunpack.c.l.b16 %v2507
        %v3661 = vunpack.c.h.b16 %v2507
        %v3662 = vunpack.c.l.b16 %v2508
        %v3663 = vunpack.c.h.b16 %v2508
        %v3664 = vunpack.c.l.b16 %v2509
        %v3665 = vunpack.c.h.b16 %v2509
        %v3666 = vunpack.c.l.b16 %v2510
        %v3667 = vunpack.c.h.b16 %v2510
        %v3668 = vunpack.c.l.b16 %v2511
        %v3669 = vunpack.c.h.b16 %v2511
        %v3670 = vunpack.c.l.b16 %v2512
        %v3671 = vunpack.c.h.b16 %v2512
        %v3672 = vunpack.c.l.b16 %v2513
        %v3673 = vunpack.c.h.b16 %v2513
        %v3674 = vunpack.c.l.b16 %v2514
        %v3675 = vunpack.c.h.b16 %v2514
        %v3676 = vunpack.c.l.b16 %v2515
        %v3677 = vunpack.c.h.b16 %v2515
        %v3678 = vunpack.c.l.b16 %v2516
        %v3679 = vunpack.c.h.b16 %v2516
        %v3680 = vunpack.c.l.b16 %v2517
        %v3681 = vunpack.c.h.b16 %v2517
        %v3682 = vunpack.c.l.b16 %v2518
        %v3683 = vunpack.c.h.b16 %v2518
        %v3684 = vunpack.c.l.b16 %v2519
        %v3685 = vunpack.c.h.b16 %v2519
        %v3686 = vunpack.c.l.b16 %v2520
        %v3687 = vunpack.c.h.b16 %v2520
        %v3688 = vunpack.c.l.b16 %v2521
        %v3689 = vunpack.c.h.b16 %v2521
        %v3690 = vunpack.c.l.b16 %v2522
        %v3691 = vunpack.c.h.b16 %v2522
        %v3692 = vunpack.c.l.b16 %v2523
        %v3693 = vunpack.c.h.b16 %v2523
        %v3694 = vunpack.c.l.b16 %v2524
        %v3695 = vunpack.c.h.b16 %v2524
        %v3696 = vunpack.c.l.b16 %v2525
        %v3697 = vunpack.c.h.b16 %v2525
        %v3698 = vunpack.c.l.b16 %v2526
        %v3699 = vunpack.c.h.b16 %v2526
        %v3700 = vunpack.c.l.b16 %v2527
        %v3701 = vunpack.c.h.b16 %v2527
        %v3702 = vunpack.c.l.b16 %v2528
        %v3703 = vunpack.c.h.b16 %v2528
        %v3704 = vunpack.c.l.b16 %v2529
        %v3705 = vunpack.c.h.b16 %v2529
        %v3706 = vunpack.c.l.b16 %v2530
        %v3707 = vunpack.c.h.b16 %v2530
        %v3708 = vunpack.c.l.b16 %v2531
        %v3709 = vunpack.c.h.b16 %v2531
        %v3710 = vunpack.c.l.b16 %v2532
        %v3711 = vunpack.c.h.b16 %v2532
        %v3712 = vunpack.c.l.b16 %v2533
        %v3713 = vunpack.c.h.b16 %v2533
        %v3714 = vunpack.c.l.b16 %v2534
        %v3715 = vunpack.c.h.b16 %v2534
        %v3716 = vunpack.c.l.b16 %v2535
        %v3717 = vunpack.c.h.b16 %v2535
        %v3718 = vunpack.c.l.b16 %v2536
        %v3719 = vunpack.c.h.b16 %v2536
        %v3720 = vunpack.c.l.b16 %v2537
        %v3721 = vunpack.c.h.b16 %v2537
        %v3722 = vunpack.c.l.b16 %v2538
        %v3723 = vunpack.c.h.b16 %v2538
        %v3724 = vunpack.c.l.b16 %v2539
        %v3725 = vunpack.c.h.b16 %v2539
        %v3726 = vunpack.c.l.b16 %v2540
        %v3727 = vunpack.c.h.b16 %v2540
        %v3728 = vunpack.c.l.b16 %v2541
        %v3729 = vunpack.c.h.b16 %v2541
        %v3730 = vunpack.c.l.b16 %v2542
        %v3731 = vunpack.c.h.b16 %v2542
        %v3732 = vunpack.c.l.b16 %v2543
        %v3733 = vunpack.c.h.b16 %v2543
        %v3734 = vunpack.c.l.b16 %v2544
        %v3735 = vunpack.c.h.b16 %v2544
        %v3736 = vunpack.c.l.b16 %v2545
        %v3737 = vunpack.c.h.b16 %v2545
        %v3738 = vunpack.c.l.b16 %v2546
        %v3739 = vunpack.c.h.b16 %v2546
        %v3740 = vunpack.c.l.b16 %v2547
        %v3741 = vunpack.c.h.b16 %v2547
        %v3742 = vunpack.c.l.b16 %v2548
        %v3743 = vunpack.c.h.b16 %v2548
        %v3744 = vunpack.c.l.b16 %v2549
        %v3745 = vunpack.c.h.b16 %v2549
        %v3746 = vunpack.c.l.b16 %v2550
        %v3747 = vunpack.c.h.b16 %v2550
        %v3748 = vunpack.c.l.b16 %v2551
        %v3749 = vunpack.c.h.b16 %v2551
        %v3750 = vunpack.c.l.b16 %v2552
        %v3751 = vunpack.c.h.b16 %v2552
        %v3752 = vunpack.c.l.b16 %v2553
        %v3753 = vunpack.c.h.b16 %v2553
        %v3754 = vunpack.c.l.b16 %v2554
        %v3755 = vunpack.c.h.b16 %v2554
        %v3756 = vunpack.c.l.b16 %v2555
        %v3757 = vunpack.c.h.b16 %v2555
        %v3758 = vunpack.c.l.b16 %v2556
        %v3759 = vunpack.c.h.b16 %v2556
        %v3760 = vunpack.c.l.b16 %v2557
        %v3761 = vunpack.c.h.b16 %v2557
        %v3762 = vunpack.c.l.b16 %v2558
        %v3763 = vunpack.c.h.b16 %v2558
        %v3764 = vunpack.c.l.b16 %v2559
        %v3765 = vunpack.c.h.b16 %v2559
        %v3766 = vunpack.c.l.b16 %v2560
        %v3767 = vunpack.c.h.b16 %v2560
        %v3768 = vunpack.c.l.b16 %v2561
        %v3769 = vunpack.c.h.b16 %v2561
        %v3770 = vunpack.c.l.b16 %v2562
        %v3771 = vunpack.c.h.b16 %v2562
        %v3772 = vunpack.c.l.b16 %v2563
        %v3773 = vunpack.c.h.b16 %v2563
        %v3774 = vunpack.c.l.b16 %v2564
        %v3775 = vunpack.c.h.b16 %v2564
        %v3776 = vunpack.c.l.b16 %v2565
        %v3777 = vunpack.c.h.b16 %v2565
        %v3778 = vunpack.c.l.b16 %v2566
        %v3779 = vunpack.c.h.b16 %v2566
        %v3780 = vunpack.c.l.b16 %v2567
        %v3781 = vunpack.c.h.b16 %v2567
        %v3782 = vunpack.c.l.b16 %v2568
        %v3783 = vunpack.c.h.b16 %v2568
        %v3784 = vunpack.c.l.b16 %v2569
        %v3785 = vunpack.c.h.b16 %v2569
        %v3786 = vunpack.c.l.b16 %v2570
        %v3787 = vunpack.c.h.b16 %v2570
        %v3788 = vunpack.c.l.b16 %v2571
        %v3789 = vunpack.c.h.b16 %v2571
        %v3790 = vunpack.c.l.b16 %v2572
        %v3791 = vunpack.c.h.b16 %v2572
        %v3792 = vunpack.c.l.b16 %v2573
        %v3793 = vunpack.c.h.b16 %v2573
        %v3794 = vunpack.c.l.b16 %v2574
        %v3795 = vunpack.c.h.b16 %v2574
        %v3796 = vunpack.c.l.b16 %v2575
        %v3797 = vunpack.c.h.b16 %v2575
        %v3798 = vunpack.c.l.b16 %v2576
        %v3799 = vunpack.c.h.b16 %v2576
        %v3800 = vunpack.c.l.b16 %v2577
        %v3801 = vunpack.c.h.b16 %v2577
        %v3802 = vunpack.c.l.b16 %v2578
        %v3803 = vunpack.c.h.b16 %v2578
        %v3804 = vunpack.c.l.b16 %v2579
        %v3805 = vunpack.c.h.b16 %v2579
        %v3806 = vunpack.c.l.b16 %v2580
        %v3807 = vunpack.c.h.b16 %v2580
        %v3808 = vunpack.c.l.b16 %v2581
        %v3809 = vunpack.c.h.b16 %v2581
        %v3810 = vunpack.c.l.b16 %v2582
        %v3811 = vunpack.c.h.b16 %v2582
        %v3812 = vunpack.c.l.b16 %v2583
        %v3813 = vunpack.c.h.b16 %v2583
        %v3814 = vunpack.c.l.b16 %v2584
        %v3815 = vunpack.c.h.b16 %v2584
        %v3816 = vunpack.c.l.b16 %v2585
        %v3817 = vunpack.c.h.b16 %v2585
        %v3818 = vunpack.c.l.b16 %v2586
        %v3819 = vunpack.c.h.b16 %v2586
        %v3820 = vunpack.c.l.b16 %v2587
        %v3821 = vunpack.c.h.b16 %v2587
        %v3822 = vunpack.c.l.b16 %v2588
        %v3823 = vunpack.c.h.b16 %v2588
        %v3824 = vunpack.c.l.b16 %v2589
        %v3825 = vunpack.c.h.b16 %v2589
        %v3826 = vunpack.c.l.b16 %v2590
        %v3827 = vunpack.c.h.b16 %v2590
        %v3828 = vunpack.c.l.b16 %v2591
        %v3829 = vunpack.c.h.b16 %v2591
        %v3830 = vunpack.c.l.b16 %v2592
        %v3831 = vunpack.c.h.b16 %v2592
        %v3832 = vunpack.c.l.b16 %v2593
        %v3833 = vunpack.c.h.b16 %v2593
        %v3834 = vunpack.c.l.b16 %v2594
        %v3835 = vunpack.c.h.b16 %v2594
        %v3836 = vunpack.c.l.b16 %v2595
        %v3837 = vunpack.c.h.b16 %v2595
        %v3838 = vunpack.c.l.b16 %v2596
        %v3839 = vunpack.c.h.b16 %v2596
        %v3840 = vunpack.c.l.b16 %v2597
        %v3841 = vunpack.c.h.b16 %v2597
        %v3842 = vunpack.c.l.b16 %v2598
        %v3843 = vunpack.c.h.b16 %v2598
        %v3844 = vunpack.c.l.b16 %v2599
        %v3845 = vunpack.c.h.b16 %v2599
        %v3846 = vunpack.c.l.b16 %v2600
        %v3847 = vunpack.c.h.b16 %v2600
        %v3848 = vunpack.c.l.b16 %v2601
        %v3849 = vunpack.c.h.b16 %v2601
        %v3850 = vunpack.c.l.b16 %v2602
        %v3851 = vunpack.c.h.b16 %v2602
        %v3852 = vunpack.c.l.b16 %v2603
        %v3853 = vunpack.c.h.b16 %v2603
        %v3854 = vunpack.c.l.b16 %v2604
        %v3855 = vunpack.c.h.b16 %v2604
        %v3856 = vunpack.c.l.b16 %v2605
        %v3857 = vunpack.c.h.b16 %v2605
        %v3858 = vunpack.c.l.b16 %v2606
        %v3859 = vunpack.c.h.b16 %v2606
        %v3860 = vunpack.c.l.b16 %v2607
        %v3861 = vunpack.c.h.b16 %v2607
        %v3862 = vunpack.c.l.b16 %v2608
        %v3863 = vunpack.c.h.b16 %v2608
        %v3864 = vunpack.c.l.b16 %v2609
        %v3865 = vunpack.c.h.b16 %v2609
        %v3866 = vunpack.c.l.b16 %v2610
        %v3867 = vunpack.c.h.b16 %v2610
        %v3868 = vunpack.c.l.b16 %v2611
        %v3869 = vunpack.c.h.b16 %v2611
        %v3870 = vunpack.c.l.b16 %v2612
        %v3871 = vunpack.c.h.b16 %v2612
        %v3872 = vunpack.c.l.b16 %v2613
        %v3873 = vunpack.c.h.b16 %v2613
        %v3874 = vunpack.c.l.b16 %v2614
        %v3875 = vunpack.c.h.b16 %v2614
        %v3876 = vunpack.c.l.b16 %v2615
        %v3877 = vunpack.c.h.b16 %v2615
        %v3878 = vunpack.c.l.b16 %v2616
        %v3879 = vunpack.c.h.b16 %v2616
        %v3880 = vunpack.c.l.b16 %v2617
        %v3881 = vunpack.c.h.b16 %v2617
        %v3882 = vunpack.c.l.b16 %v2618
        %v3883 = vunpack.c.h.b16 %v2618
        %v3884 = vunpack.c.l.b16 %v2619
        %v3885 = vunpack.c.h.b16 %v2619
        %v3886 = vunpack.c.l.b16 %v2620
        %v3887 = vunpack.c.h.b16 %v2620
        %v3888 = vunpack.c.l.b16 %v2621
        %v3889 = vunpack.c.h.b16 %v2621
        %v3890 = vunpack.c.l.b16 %v2622
        %v3891 = vunpack.c.h.b16 %v2622
        %v3892 = vunpack.c.l.b16 %v2623
        %v3893 = vunpack.c.h.b16 %v2623
        %v3894 = vunpack.c.l.b16 %v2624
        %v3895 = vunpack.c.h.b16 %v2624
        %v3896 = vunpack.c.l.b16 %v2625
        %v3897 = vunpack.c.h.b16 %v2625
        %v3898 = vunpack.c.l.b16 %v2626
        %v3899 = vunpack.c.h.b16 %v2626
        %v3900 = vunpack.c.l.b16 %v2627
        %v3901 = vunpack.c.h.b16 %v2627
        %v3902 = vunpack.c.l.b16 %v2628
        %v3903 = vunpack.c.h.b16 %v2628
        %v3904 = vunpack.c.l.b16 %v2629
        %v3905 = vunpack.c.h.b16 %v2629
        %v3906 = vunpack.c.l.b16 %v2630
        %v3907 = vunpack.c.h.b16 %v2630
        %v3908 = vunpack.c.l.b16 %v2631
        %v3909 = vunpack.c.h.b16 %v2631
        %v3910 = vunpack.c.l.b16 %v2632
        %v3911 = vunpack.c.h.b16 %v2632
        %v3912 = vunpack.c.l.b16 %v2633
        %v3913 = vunpack.c.h.b16 %v2633
        %v3914 = vunpack.c.l.b16 %v2634
        %v3915 = vunpack.c.h.b16 %v2634
        %v3916 = vunpack.c.l.b16 %v2635
        %v3917 = vunpack.c.h.b16 %v2635
        %v3918 = vunpack.c.l.b16 %v2636
        %v3919 = vunpack.c.h.b16 %v2636
        %v3920 = vunpack.c.l.b16 %v2637
        %v3921 = vunpack.c.h.b16 %v2637
        %v3922 = vunpack.c.l.b16 %v2638
        %v3923 = vunpack.c.h.b16 %v2638
        %v3924 = vunpack.c.l.b16 %v2639
        %v3925 = vunpack.c.h.b16 %v2639
        %v3926 = vunpack.c.l.b16 %v2640
        %v3927 = vunpack.c.h.b16 %v2640
        %v3928 = vunpack.c.l.b16 %v2641
        %v3929 = vunpack.c.h.b16 %v2641
        %v3930 = vunpack.c.l.b16 %v2642
        %v3931 = vunpack.c.h.b16 %v2642
        %v3932 = vunpack.c.l.b16 %v2643
        %v3933 = vunpack.c.h.b16 %v2643
        %v3934 = vunpack.c.l.b16 %v2644
        %v3935 = vunpack.c.h.b16 %v2644
        %v3936 = vunpack.c.l.b16 %v2645
        %v3937 = vunpack.c.h.b16 %v2645
        %v3938 = vunpack.c.l.b16 %v2646
        %v3939 = vunpack.c.h.b16 %v2646
        %v3940 = vunpack.c.l.b16 %v2647
        %v3941 = vunpack.c.h.b16 %v2647
        %v3942 = vunpack.c.l.b16 %v2648
        %v3943 = vunpack.c.h.b16 %v2648
        %v3944 = vunpack.c.l.b16 %v2649
        %v3945 = vunpack.c.h.b16 %v2649
        %v3946 = vunpack.c.l.b16 %v2650
        %v3947 = vunpack.c.h.b16 %v2650
        %v3948 = vunpack.c.l.b16 %v2651
        %v3949 = vunpack.c.h.b16 %v2651
        %v3950 = vunpack.c.l.b16 %v2652
        %v3951 = vunpack.c.h.b16 %v2652
        %v3952 = vunpack.c.l.b16 %v2653
        %v3953 = vunpack.c.h.b16 %v2653
        %v3954 = vunpack.c.l.b16 %v2654
        %v3955 = vunpack.c.h.b16 %v2654
        %v3956 = vunpack.c.l.b16 %v2655
        %v3957 = vunpack.c.h.b16 %v2655
        %v3958 = vunpack.c.l.b16 %v2656
        %v3959 = vunpack.c.h.b16 %v2656
        %v3960 = vunpack.c.l.b16 %v2657
        %v3961 = vunpack.c.h.b16 %v2657
        %v3962 = vunpack.c.l.b16 %v2658
        %v3963 = vunpack.c.h.b16 %v2658
        %v3964 = vunpack.c.l.b16 %v2659
        %v3965 = vunpack.c.h.b16 %v2659
        %v3966 = vunpack.c.l.b16 %v2660
        %v3967 = vunpack.c.h.b16 %v2660
        %v3968 = vunpack.c.l.b16 %v2661
        %v3969 = vunpack.c.h.b16 %v2661
        %v3970 = vunpack.c.l.b16 %v2662
        %v3971 = vunpack.c.h.b16 %v2662
        %v3972 = vunpack.c.l.b16 %v2663
        %v3973 = vunpack.c.h.b16 %v2663
        %v3974 = vunpack.c.l.b16 %v2664
        %v3975 = vunpack.c.h.b16 %v2664
        %v3976 = vunpack.c.l.b16 %v2665
        %v3977 = vunpack.c.h.b16 %v2665
        %v3978 = vunpack.c.l.b16 %v2666
        %v3979 = vunpack.c.h.b16 %v2666
        %v3980 = vunpack.c.l.b16 %v2667
        %v3981 = vunpack.c.h.b16 %v2667
        %v3982 = vunpack.c.l.b16 %v2668
        %v3983 = vunpack.c.h.b16 %v2668
        %v3984 = vunpack.c.l.b16 %v2669
        %v3985 = vunpack.c.h.b16 %v2669
        %v3986 = vunpack.c.l.b16 %v2670
        %v3987 = vunpack.c.h.b16 %v2670
        %v3988 = vunpack.c.l.b16 %v2671
        %v3989 = vunpack.c.h.b16 %v2671
        %v3990 = vunpack.c.l.b16 %v2672
        %v3991 = vunpack.c.h.b16 %v2672
        %v3992 = vunpack.c.l.b16 %v2673
        %v3993 = vunpack.c.h.b16 %v2673
        %v3994 = vunpack.c.l.b16 %v2674
        %v3995 = vunpack.c.h.b16 %v2674
        %v3996 = vunpack.c.l.b16 %v2675
        %v3997 = vunpack.c.h.b16 %v2675
        %v3998 = vunpack.c.l.b16 %v2676
        %v3999 = vunpack.c.h.b16 %v2676
        %v4000 = vunpack.c.l.b16 %v2677
        %v4001 = vunpack.c.h.b16 %v2677
        %v4002 = vunpack.c.l.b16 %v2678
        %v4003 = vunpack.c.h.b16 %v2678
        %v4004 = vunpack.c.l.b16 %v2679
        %v4005 = vunpack.c.h.b16 %v2679
        %v4006 = vunpack.c.l.b16 %v2680
        %v4007 = vunpack.c.h.b16 %v2680
        %v4008 = vunpack.c.l.b16 %v2681
        %v4009 = vunpack.c.h.b16 %v2681
        %v4010 = vunpack.c.l.b16 %v2682
        %v4011 = vunpack.c.h.b16 %v2682
        %v4012 = vunpack.c.l.b16 %v2683
        %v4013 = vunpack.c.h.b16 %v2683
        %v4014 = vunpack.c.l.b16 %v2684
        %v4015 = vunpack.c.h.b16 %v2684
        %v4016 = vunpack.c.l.b16 %v2685
        %v4017 = vunpack.c.h.b16 %v2685
        %v4018 = vunpack.c.l.b16 %v2686
        %v4019 = vunpack.c.h.b16 %v2686
        %v4020 = vunpack.c.l.b16 %v2687
        %v4021 = vunpack.c.h.b16 %v2687
        %v4022 = vunpack.c.l.b16 %v2688
        %v4023 = vunpack.c.h.b16 %v2688
        %v4024 = vunpack.c.l.b16 %v2689
        %v4025 = vunpack.c.h.b16 %v2689
        %v4026 = vunpack.c.l.b16 %v2690
        %v4027 = vunpack.c.h.b16 %v2690
        %v4028 = vunpack.c.l.b16 %v2691
        %v4029 = vunpack.c.h.b16 %v2691
        %v4030 = vunpack.c.l.b16 %v2692
        %v4031 = vunpack.c.h.b16 %v2692
        %v4032 = vunpack.c.l.b16 %v2693
        %v4033 = vunpack.c.h.b16 %v2693
        %v4034 = vunpack.c.l.b16 %v2694
        %v4035 = vunpack.c.h.b16 %v2694
        %v4036 = vunpack.c.l.b16 %v2695
        %v4037 = vunpack.c.h.b16 %v2695
        %v4038 = vunpack.c.l.b16 %v2696
        %v4039 = vunpack.c.h.b16 %v2696
        %v4040 = vunpack.c.l.b16 %v2697
        %v4041 = vunpack.c.h.b16 %v2697
        %v4042 = vunpack.c.l.b16 %v2698
        %v4043 = vunpack.c.h.b16 %v2698
        %v4044 = vunpack.c.l.b16 %v2699
        %v4045 = vunpack.c.h.b16 %v2699
        %v4046 = vunpack.c.l.b16 %v2700
        %v4047 = vunpack.c.h.b16 %v2700
        %v4048 = vunpack.c.l.b16 %v2701
        %v4049 = vunpack.c.h.b16 %v2701
        %v4050 = vunpack.c.l.b16 %v2702
        %v4051 = vunpack.c.h.b16 %v2702
        %v4052 = vunpack.c.l.b16 %v2703
        %v4053 = vunpack.c.h.b16 %v2703
        %v4054 = vunpack.c.l.b16 %v2704
        %v4055 = vunpack.c.h.b16 %v2704
        %v4056 = vunpack.c.l.b16 %v2705
        %v4057 = vunpack.c.h.b16 %v2705
        %v4058 = vunpack.c.l.b16 %v2706
        %v4059 = vunpack.c.h.b16 %v2706
        %v4060 = vunpack.c.l.b16 %v2707
        %v4061 = vunpack.c.h.b16 %v2707
        %v4062 = vunpack.c.l.b16 %v2708
        %v4063 = vunpack.c.h.b16 %v2708
        %v4064 = vunpack.c.l.b16 %v2709
        %v4065 = vunpack.c.h.b16 %v2709
        %v4066 = vunpack.c.l.b16 %v2710
        %v4067 = vunpack.c.h.b16 %v2710
        %v4068 = vunpack.c.l.b16 %v2711
        %v4069 = vunpack.c.h.b16 %v2711
        %v4070 = vunpack.c.l.b16 %v2712
        %v4071 = vunpack.c.h.b16 %v2712
        %v4072 = vunpack.c.l.b16 %v2713
        %v4073 = vunpack.c.h.b16 %v2713
        %v4074 = vunpack.c.l.b16 %v2714
        %v4075 = vunpack.c.h.b16 %v2714
        %v4076 = vunpack.c.l.b16 %v2715
        %v4077 = vunpack.c.h.b16 %v2715
        %v4078 = vunpack.c.l.b16 %v2716
        %v4079 = vunpack.c.h.b16 %v2716
        %v4080 = vunpack.c.l.b16 %v2717
        %v4081 = vunpack.c.h.b16 %v2717
        %v4082 = vunpack.c.l.b16 %v2718
        %v4083 = vunpack.c.h.b16 %v2718
        %v4084 = vunpack.c.l.b16 %v2719
        %v4085 = vunpack.c.h.b16 %v2719
        %v4086 = vunpack.c.l.b16 %v2720
        %v4087 = vunpack.c.h.b16 %v2720
        %v4088 = vunpack.c.l.b16 %v2721
        %v4089 = vunpack.c.h.b16 %v2721
        %v4090 = vunpack.c.l.b16 %v2722
        %v4091 = vunpack.c.h.b16 %v2722
        %v4092 = vunpack.c.l.b16 %v2723
        %v4093 = vunpack.c.h.b16 %v2723
        %v4094 = vunpack.c.l.b16 %v2724
        %v4095 = vunpack.c.h.b16 %v2724
        %v4096 = vunpack.c.l.b16 %v2725
        %v4097 = vunpack.c.h.b16 %v2725
        %v4098 = vunpack.c.l.b16 %v2726
        %v4099 = vunpack.c.h.b16 %v2726
        %v4100 = vunpack.c.l.b16 %v2727
        %v4101 = vunpack.c.h.b16 %v2727
        %v4102 = vunpack.c.l.b16 %v2728
        %v4103 = vunpack.c.h.b16 %v2728
        %v4104 = vunpack.c.l.b16 %v2729
        %v4105 = vunpack.c.h.b16 %v2729
        %v4106 = vunpack.c.l.b16 %v2730
        %v4107 = vunpack.c.h.b16 %v2730
        %v4108 = vunpack.c.l.b16 %v2731
        %v4109 = vunpack.c.h.b16 %v2731
        %v4110 = vunpack.c.l.b16 %v2732
        %v4111 = vunpack.c.h.b16 %v2732
        %v4112 = vunpack.c.l.b16 %v2733
        %v4113 = vunpack.c.h.b16 %v2733
        %v4114 = vunpack.c.l.b16 %v2734
        %v4115 = vunpack.c.h.b16 %v2734
        %v4116 = vunpack.c.l.b16 %v2735
        %v4117 = vunpack.c.h.b16 %v2735
        %v4118 = vunpack.c.l.b16 %v2736
        %v4119 = vunpack.c.h.b16 %v2736
        %v4120 = vunpack.c.l.b16 %v2737
        %v4121 = vunpack.c.h.b16 %v2737
        %v4122 = vunpack.c.l.b16 %v2738
        %v4123 = vunpack.c.h.b16 %v2738
        %v4124 = vunpack.c.l.b16 %v2739
        %v4125 = vunpack.c.h.b16 %v2739
        %v4126 = vunpack.c.l.b16 %v2740
        %v4127 = vunpack.c.h.b16 %v2740
        %v4128 = vunpack.c.l.b16 %v2741
        %v4129 = vunpack.c.h.b16 %v2741
        %v4130 = vunpack.c.l.b16 %v2742
        %v4131 = vunpack.c.h.b16 %v2742
        %v4132 = vunpack.c.l.b16 %v2743
        %v4133 = vunpack.c.h.b16 %v2743
        %v4134 = vunpack.c.l.b16 %v2744
        %v4135 = vunpack.c.h.b16 %v2744
        %v4136 = vunpack.c.l.b16 %v2745
        %v4137 = vunpack.c.h.b16 %v2745
        %v4138 = vunpack.c.l.b16 %v2746
        %v4139 = vunpack.c.h.b16 %v2746
        %v4140 = vunpack.c.l.b16 %v2747
        %v4141 = vunpack.c.h.b16 %v2747
        %v4142 = vunpack.c.l.b16 %v2748
        %v4143 = vunpack.c.h.b16 %v2748
        %v4144 = vunpack.c.l.b16 %v2749
        %v4145 = vunpack.c.h.b16 %v2749
        %v4146 = vunpack.c.l.b16 %v2750
        %v4147 = vunpack.c.h.b16 %v2750
        %v4148 = vunpack.c.l.b16 %v2751
        %v4149 = vunpack.c.h.b16 %v2751
        %v4150 = vunpack.c.l.b16 %v2752
        %v4151 = vunpack.c.h.b16 %v2752
        %v4152 = vunpack.c.l.b16 %v2753
        %v4153 = vunpack.c.h.b16 %v2753
        %v4154 = vunpack.c.l.b16 %v2754
        %v4155 = vunpack.c.h.b16 %v2754
        %v4156 = vunpack.c.l.b16 %v2755
        %v4157 = vunpack.c.h.b16 %v2755
        %v4158 = vunpack.c.l.b16 %v2756
        %v4159 = vunpack.c.h.b16 %v2756
        %v4160 = vunpack.c.l.b16 %v2757
        %v4161 = vunpack.c.h.b16 %v2757
        %v4162 = vunpack.c.l.b16 %v2758
        %v4163 = vunpack.c.h.b16 %v2758
        %v4164 = vunpack.c.l.b16 %v2759
        %v4165 = vunpack.c.h.b16 %v2759
        %v4166 = vunpack.c.l.b16 %v2760
        %v4167 = vunpack.c.h.b16 %v2760
        %v4168 = vunpack.c.l.b16 %v2761
        %v4169 = vunpack.c.h.b16 %v2761
        %v4170 = vunpack.c.l.b16 %v2762
        %v4171 = vunpack.c.h.b16 %v2762
        %v4172 = vunpack.c.l.b16 %v2763
        %v4173 = vunpack.c.h.b16 %v2763
        %v4174 = vunpack.c.l.b16 %v2764
        %v4175 = vunpack.c.h.b16 %v2764
        %v4176 = vunpack.c.l.b16 %v2765
        %v4177 = vunpack.c.h.b16 %v2765
        %v4178 = vunpack.c.l.b16 %v2766
        %v4179 = vunpack.c.h.b16 %v2766
        %v4180 = vunpack.c.l.b16 %v2767
        %v4181 = vunpack.c.h.b16 %v2767
        %v4182 = vunpack.c.l.b16 %v2768
        %v4183 = vunpack.c.h.b16 %v2768
        %v4184 = vunpack.c.l.b16 %v2769
        %v4185 = vunpack.c.h.b16 %v2769
        %v4186 = vunpack.c.l.b16 %v2770
        %v4187 = vunpack.c.h.b16 %v2770
        %v4188 = vunpack.c.l.b16 %v2771
        %v4189 = vunpack.c.h.b16 %v2771
        %v4190 = vunpack.c.l.b16 %v2772
        %v4191 = vunpack.c.h.b16 %v2772
        %v4192 = vunpack.c.l.b16 %v2773
        %v4193 = vunpack.c.h.b16 %v2773
        %v4194 = vunpack.c.l.b16 %v2774
        %v4195 = vunpack.c.h.b16 %v2774
        %v4196 = vunpack.c.l.b16 %v2775
        %v4197 = vunpack.c.h.b16 %v2775
        %v4198 = vunpack.c.l.b16 %v2776
        %v4199 = vunpack.c.h.b16 %v2776
        %v4200 = vunpack.c.l.b16 %v2777
        %v4201 = vunpack.c.h.b16 %v2777
        %v4202 = vunpack.c.l.b16 %v2778
        %v4203 = vunpack.c.h.b16 %v2778
        %v4204 = vunpack.c.l.b16 %v2779
        %v4205 = vunpack.c.h.b16 %v2779
        %v4206 = vunpack.c.l.b16 %v2780
        %v4207 = vunpack.c.h.b16 %v2780
        %v4208 = vunpack.c.l.b16 %v2781
        %v4209 = vunpack.c.h.b16 %v2781
        %v4210 = vunpack.c.l.b16 %v2782
        %v4211 = vunpack.c.h.b16 %v2782
        %v4212 = vunpack.c.l.b16 %v2783
        %v4213 = vunpack.c.h.b16 %v2783
        %v4214 = vunpack.c.l.b16 %v2784
        %v4215 = vunpack.c.h.b16 %v2784
        %v4216 = vunpack.c.l.b16 %v2785
        %v4217 = vunpack.c.h.b16 %v2785
        %v4218 = vunpack.c.l.b16 %v2786
        %v4219 = vunpack.c.h.b16 %v2786
        %v4220 = vunpack.c.l.b16 %v2787
        %v4221 = vunpack.c.h.b16 %v2787
        %v4222 = vunpack.c.l.b16 %v2788
        %v4223 = vunpack.c.h.b16 %v2788
        %v4224 = vunpack.c.l.b16 %v2789
        %v4225 = vunpack.c.h.b16 %v2789
        %v4226 = vunpack.c.l.b16 %v2790
        %v4227 = vunpack.c.h.b16 %v2790
        %v4228 = vunpack.c.l.b16 %v2791
        %v4229 = vunpack.c.h.b16 %v2791
        %v4230 = vunpack.c.l.b16 %v2792
        %v4231 = vunpack.c.h.b16 %v2792
        %v4232 = vunpack.c.l.b16 %v2793
        %v4233 = vunpack.c.h.b16 %v2793
        %v4234 = vunpack.c.l.b16 %v2794
        %v4235 = vunpack.c.h.b16 %v2794
        %v4236 = vunpack.c.l.b16 %v2795
        %v4237 = vunpack.c.h.b16 %v2795
        %v4238 = vunpack.c.l.b16 %v2796
        %v4239 = vunpack.c.h.b16 %v2796
        %v4240 = vunpack.c.l.b16 %v2797
        %v4241 = vunpack.c.h.b16 %v2797
        %v4242 = vunpack.c.l.b16 %v2798
        %v4243 = vunpack.c.h.b16 %v2798
        %v4244 = vunpack.c.l.b16 %v2799
        %v4245 = vunpack.c.h.b16 %v2799
        %v4246 = vunpack.c.l.b16 %v2800
        %v4247 = vunpack.c.h.b16 %v2800
        %v4248 = vunpack.c.l.b16 %v2801
        %v4249 = vunpack.c.h.b16 %v2801
        %v4250 = vunpack.c.l.b16 %v2802
        %v4251 = vunpack.c.h.b16 %v2802
        %v4252 = vunpack.c.l.b16 %v2803
        %v4253 = vunpack.c.h.b16 %v2803
        %v4254 = vunpack.c.l.b16 %v2804
        %v4255 = vunpack.c.h.b16 %v2804
        %v4256 = vunpack.c.l.b16 %v2805
        %v4257 = vunpack.c.h.b16 %v2805
        %v4258 = vunpack.c.l.b16 %v2806
        %v4259 = vunpack.c.h.b16 %v2806
        %v4260 = vunpack.c.l.b16 %v2807
        %v4261 = vunpack.c.h.b16 %v2807
        %v4262 = vunpack.c.l.b16 %v2808
        %v4263 = vunpack.c.h.b16 %v2808
        %v4264 = vunpack.c.l.b16 %v2809
        %v4265 = vunpack.c.h.b16 %v2809
        %v4266 = vunpack.c.l.b16 %v2810
        %v4267 = vunpack.c.h.b16 %v2810
        %v4268 = vunpack.c.l.b16 %v2811
        %v4269 = vunpack.c.h.b16 %v2811
        %v4270 = vunpack.c.l.b16 %v2812
        %v4271 = vunpack.c.h.b16 %v2812
        %v4272 = vunpack.c.l.b16 %v2813
        %v4273 = vunpack.c.h.b16 %v2813
        %v4274 = vunpack.c.l.b16 %v2814
        %v4275 = vunpack.c.h.b16 %v2814
        %v4276 = vunpack.c.l.b16 %v2815
        %v4277 = vunpack.c.h.b16 %v2815
        %v4278 = vunpack.c.l.b16 %v2816
        %v4279 = vunpack.c.h.b16 %v2816
        %v4280 = vunpack.c.l.b16 %v2817
        %v4281 = vunpack.c.h.b16 %v2817
        %v4282 = vunpack.c.l.b16 %v2818
        %v4283 = vunpack.c.h.b16 %v2818
        %v4284 = vunpack.c.l.b16 %v2819
        %v4285 = vunpack.c.h.b16 %v2819
        %v4286 = vunpack.c.l.b16 %v2820
        %v4287 = vunpack.c.h.b16 %v2820
        %v4288 = vunpack.c.l.b16 %v2821
        %v4289 = vunpack.c.h.b16 %v2821
        %v4290 = vunpack.c.l.b16 %v2822
        %v4291 = vunpack.c.h.b16 %v2822
        %v4292 = vunpack.c.l.b16 %v2823
        %v4293 = vunpack.c.h.b16 %v2823
        %v4294 = vunpack.c.l.b16 %v2824
        %v4295 = vunpack.c.h.b16 %v2824
        %v4296 = vunpack.c.l.b16 %v2825
        %v4297 = vunpack.c.h.b16 %v2825
        %v4298 = vunpack.c.l.b16 %v2826
        %v4299 = vunpack.c.h.b16 %v2826
        %v4300 = vunpack.c.l.b16 %v2827
        %v4301 = vunpack.c.h.b16 %v2827
        %v4302 = vunpack.c.l.b16 %v2828
        %v4303 = vunpack.c.h.b16 %v2828
        %v4304 = vunpack.c.l.b16 %v2829
        %v4305 = vunpack.c.h.b16 %v2829
        %v4306 = vunpack.c.l.b16 %v2830
        %v4307 = vunpack.c.h.b16 %v2830
        %v4308 = vunpack.c.l.b16 %v2831
        %v4309 = vunpack.c.h.b16 %v2831
        %v4310 = vunpack.c.l.b16 %v2832
        %v4311 = vunpack.c.h.b16 %v2832
        %v4312 = vunpack.c.l.b16 %v2833
        %v4313 = vunpack.c.h.b16 %v2833
        %v4314 = vunpack.c.l.b16 %v2834
        %v4315 = vunpack.c.h.b16 %v2834
        %v4316 = vunpack.c.l.b16 %v2835
        %v4317 = vunpack.c.h.b16 %v2835
        %v4318 = vunpack.c.l.b16 %v2836
        %v4319 = vunpack.c.h.b16 %v2836
        %v4320 = vunpack.c.l.b16 %v2837
        %v4321 = vunpack.c.h.b16 %v2837
        %v4322 = vunpack.c.l.b16 %v2838
        %v4323 = vunpack.c.h.b16 %v2838
        %v4324 = vunpack.c.l.b16 %v2839
        %v4325 = vunpack.c.h.b16 %v2839
        %v4326 = vunpack.c.l.b16 %v2840
        %v4327 = vunpack.c.h.b16 %v2840
        %v4328 = vunpack.c.l.b16 %v2841
        %v4329 = vunpack.c.h.b16 %v2841
        %v4330 = vunpack.c.l.b16 %v2842
        %v4331 = vunpack.c.h.b16 %v2842
        %v4332 = vunpack.c.l.b16 %v2843
        %v4333 = vunpack.c.h.b16 %v2843
        %v4334 = vunpack.c.l.b16 %v2844
        %v4335 = vunpack.c.h.b16 %v2844
        %v4336 = vunpack.c.l.b16 %v2845
        %v4337 = vunpack.c.h.b16 %v2845
        %v4338 = vunpack.c.l.b16 %v2846
        %v4339 = vunpack.c.h.b16 %v2846
        %v4340 = vunpack.c.l.b16 %v2847
        %v4341 = vunpack.c.h.b16 %v2847
        %v4342 = vunpack.c.l.b16 %v2848
        %v4343 = vunpack.c.h.b16 %v2848
        %v4344 = vunpack.c.l.b16 %v2849
        %v4345 = vunpack.c.h.b16 %v2849
        %v4346 = vunpack.c.l.b16 %v2850
        %v4347 = vunpack.c.h.b16 %v2850
        %v4348 = vunpack.c.l.b16 %v2851
        %v4349 = vunpack.c.h.b16 %v2851
        %v4350 = vunpack.c.l.b16 %v2852
        %v4351 = vunpack.c.h.b16 %v2852
        %v4352 = vunpack.c.l.b16 %v2853
        %v4353 = vunpack.c.h.b16 %v2853
        %v4354 = vunpack.c.l.b16 %v2854
        %v4355 = vunpack.c.h.b16 %v2854
        %v4356 = vunpack.c.l.b16 %v2855
        %v4357 = vunpack.c.h.b16 %v2855
        %v4358 = vunpack.c.l.b16 %v2856
        %v4359 = vunpack.c.h.b16 %v2856
        %v4360 = vunpack.c.l.b16 %v2857
        %v4361 = vunpack.c.h.b16 %v2857
        %v4362 = vunpack.c.l.b16 %v2858
        %v4363 = vunpack.c.h.b16 %v2858
        %v4364 = vunpack.c.l.b16 %v2859
        %v4365 = vunpack.c.h.b16 %v2859
        %v4366 = vunpack.c.l.b16 %v2860
        %v4367 = vunpack.c.h.b16 %v2860
        %v4368 = vunpack.c.l.b16 %v2861
        %v4369 = vunpack.c.h.b16 %v2861
        %v4370 = vunpack.c.l.b16 %v2862
        %v4371 = vunpack.c.h.b16 %v2862
        %v4372 = vunpack.c.l.b16 %v2863
        %v4373 = vunpack.c.h.b16 %v2863
        %v4374 = vunpack.c.l.b16 %v2864
        %v4375 = vunpack.c.h.b16 %v2864
        %v4376 = vunpack.c.l.b16 %v2865
        %v4377 = vunpack.c.h.b16 %v2865
        %v4378 = vunpack.c.l.b16 %v2866
        %v4379 = vunpack.c.h.b16 %v2866
        %v4380 = vunpack.c.l.b16 %v2867
        %v4381 = vunpack.c.h.b16 %v2867
        %v4382 = vunpack.c.l.b16 %v2868
        %v4383 = vunpack.c.h.b16 %v2868
        %v4384 = vunpack.c.l.b16 %v2869
        %v4385 = vunpack.c.h.b16 %v2869
        %v4386 = vunpack.c.l.b16 %v2870
        %v4387 = vunpack.c.h.b16 %v2870
        %v4388 = vunpack.c.l.b16 %v2871
        %v4389 = vunpack.c.h.b16 %v2871
        %v4390 = vunpack.c.l.b16 %v2872
        %v4391 = vunpack.c.h.b16 %v2872
        %v4392 = vunpack.c.l.b16 %v2873
        %v4393 = vunpack.c.h.b16 %v2873
        %v4394 = vunpack.c.l.b16 %v2874
        %v4395 = vunpack.c.h.b16 %v2874
        %v4396 = vunpack.c.l.b16 %v2875
        %v4397 = vunpack.c.h.b16 %v2875
        %v4398 = vunpack.c.l.b16 %v2876
        %v4399 = vunpack.c.h.b16 %v2876
        %v4400 = vunpack.c.l.b16 %v2877
        %v4401 = vunpack.c.h.b16 %v2877
        %v4402 = vunpack.c.l.b16 %v2878
        %v4403 = vunpack.c.h.b16 %v2878
        %v4404 = vunpack.c.l.b16 %v2879
        %v4405 = vunpack.c.h.b16 %v2879
        %v4406 = vunpack.c.l.b16 %v2880
        %v4407 = vunpack.c.h.b16 %v2880
        %v4408 = vunpack.c.l.b16 %v2881
        %v4409 = vunpack.c.h.b16 %v2881
        %v4410 = vunpack.c.l.b16 %v2882
        %v4411 = vunpack.c.h.b16 %v2882
        %v4412 = vunpack.c.l.b16 %v2883
        %v4413 = vunpack.c.h.b16 %v2883
        %v4414 = vunpack.c.l.b16 %v2884
        %v4415 = vunpack.c.h.b16 %v2884
        %v4416 = vunpack.c.l.b16 %v2885
        %v4417 = vunpack.c.h.b16 %v2885
        %v4418 = vunpack.c.l.b16 %v2886
        %v4419 = vunpack.c.h.b16 %v2886
        %v4420 = vunpack.c.l.b16 %v2887
        %v4421 = vunpack.c.h.b16 %v2887
        %v4422 = vunpack.c.l.b16 %v2888
        %v4423 = vunpack.c.h.b16 %v2888
        %v4424 = vunpack.c.l.b16 %v2889
        %v4425 = vunpack.c.h.b16 %v2889
        %v4426 = vunpack.c.l.b16 %v2890
        %v4427 = vunpack.c.h.b16 %v2890
        %v4428 = vunpack.c.l.b16 %v2891
        %v4429 = vunpack.c.h.b16 %v2891
        %v4430 = vunpack.c.l.b16 %v2892
        %v4431 = vunpack.c.h.b16 %v2892
        %v4432 = vunpack.c.l.b16 %v2893
        %v4433 = vunpack.c.h.b16 %v2893
        %v4434 = vunpack.c.l.b16 %v2894
        %v4435 = vunpack.c.h.b16 %v2894
        %v4436 = vunpack.c.l.b16 %v2895
        %v4437 = vunpack.c.h.b16 %v2895
        %v4438 = vunpack.c.l.b16 %v2896
        %v4439 = vunpack.c.h.b16 %v2896
        %v4440 = vunpack.c.l.b16 %v2897
        %v4441 = vunpack.c.h.b16 %v2897
        %v4442 = vunpack.c.l.b16 %v2898
        %v4443 = vunpack.c.h.b16 %v2898
        %v4444 = vunpack.c.l.b16 %v2899
        %v4445 = vunpack.c.h.b16 %v2899
        %v4446 = vunpack.c.l.b16 %v2900
        %v4447 = vunpack.c.h.b16 %v2900
        %v4448 = vunpack.c.l.b16 %v2901
        %v4449 = vunpack.c.h.b16 %v2901
        %v4450 = vunpack.c.l.b16 %v2902
        %v4451 = vunpack.c.h.b16 %v2902
        %v4452 = vunpack.c.l.b16 %v2903
        %v4453 = vunpack.c.h.b16 %v2903
        %v4454 = vunpack.c.l.b16 %v2904
        %v4455 = vunpack.c.h.b16 %v2904
        %v4456 = vunpack.c.l.b16 %v2905
        %v4457 = vunpack.c.h.b16 %v2905
        %v4458 = vunpack.c.l.b16 %v2906
        %v4459 = vunpack.c.h.b16 %v2906
        %v4460 = vunpack.c.l.b16 %v2907
        %v4461 = vunpack.c.h.b16 %v2907
        %v4462 = vunpack.c.l.b16 %v2908
        %v4463 = vunpack.c.h.b16 %v2908
        %v4464 = vunpack.c.l.b16 %v2909
        %v4465 = vunpack.c.h.b16 %v2909
        %v4466 = vunpack.c.l.b16 %v2910
        %v4467 = vunpack.c.h.b16 %v2910
        %v4468 = vunpack.c.l.b16 %v2911
        %v4469 = vunpack.c.h.b16 %v2911
        %v4470 = vunpack.c.l.b16 %v2912
        %v4471 = vunpack.c.h.b16 %v2912
        %v4472 = vunpack.c.l.b16 %v2913
        %v4473 = vunpack.c.h.b16 %v2913
        %v4474 = vunpack.c.l.b16 %v2914
        %v4475 = vunpack.c.h.b16 %v2914
        %v4476 = vunpack.c.l.b16 %v2915
        %v4477 = vunpack.c.h.b16 %v2915
        %v4478 = vunpack.c.l.b16 %v2916
        %v4479 = vunpack.c.h.b16 %v2916
        %v4480 = vunpack.c.l.b16 %v2917
        %v4481 = vunpack.c.h.b16 %v2917
        %v4482 = vunpack.c.l.b16 %v2918
        %v4483 = vunpack.c.h.b16 %v2918
        %v4484 = vunpack.c.l.b16 %v2919
        %v4485 = vunpack.c.h.b16 %v2919
        %v4486 = vunpack.c.l.b16 %v2920
        %v4487 = vunpack.c.h.b16 %v2920
        %v4488 = vunpack.c.l.b16 %v2921
        %v4489 = vunpack.c.h.b16 %v2921
        %v4490 = vunpack.c.l.b16 %v2922
        %v4491 = vunpack.c.h.b16 %v2922
        %v4492 = vunpack.c.l.b16 %v2923
        %v4493 = vunpack.c.h.b16 %v2923
        %v4494 = vunpack.c.l.b16 %v2924
        %v4495 = vunpack.c.h.b16 %v2924
        %v4496 = vunpack.c.l.b16 %v2925
        %v4497 = vunpack.c.h.b16 %v2925
        %v4498 = vunpack.c.l.b16 %v2926
        %v4499 = vunpack.c.h.b16 %v2926
        %v4500 = vunpack.c.l.b16 %v2927
        %v4501 = vunpack.c.h.b16 %v2927
        %v4502 = vunpack.c.l.b16 %v2928
        %v4503 = vunpack.c.h.b16 %v2928
        %v4504 = vunpack.c.l.b16 %v2929
        %v4505 = vunpack.c.h.b16 %v2929
        %v4506 = vunpack.c.l.b16 %v2930
        %v4507 = vunpack.c.h.b16 %v2930
        %v4508 = vunpack.c.l.b16 %v2931
        %v4509 = vunpack.c.h.b16 %v2931
        %v4510 = vunpack.c.l.b16 %v2932
        %v4511 = vunpack.c.h.b16 %v2932
        %v4512 = vunpack.c.l.b16 %v2933
        %v4513 = vunpack.c.h.b16 %v2933
        %v4514 = vunpack.c.l.b16 %v2934
        %v4515 = vunpack.c.h.b16 %v2934
        %v4516 = vunpack.c.l.b16 %v2935
        %v4517 = vunpack.c.h.b16 %v2935
        %v4518 = vunpack.c.l.b16 %v2936
        %v4519 = vunpack.c.h.b16 %v2936
        %v4520 = vunpack.c.l.b16 %v2937
        %v4521 = vunpack.c.h.b16 %v2937
        %v4522 = vunpack.c.l.b16 %v2938
        %v4523 = vunpack.c.h.b16 %v2938
        %v4524 = vunpack.c.l.b16 %v2939
        %v4525 = vunpack.c.h.b16 %v2939
        %v4526 = vunpack.c.l.b16 %v2940
        %v4527 = vunpack.c.h.b16 %v2940
        %v4528 = vunpack.c.l.b16 %v2941
        %v4529 = vunpack.c.h.b16 %v2941
        %v4530 = vunpack.c.l.b16 %v2942
        %v4531 = vunpack.c.h.b16 %v2942
        %v4532 = vunpack.c.l.b16 %v2943
        %v4533 = vunpack.c.h.b16 %v2943
        %v4534 = vunpack.c.l.b16 %v2944
        %v4535 = vunpack.c.h.b16 %v2944
        %v4536 = vunpack.c.l.b16 %v2945
        %v4537 = vunpack.c.h.b16 %v2945
        %v4538 = vunpack.c.l.b16 %v2946
        %v4539 = vunpack.c.h.b16 %v2946
        %v4540 = vunpack.c.l.b16 %v2947
        %v4541 = vunpack.c.h.b16 %v2947
        %v4542 = vunpack.c.l.b16 %v2948
        %v4543 = vunpack.c.h.b16 %v2948
        %v4544 = vunpack.c.l.b16 %v2949
        %v4545 = vunpack.c.h.b16 %v2949
        %v4546 = vunpack.c.l.b16 %v2950
        %v4547 = vunpack.c.h.b16 %v2950
        %v4548 = vunpack.c.l.b16 %v2951
        %v4549 = vunpack.c.h.b16 %v2951
        %v4550 = vunpack.c.l.b16 %v2952
        %v4551 = vunpack.c.h.b16 %v2952
        %v4552 = vunpack.c.l.b16 %v2953
        %v4553 = vunpack.c.h.b16 %v2953
        %v4554 = vunpack.c.l.b16 %v2954
        %v4555 = vunpack.c.h.b16 %v2954
        %v4556 = vunpack.c.l.b16 %v2955
        %v4557 = vunpack.c.h.b16 %v2955
        %v4558 = vunpack.c.l.b16 %v2956
        %v4559 = vunpack.c.h.b16 %v2956
        %v4560 = vunpack.c.l.b16 %v2957
        %v4561 = vunpack.c.h.b16 %v2957
        %v4562 = vunpack.c.l.b16 %v2958
        %v4563 = vunpack.c.h.b16 %v2958
        %v4564 = vunpack.c.l.b16 %v2959
        %v4565 = vunpack.c.h.b16 %v2959
        %v4566 = vunpack.c.l.b16 %v2960
        %v4567 = vunpack.c.h.b16 %v2960
        %v4568 = vunpack.c.l.b16 %v2961
        %v4569 = vunpack.c.h.b16 %v2961
        %v4570 = vunpack.c.l.b16 %v2962
        %v4571 = vunpack.c.h.b16 %v2962
        %v4572 = vunpack.c.l.b16 %v2963
        %v4573 = vunpack.c.h.b16 %v2963
        %v4574 = vunpack.c.l.b16 %v2964
        %v4575 = vunpack.c.h.b16 %v2964
        %v4576 = vunpack.c.l.b16 %v2965
        %v4577 = vunpack.c.h.b16 %v2965
        %v4578 = vunpack.c.l.b16 %v2966
        %v4579 = vunpack.c.h.b16 %v2966
        %v4580 = vunpack.c.l.b16 %v2967
        %v4581 = vunpack.c.h.b16 %v2967
        %v4582 = vpack.c.b16 %v3562, %v3558
        %v4583 = vpack.c.b16 %v3563, %v3559
        %v4584 = vpack.c.b16 %v3564, %v3560
        %v4585 = vpack.c.b16 %v3565, %v3561
        %v4586 = vpack.c.b16 %v3570, %v3566
        %v4587 = vpack.c.b16 %v3571, %v3567
        %v4588 = vpack.c.b16 %v3572, %v3568
        %v4589 = vpack.c.b16 %v3573, %v3569
        %v4590 = vpack.c.b16 %v3578, %v3574
        %v4591 = vpack.c.b16 %v3579, %v3575
        %v4592 = vpack.c.b16 %v3580, %v3576
        %v4593 = vpack.c.b16 %v3581, %v3577
        %v4594 = vpack.c.b16 %v3586, %v3582
        %v4595 = vpack.c.b16 %v3587, %v3583
        %v4596 = vpack.c.b16 %v3588, %v3584
        %v4597 = vpack.c.b16 %v3589, %v3585
        %v4598 = vpack.c.b16 %v3594, %v3590
        %v4599 = vpack.c.b16 %v3595, %v3591
        %v4600 = vpack.c.b16 %v3596, %v3592
        %v4601 = vpack.c.b16 %v3597, %v3593
        %v4602 = vpack.c.b16 %v3602, %v3598
        %v4603 = vpack.c.b16 %v3603, %v3599
        %v4604 = vpack.c.b16 %v3604, %v3600
        %v4605 = vpack.c.b16 %v3605, %v3601
        %v4606 = vpack.c.b16 %v3610, %v3606
        %v4607 = vpack.c.b16 %v3611, %v3607
        %v4608 = vpack.c.b16 %v3612, %v3608
        %v4609 = vpack.c.b16 %v3613, %v3609
        %v4610 = vpack.c.b16 %v3618, %v3614
        %v4611 = vpack.c.b16 %v3619, %v3615
        %v4612 = vpack.c.b16 %v3620, %v3616
        %v4613 = vpack.c.b16 %v3621, %v3617
        %v4614 = vpack.c.b16 %v3626, %v3622
        %v4615 = vpack.c.b16 %v3627, %v3623
        %v4616 = vpack.c.b16 %v3628, %v3624
        %v4617 = vpack.c.b16 %v3629, %v3625
        %v4618 = vpack.c.b16 %v3634, %v3630
        %v4619 = vpack.c.b16 %v3635, %v3631
        %v4620 = vpack.c.b16 %v3636, %v3632
        %v4621 = vpack.c.b16 %v3637, %v3633
        %v4622 = vpack.c.b16 %v3642, %v3638
        %v4623 = vpack.c.b16 %v3643, %v3639
        %v4624 = vpack.c.b16 %v3644, %v3640
        %v4625 = vpack.c.b16 %v3645, %v3641
        %v4626 = vpack.c.b16 %v3650, %v3646
        %v4627 = vpack.c.b16 %v3651, %v3647
        %v4628 = vpack.c.b16 %v3652, %v3648
        %v4629 = vpack.c.b16 %v3653, %v3649
        %v4630 = vpack.c.b16 %v3658, %v3654
        %v4631 = vpack.c.b16 %v3659, %v3655
        %v4632 = vpack.c.b16 %v3660, %v3656
        %v4633 = vpack.c.b16 %v3661, %v3657
        %v4634 = vpack.c.b16 %v3666, %v3662
        %v4635 = vpack.c.b16 %v3667, %v3663
        %v4636 = vpack.c.b16 %v3668, %v3664
        %v4637 = vpack.c.b16 %v3669, %v3665
        %v4638 = vpack.c.b16 %v3674, %v3670
        %v4639 = vpack.c.b16 %v3675, %v3671
        %v4640 = vpack.c.b16 %v3676, %v3672
        %v4641 = vpack.c.b16 %v3677, %v3673
        %v4642 = vpack.c.b16 %v3682, %v3678
        %v4643 = vpack.c.b16 %v3683, %v3679
        %v4644 = vpack.c.b16 %v3684, %v3680
        %v4645 = vpack.c.b16 %v3685, %v3681
        %v4646 = vpack.c.b16 %v3690, %v3686
        %v4647 = vpack.c.b16 %v3691, %v3687
        %v4648 = vpack.c.b16 %v3692, %v3688
        %v4649 = vpack.c.b16 %v3693, %v3689
        %v4650 = vpack.c.b16 %v3698, %v3694
        %v4651 = vpack.c.b16 %v3699, %v3695
        %v4652 = vpack.c.b16 %v3700, %v3696
        %v4653 = vpack.c.b16 %v3701, %v3697
        %v4654 = vpack.c.b16 %v3706, %v3702
        %v4655 = vpack.c.b16 %v3707, %v3703
        %v4656 = vpack.c.b16 %v3708, %v3704
        %v4657 = vpack.c.b16 %v3709, %v3705
        %v4658 = vpack.c.b16 %v3714, %v3710
        %v4659 = vpack.c.b16 %v3715, %v3711
        %v4660 = vpack.c.b16 %v3716, %v3712
        %v4661 = vpack.c.b16 %v3717, %v3713
        %v4662 = vpack.c.b16 %v3722, %v3718
        %v4663 = vpack.c.b16 %v3723, %v3719
        %v4664 = vpack.c.b16 %v3724, %v3720
        %v4665 = vpack.c.b16 %v3725, %v3721
        %v4666 = vpack.c.b16 %v3730, %v3726
        %v4667 = vpack.c.b16 %v3731, %v3727
        %v4668 = vpack.c.b16 %v3732, %v3728
        %v4669 = vpack.c.b16 %v3733, %v3729
        %v4670 = vpack.c.b16 %v3738, %v3734
        %v4671 = vpack.c.b16 %v3739, %v3735
        %v4672 = vpack.c.b16 %v3740, %v3736
        %v4673 = vpack.c.b16 %v3741, %v3737
        %v4674 = vpack.c.b16 %v3746, %v3742
        %v4675 = vpack.c.b16 %v3747, %v3743
        %v4676 = vpack.c.b16 %v3748, %v3744
        %v4677 = vpack.c.b16 %v3749, %v3745
        %v4678 = vpack.c.b16 %v3754, %v3750
        %v4679 = vpack.c.b16 %v3755, %v3751
        %v4680 = vpack.c.b16 %v3756, %v3752
        %v4681 = vpack.c.b16 %v3757, %v3753
        %v4682 = vpack.c.b16 %v3762, %v3758
        %v4683 = vpack.c.b16 %v3763, %v3759
        %v4684 = vpack.c.b16 %v3764, %v3760
        %v4685 = vpack.c.b16 %v3765, %v3761
        %v4686 = vpack.c.b16 %v3770, %v3766
        %v4687 = vpack.c.b16 %v3771, %v3767
        %v4688 = vpack.c.b16 %v3772, %v3768
        %v4689 = vpack.c.b16 %v3773, %v3769
        %v4690 = vpack.c.b16 %v3778, %v3774
        %v4691 = vpack.c.b16 %v3779, %v3775
        %v4692 = vpack.c.b16 %v3780, %v3776
        %v4693 = vpack.c.b16 %v3781, %v3777
        %v4694 = vpack.c.b16 %v3786, %v3782
        %v4695 = vpack.c.b16 %v3787, %v3783
        %v4696 = vpack.c.b16 %v3788, %v3784
        %v4697 = vpack.c.b16 %v3789, %v3785
        %v4698 = vpack.c.b16 %v3794, %v3790
        %v4699 = vpack.c.b16 %v3795, %v3791
        %v4700 = vpack.c.b16 %v3796, %v3792
        %v4701 = vpack.c.b16 %v3797, %v3793
        %v4702 = vpack.c.b16 %v3802, %v3798
        %v4703 = vpack.c.b16 %v3803, %v3799
        %v4704 = vpack.c.b16 %v3804, %v3800
        %v4705 = vpack.c.b16 %v3805, %v3801
        %v4706 = vpack.c.b16 %v3810, %v3806
        %v4707 = vpack.c.b16 %v3811, %v3807
        %v4708 = vpack.c.b16 %v3812, %v3808
        %v4709 = vpack.c.b16 %v3813, %v3809
        %v4710 = vpack.c.b16 %v3818, %v3814
        %v4711 = vpack.c.b16 %v3819, %v3815
        %v4712 = vpack.c.b16 %v3820, %v3816
        %v4713 = vpack.c.b16 %v3821, %v3817
        %v4714 = vpack.c.b16 %v3826, %v3822
        %v4715 = vpack.c.b16 %v3827, %v3823
        %v4716 = vpack.c.b16 %v3828, %v3824
        %v4717 = vpack.c.b16 %v3829, %v3825
        %v4718 = vpack.c.b16 %v3834, %v3830
        %v4719 = vpack.c.b16 %v3835, %v3831
        %v4720 = vpack.c.b16 %v3836, %v3832
        %v4721 = vpack.c.b16 %v3837, %v3833
        %v4722 = vpack.c.b16 %v3842, %v3838
        %v4723 = vpack.c.b16 %v3843, %v3839
        %v4724 = vpack.c.b16 %v3844, %v3840
        %v4725 = vpack.c.b16 %v3845, %v3841
        %v4726 = vpack.c.b16 %v3850, %v3846
        %v4727 = vpack.c.b16 %v3851, %v3847
        %v4728 = vpack.c.b16 %v3852, %v3848
        %v4729 = vpack.c.b16 %v3853, %v3849
        %v4730 = vpack.c.b16 %v3858, %v3854
        %v4731 = vpack.c.b16 %v3859, %v3855
        %v4732 = vpack.c.b16 %v3860, %v3856
        %v4733 = vpack.c.b16 %v3861, %v3857
        %v4734 = vpack.c.b16 %v3866, %v3862
        %v4735 = vpack.c.b16 %v3867, %v3863
        %v4736 = vpack.c.b16 %v3868, %v3864
        %v4737 = vpack.c.b16 %v3869, %v3865
        %v4738 = vpack.c.b16 %v3874, %v3870
        %v4739 = vpack.c.b16 %v3875, %v3871
        %v4740 = vpack.c.b16 %v3876, %v3872
        %v4741 = vpack.c.b16 %v3877, %v3873
        %v4742 = vpack.c.b16 %v3882, %v3878
        %v4743 = vpack.c.b16 %v3883, %v3879
        %v4744 = vpack.c.b16 %v3884, %v3880
        %v4745 = vpack.c.b16 %v3885, %v3881
        %v4746 = vpack.c.b16 %v3890, %v3886
        %v4747 = vpack.c.b16 %v3891, %v3887
        %v4748 = vpack.c.b16 %v3892, %v3888
        %v4749 = vpack.c.b16 %v3893, %v3889
        %v4750 = vpack.c.b16 %v3898, %v3894
        %v4751 = vpack.c.b16 %v3899, %v3895
        %v4752 = vpack.c.b16 %v3900, %v3896
        %v4753 = vpack.c.b16 %v3901, %v3897
        %v4754 = vpack.c.b16 %v3906, %v3902
        %v4755 = vpack.c.b16 %v3907, %v3903
        %v4756 = vpack.c.b16 %v3908, %v3904
        %v4757 = vpack.c.b16 %v3909, %v3905
        %v4758 = vpack.c.b16 %v3914, %v3910
        %v4759 = vpack.c.b16 %v3915, %v3911
        %v4760 = vpack.c.b16 %v3916, %v3912
        %v4761 = vpack.c.b16 %v3917, %v3913
        %v4762 = vpack.c.b16 %v3922, %v3918
        %v4763 = vpack.c.b16 %v3923, %v3919
        %v4764 = vpack.c.b16 %v3924, %v3920
        %v4765 = vpack.c.b16 %v3925, %v3921
        %v4766 = vpack.c.b16 %v3930, %v3926
        %v4767 = vpack.c.b16 %v3931, %v3927
        %v4768 = vpack.c.b16 %v3932, %v3928
        %v4769 = vpack.c.b16 %v3933, %v3929
        %v4770 = vpack.c.b16 %v3938, %v3934
        %v4771 = vpack.c.b16 %v3939, %v3935
        %v4772 = vpack.c.b16 %v3940, %v3936
        %v4773 = vpack.c.b16 %v3941, %v3937
        %v4774 = vpack.c.b16 %v3946, %v3942
        %v4775 = vpack.c.b16 %v3947, %v3943
        %v4776 = vpack.c.b16 %v3948, %v3944
        %v4777 = vpack.c.b16 %v3949, %v3945
        %v4778 = vpack.c.b16 %v3954, %v3950
        %v4779 = vpack.c.b16 %v3955, %v3951
        %v4780 = vpack.c.b16 %v3956, %v3952
        %v4781 = vpack.c.b16 %v3957, %v3953
        %v4782 = vpack.c.b16 %v3962, %v3958
        %v4783 = vpack.c.b16 %v3963, %v3959
        %v4784 = vpack.c.b16 %v3964, %v3960
        %v4785 = vpack.c.b16 %v3965, %v3961
        %v4786 = vpack.c.b16 %v3970, %v3966
        %v4787 = vpack.c.b16 %v3971, %v3967
        %v4788 = vpack.c.b16 %v3972, %v3968
        %v4789 = vpack.c.b16 %v3973, %v3969
        %v4790 = vpack.c.b16 %v3978, %v3974
        %v4791 = vpack.c.b16 %v3979, %v3975
        %v4792 = vpack.c.b16 %v3980, %v3976
        %v4793 = vpack.c.b16 %v3981, %v3977
        %v4794 = vpack.c.b16 %v3986, %v3982
        %v4795 = vpack.c.b16 %v3987, %v3983
        %v4796 = vpack.c.b16 %v3988, %v3984
        %v4797 = vpack.c.b16 %v3989, %v3985
        %v4798 = vpack.c.b16 %v3994, %v3990
        %v4799 = vpack.c.b16 %v3995, %v3991
        %v4800 = vpack.c.b16 %v3996, %v3992
        %v4801 = vpack.c.b16 %v3997, %v3993
        %v4802 = vpack.c.b16 %v4002, %v3998
        %v4803 = vpack.c.b16 %v4003, %v3999
        %v4804 = vpack.c.b16 %v4004, %v4000
        %v4805 = vpack.c.b16 %v4005, %v4001
        %v4806 = vpack.c.b16 %v4010, %v4006
        %v4807 = vpack.c.b16 %v4011, %v4007
        %v4808 = vpack.c.b16 %v4012, %v4008
        %v4809 = vpack.c.b16 %v4013, %v4009
        %v4810 = vpack.c.b16 %v4018, %v4014
        %v4811 = vpack.c.b16 %v4019, %v4015
        %v4812 = vpack.c.b16 %v4020, %v4016
        %v4813 = vpack.c.b16 %v4021, %v4017
        %v4814 = vpack.c.b16 %v4026, %v4022
        %v4815 = vpack.c.b16 %v4027, %v4023
        %v4816 = vpack.c.b16 %v4028, %v4024
        %v4817 = vpack.c.b16 %v4029, %v4025
        %v4818 = vpack.c.b16 %v4034, %v4030
        %v4819 = vpack.c.b16 %v4035, %v4031
        %v4820 = vpack.c.b16 %v4036, %v4032
        %v4821 = vpack.c.b16 %v4037, %v4033
        %v4822 = vpack.c.b16 %v4042, %v4038
        %v4823 = vpack.c.b16 %v4043, %v4039
        %v4824 = vpack.c.b16 %v4044, %v4040
        %v4825 = vpack.c.b16 %v4045, %v4041
        %v4826 = vpack.c.b16 %v4050, %v4046
        %v4827 = vpack.c.b16 %v4051, %v4047
        %v4828 = vpack.c.b16 %v4052, %v4048
        %v4829 = vpack.c.b16 %v4053, %v4049
        %v4830 = vpack.c.b16 %v4058, %v4054
        %v4831 = vpack.c.b16 %v4059, %v4055
        %v4832 = vpack.c.b16 %v4060, %v4056
        %v4833 = vpack.c.b16 %v4061, %v4057
        %v4834 = vpack.c.b16 %v4066, %v4062
        %v4835 = vpack.c.b16 %v4067, %v4063
        %v4836 = vpack.c.b16 %v4068, %v4064
        %v4837 = vpack.c.b16 %v4069, %v4065
        %v4838 = vpack.c.b16 %v4074, %v4070
        %v4839 = vpack.c.b16 %v4075, %v4071
        %v4840 = vpack.c.b16 %v4076, %v4072
        %v4841 = vpack.c.b16 %v4077, %v4073
        %v4842 = vpack.c.b16 %v4082, %v4078
        %v4843 = vpack.c.b16 %v4083, %v4079
        %v4844 = vpack.c.b16 %v4084, %v4080
        %v4845 = vpack.c.b16 %v4085, %v4081
        %v4846 = vpack.c.b16 %v4090, %v4086
        %v4847 = vpack.c.b16 %v4091, %v4087
        %v4848 = vpack.c.b16 %v4092, %v4088
        %v4849 = vpack.c.b16 %v4093, %v4089
        %v4850 = vpack.c.b16 %v4098, %v4094
        %v4851 = vpack.c.b16 %v4099, %v4095
        %v4852 = vpack.c.b16 %v4100, %v4096
        %v4853 = vpack.c.b16 %v4101, %v4097
        %v4854 = vpack.c.b16 %v4106, %v4102
        %v4855 = vpack.c.b16 %v4107, %v4103
        %v4856 = vpack.c.b16 %v4108, %v4104
        %v4857 = vpack.c.b16 %v4109, %v4105
        %v4858 = vpack.c.b16 %v4114, %v4110
        %v4859 = vpack.c.b16 %v4115, %v4111
        %v4860 = vpack.c.b16 %v4116, %v4112
        %v4861 = vpack.c.b16 %v4117, %v4113
        %v4862 = vpack.c.b16 %v4122, %v4118
        %v4863 = vpack.c.b16 %v4123, %v4119
        %v4864 = vpack.c.b16 %v4124, %v4120
        %v4865 = vpack.c.b16 %v4125, %v4121
        %v4866 = vpack.c.b16 %v4130, %v4126
        %v4867 = vpack.c.b16 %v4131, %v4127
        %v4868 = vpack.c.b16 %v4132, %v4128
        %v4869 = vpack.c.b16 %v4133, %v4129
        %v4870 = vpack.c.b16 %v4138, %v4134
        %v4871 = vpack.c.b16 %v4139, %v4135
        %v4872 = vpack.c.b16 %v4140, %v4136
        %v4873 = vpack.c.b16 %v4141, %v4137
        %v4874 = vpack.c.b16 %v4146, %v4142
        %v4875 = vpack.c.b16 %v4147, %v4143
        %v4876 = vpack.c.b16 %v4148, %v4144
        %v4877 = vpack.c.b16 %v4149, %v4145
        %v4878 = vpack.c.b16 %v4154, %v4150
        %v4879 = vpack.c.b16 %v4155, %v4151
        %v4880 = vpack.c.b16 %v4156, %v4152
        %v4881 = vpack.c.b16 %v4157, %v4153
        %v4882 = vpack.c.b16 %v4162, %v4158
        %v4883 = vpack.c.b16 %v4163, %v4159
        %v4884 = vpack.c.b16 %v4164, %v4160
        %v4885 = vpack.c.b16 %v4165, %v4161
        %v4886 = vpack.c.b16 %v4170, %v4166
        %v4887 = vpack.c.b16 %v4171, %v4167
        %v4888 = vpack.c.b16 %v4172, %v4168
        %v4889 = vpack.c.b16 %v4173, %v4169
        %v4890 = vpack.c.b16 %v4178, %v4174
        %v4891 = vpack.c.b16 %v4179, %v4175
        %v4892 = vpack.c.b16 %v4180, %v4176
        %v4893 = vpack.c.b16 %v4181, %v4177
        %v4894 = vpack.c.b16 %v4186, %v4182
        %v4895 = vpack.c.b16 %v4187, %v4183
        %v4896 = vpack.c.b16 %v4188, %v4184
        %v4897 = vpack.c.b16 %v4189, %v4185
        %v4898 = vpack.c.b16 %v4194, %v4190
        %v4899 = vpack.c.b16 %v4195, %v4191
        %v4900 = vpack.c.b16 %v4196, %v4192
        %v4901 = vpack.c.b16 %v4197, %v4193
        %v4902 = vpack.c.b16 %v4202, %v4198
        %v4903 = vpack.c.b16 %v4203, %v4199
        %v4904 = vpack.c.b16 %v4204, %v4200
        %v4905 = vpack.c.b16 %v4205, %v4201
        %v4906 = vpack.c.b16 %v4210, %v4206
        %v4907 = vpack.c.b16 %v4211, %v4207
        %v4908 = vpack.c.b16 %v4212, %v4208
        %v4909 = vpack.c.b16 %v4213, %v4209
        %v4910 = vpack.c.b16 %v4218, %v4214
        %v4911 = vpack.c.b16 %v4219, %v4215
        %v4912 = vpack.c.b16 %v4220, %v4216
        %v4913 = vpack.c.b16 %v4221, %v4217
        %v4914 = vpack.c.b16 %v4226, %v4222
        %v4915 = vpack.c.b16 %v4227, %v4223
        %v4916 = vpack.c.b16 %v4228, %v4224
        %v4917 = vpack.c.b16 %v4229, %v4225
        %v4918 = vpack.c.b16 %v4234, %v4230
        %v4919 = vpack.c.b16 %v4235, %v4231
        %v4920 = vpack.c.b16 %v4236, %v4232
        %v4921 = vpack.c.b16 %v4237, %v4233
        %v4922 = vpack.c.b16 %v4242, %v4238
        %v4923 = vpack.c.b16 %v4243, %v4239
        %v4924 = vpack.c.b16 %v4244, %v4240
        %v4925 = vpack.c.b16 %v4245, %v4241
        %v4926 = vpack.c.b16 %v4250, %v4246
        %v4927 = vpack.c.b16 %v4251, %v4247
        %v4928 = vpack.c.b16 %v4252, %v4248
        %v4929 = vpack.c.b16 %v4253, %v4249
        %v4930 = vpack.c.b16 %v4258, %v4254
        %v4931 = vpack.c.b16 %v4259, %v4255
        %v4932 = vpack.c.b16 %v4260, %v4256
        %v4933 = vpack.c.b16 %v4261, %v4257
        %v4934 = vpack.c.b16 %v4266, %v4262
        %v4935 = vpack.c.b16 %v4267, %v4263
        %v4936 = vpack.c.b16 %v4268, %v4264
        %v4937 = vpack.c.b16 %v4269, %v4265
        %v4938 = vpack.c.b16 %v4274, %v4270
        %v4939 = vpack.c.b16 %v4275, %v4271
        %v4940 = vpack.c.b16 %v4276, %v4272
        %v4941 = vpack.c.b16 %v4277, %v4273
        %v4942 = vpack.c.b16 %v4282, %v4278
        %v4943 = vpack.c.b16 %v4283, %v4279
        %v4944 = vpack.c.b16 %v4284, %v4280
        %v4945 = vpack.c.b16 %v4285, %v4281
        %v4946 = vpack.c.b16 %v4290, %v4286
        %v4947 = vpack.c.b16 %v4291, %v4287
        %v4948 = vpack.c.b16 %v4292, %v4288
        %v4949 = vpack.c.b16 %v4293, %v4289
        %v4950 = vpack.c.b16 %v4298, %v4294
        %v4951 = vpack.c.b16 %v4299, %v4295
        %v4952 = vpack.c.b16 %v4300, %v4296
        %v4953 = vpack.c.b16 %v4301, %v4297
        %v4954 = vpack.c.b16 %v4306, %v4302
        %v4955 = vpack.c.b16 %v4307, %v4303
        %v4956 = vpack.c.b16 %v4308, %v4304
        %v4957 = vpack.c.b16 %v4309, %v4305
        %v4958 = vpack.c.b16 %v4314, %v4310
        %v4959 = vpack.c.b16 %v4315, %v4311
        %v4960 = vpack.c.b16 %v4316, %v4312
        %v4961 = vpack.c.b16 %v4317, %v4313
        %v4962 = vpack.c.b16 %v4322, %v4318
        %v4963 = vpack.c.b16 %v4323, %v4319
        %v4964 = vpack.c.b16 %v4324, %v4320
        %v4965 = vpack.c.b16 %v4325, %v4321
        %v4966 = vpack.c.b16 %v4330, %v4326
        %v4967 = vpack.c.b16 %v4331, %v4327
        %v4968 = vpack.c.b16 %v4332, %v4328
        %v4969 = vpack.c.b16 %v4333, %v4329
        %v4970 = vpack.c.b16 %v4338, %v4334
        %v4971 = vpack.c.b16 %v4339, %v4335
        %v4972 = vpack.c.b16 %v4340, %v4336
        %v4973 = vpack.c.b16 %v4341, %v4337
        %v4974 = vpack.c.b16 %v4346, %v4342
        %v4975 = vpack.c.b16 %v4347, %v4343
        %v4976 = vpack.c.b16 %v4348, %v4344
        %v4977 = vpack.c.b16 %v4349, %v4345
        %v4978 = vpack.c.b16 %v4354, %v4350
        %v4979 = vpack.c.b16 %v4355, %v4351
        %v4980 = vpack.c.b16 %v4356, %v4352
        %v4981 = vpack.c.b16 %v4357, %v4353
        %v4982 = vpack.c.b16 %v4362, %v4358
        %v4983 = vpack.c.b16 %v4363, %v4359
        %v4984 = vpack.c.b16 %v4364, %v4360
        %v4985 = vpack.c.b16 %v4365, %v4361
        %v4986 = vpack.c.b16 %v4370, %v4366
        %v4987 = vpack.c.b16 %v4371, %v4367
        %v4988 = vpack.c.b16 %v4372, %v4368
        %v4989 = vpack.c.b16 %v4373, %v4369
        %v4990 = vpack.c.b16 %v4378, %v4374
        %v4991 = vpack.c.b16 %v4379, %v4375
        %v4992 = vpack.c.b16 %v4380, %v4376
        %v4993 = vpack.c.b16 %v4381, %v4377
        %v4994 = vpack.c.b16 %v4386, %v4382
        %v4995 = vpack.c.b16 %v4387, %v4383
        %v4996 = vpack.c.b16 %v4388, %v4384
        %v4997 = vpack.c.b16 %v4389, %v4385
        %v4998 = vpack.c.b16 %v4394, %v4390
        %v4999 = vpack.c.b16 %v4395, %v4391
        %v5000 = vpack.c.b16 %v4396, %v4392
        %v5001 = vpack.c.b16 %v4397, %v4393
        %v5002 = vpack.c.b16 %v4402, %v4398
        %v5003 = vpack.c.b16 %v4403, %v4399
        %v5004 = vpack.c.b16 %v4404, %v4400
        %v5005 = vpack.c.b16 %v4405, %v4401
        %v5006 = vpack.c.b16 %v4410, %v4406
        %v5007 = vpack.c.b16 %v4411, %v4407
        %v5008 = vpack.c.b16 %v4412, %v4408
        %v5009 = vpack.c.b16 %v4413, %v4409
        %v5010 = vpack.c.b16 %v4418, %v4414
        %v5011 = vpack.c.b16 %v4419, %v4415
        %v5012 = vpack.c.b16 %v4420, %v4416
        %v5013 = vpack.c.b16 %v4421, %v4417
        %v5014 = vpack.c.b16 %v4426, %v4422
        %v5015 = vpack.c.b16 %v4427, %v4423
        %v5016 = vpack.c.b16 %v4428, %v4424
        %v5017 = vpack.c.b16 %v4429, %v4425
        %v5018 = vpack.c.b16 %v4434, %v4430
        %v5019 = vpack.c.b16 %v4435, %v4431
        %v5020 = vpack.c.b16 %v4436, %v4432
        %v5021 = vpack.c.b16 %v4437, %v4433
        %v5022 = vpack.c.b16 %v4442, %v4438
        %v5023 = vpack.c.b16 %v4443, %v4439
        %v5024 = vpack.c.b16 %v4444, %v4440
        %v5025 = vpack.c.b16 %v4445, %v4441
        %v5026 = vpack.c.b16 %v4450, %v4446
        %v5027 = vpack.c.b16 %v4451, %v4447
        %v5028 = vpack.c.b16 %v4452, %v4448
        %v5029 = vpack.c.b16 %v4453, %v4449
        %v5030 = vpack.c.b16 %v4458, %v4454
        %v5031 = vpack.c.b16 %v4459, %v4455
        %v5032 = vpack.c.b16 %v4460, %v4456
        %v5033 = vpack.c.b16 %v4461, %v4457
        %v5034 = vpack.c.b16 %v4466, %v4462
        %v5035 = vpack.c.b16 %v4467, %v4463
        %v5036 = vpack.c.b16 %v4468, %v4464
        %v5037 = vpack.c.b16 %v4469, %v4465
        %v5038 = vpack.c.b16 %v4474, %v4470
        %v5039 = vpack.c.b16 %v4475, %v4471
        %v5040 = vpack.c.b16 %v4476, %v4472
        %v5041 = vpack.c.b16 %v4477, %v4473
        %v5042 = vpack.c.b16 %v4482, %v4478
        %v5043 = vpack.c.b16 %v4483, %v4479
        %v5044 = vpack.c.b16 %v4484, %v4480
        %v5045 = vpack.c.b16 %v4485, %v4481
        %v5046 = vpack.c.b16 %v4490, %v4486
        %v5047 = vpack.c.b16 %v4491, %v4487
        %v5048 = vpack.c.b16 %v4492, %v4488
        %v5049 = vpack.c.b16 %v4493, %v4489
        %v5050 = vpack.c.b16 %v4498, %v4494
        %v5051 = vpack.c.b16 %v4499, %v4495
        %v5052 = vpack.c.b16 %v4500, %v4496
        %v5053 = vpack.c.b16 %v4501, %v4497
        %v5054 = vpack.c.b16 %v4506, %v4502
        %v5055 = vpack.c.b16 %v4507, %v4503
        %v5056 = vpack.c.b16 %v4508, %v4504
        %v5057 = vpack.c.b16 %v4509, %v4505
        %v5058 = vpack.c.b16 %v4514, %v4510
        %v5059 = vpack.c.b16 %v4515, %v4511
        %v5060 = vpack.c.b16 %v4516, %v4512
        %v5061 = vpack.c.b16 %v4517, %v4513
        %v5062 = vpack.c.b16 %v4522, %v4518
        %v5063 = vpack.c.b16 %v4523, %v4519
        %v5064 = vpack.c.b16 %v4524, %v4520
        %v5065 = vpack.c.b16 %v4525, %v4521
        %v5066 = vpack.c.b16 %v4530, %v4526
        %v5067 = vpack.c.b16 %v4531, %v4527
        %v5068 = vpack.c.b16 %v4532, %v4528
        %v5069 = vpack.c.b16 %v4533, %v4529
        %v5070 = vpack.c.b16 %v4538, %v4534
        %v5071 = vpack.c.b16 %v4539, %v4535
        %v5072 = vpack.c.b16 %v4540, %v4536
        %v5073 = vpack.c.b16 %v4541, %v4537
        %v5074 = vpack.c.b16 %v4546, %v4542
        %v5075 = vpack.c.b16 %v4547, %v4543
        %v5076 = vpack.c.b16 %v4548, %v4544
        %v5077 = vpack.c.b16 %v4549, %v4545
        %v5078 = vpack.c.b16 %v4554, %v4550
        %v5079 = vpack.c.b16 %v4555, %v4551
        %v5080 = vpack.c.b16 %v4556, %v4552
        %v5081 = vpack.c.b16 %v4557, %v4553
        %v5082 = vpack.c.b16 %v4562, %v4558
        %v5083 = vpack.c.b16 %v4563, %v4559
        %v5084 = vpack.c.b16 %v4564, %v4560
        %v5085 = vpack.c.b16 %v4565, %v4561
        %v5086 = vpack.c.b16 %v4570, %v4566
        %v5087 = vpack.c.b16 %v4571, %v4567
        %v5088 = vpack.c.b16 %v4572, %v4568
        %v5089 = vpack.c.b16 %v4573, %v4569
        %v5090 = vpack.c.b16 %v4578, %v4574
        %v5091 = vpack.c.b16 %v4579, %v4575
        %v5092 = vpack.c.b16 %v4580, %v4576
        %v5093 = vpack.c.b16 %v4581, %v4577
        %5606 = vmatprep.subr.bf16.mxu0 %v4583
        %5607 = vmatpush1.bf16.msra.mxu0 %v4582
        %5608 = vmatprep.subr.bf16.mxu0 %v4587
        %5609 = vmatpush1.bf16.msra.mxu0 %v4586
        %5610 = vmatprep.subr.bf16.mxu0 %v4591
        %5611 = vmatpush1.bf16.msra.mxu0 %v4590
        %5612 = vmatprep.subr.bf16.mxu0 %v4595
        %5613 = vmatpush1.bf16.msra.mxu0 %v4594
        %5614 = vmatprep.subr.bf16.mxu0 %v4599
        %5615 = vmatpush1.bf16.msra.mxu0 %v4598
        %5616 = vmatprep.subr.bf16.mxu0 %v4603
        %5617 = vmatpush1.bf16.msra.mxu0 %v4602
        %5618 = vmatprep.subr.bf16.mxu0 %v4607
        %5619 = vmatpush1.bf16.msra.mxu0 %v4606
        %5620 = vmatprep.subr.bf16.mxu0 %v4611
        %5621 = vmatpush1.bf16.msra.mxu0 %v4610
        %5622 = vmatprep.subr.bf16.mxu0 %v4615
        %5623 = vmatpush1.bf16.msra.mxu0 %v4614
        %5624 = vmatprep.subr.bf16.mxu0 %v4619
        %5625 = vmatpush1.bf16.msra.mxu0 %v4618
        %5626 = vmatprep.subr.bf16.mxu0 %v4623
        %5627 = vmatpush1.bf16.msra.mxu0 %v4622
        %5628 = vmatprep.subr.bf16.mxu0 %v4627
        %5629 = vmatpush1.bf16.msra.mxu0 %v4626
        %5630 = vmatprep.subr.bf16.mxu0 %v4631
        %5631 = vmatpush1.bf16.msra.mxu0 %v4630
        %5632 = vmatprep.subr.bf16.mxu0 %v4635
        %5633 = vmatpush1.bf16.msra.mxu0 %v4634
        %5634 = vmatprep.subr.bf16.mxu0 %v4639
        %5635 = vmatpush1.bf16.msra.mxu0 %v4638
        %5636 = vmatprep.subr.bf16.mxu0 %v4643
        %5637 = vmatpush1.bf16.msra.mxu0 %v4642
        %5638 = vmatprep.mubr.bf16.mxu0 %v3015
        %5639 = vmatmul.mubr.bf16.gmra.mrb[0].mxu0 %v3014
        %v5640 = vpop.f32.mrb[0].mxu0
        %v5641 = vadd.f32 %v2973, %v5640
        %v5642 = vpop.f32.mrb[0].mxu0
        %v5643 = vadd.f32 %v2977, %v5642
        %v5644 = vpop.f32.mrb[0].mxu0
        %v5645 = vpop.f32.mrb[0].mxu0
        %5646 = vdwg.mxu0
        %5647 = vmatprep.subr.bf16.mxu0 %v4647
        %5648 = vmatpush1.bf16.msra.mxu0 %v4646
        %5649 = vmatprep.subr.bf16.mxu0 %v4651
        %5650 = vmatpush1.bf16.msra.mxu0 %v4650
        %5651 = vmatprep.subr.bf16.mxu0 %v4655
        %5652 = vmatpush1.bf16.msra.mxu0 %v4654
        %5653 = vmatprep.subr.bf16.mxu0 %v4659
        %5654 = vmatpush1.bf16.msra.mxu0 %v4658
        %5655 = vmatprep.subr.bf16.mxu0 %v4663
        %5656 = vmatpush1.bf16.msra.mxu0 %v4662
        %5657 = vmatprep.subr.bf16.mxu0 %v4667
        %5658 = vmatpush1.bf16.msra.mxu0 %v4666
        %5659 = vmatprep.subr.bf16.mxu0 %v4671
        %5660 = vmatpush1.bf16.msra.mxu0 %v4670
        %5661 = vmatprep.subr.bf16.mxu0 %v4675
        %5662 = vmatpush1.bf16.msra.mxu0 %v4674
        %5663 = vmatprep.subr.bf16.mxu0 %v4679
        %5664 = vmatpush1.bf16.msra.mxu0 %v4678
        %5665 = vmatprep.subr.bf16.mxu0 %v4683
        %5666 = vmatpush1.bf16.msra.mxu0 %v4682
        %5667 = vmatprep.subr.bf16.mxu0 %v4687
        %5668 = vmatpush1.bf16.msra.mxu0 %v4686
        %5669 = vmatprep.subr.bf16.mxu0 %v4691
        %5670 = vmatpush1.bf16.msra.mxu0 %v4690
        %5671 = vmatprep.subr.bf16.mxu0 %v4695
        %5672 = vmatpush1.bf16.msra.mxu0 %v4694
        %5673 = vmatprep.subr.bf16.mxu0 %v4699
        %5674 = vmatpush1.bf16.msra.mxu0 %v4698
        %5675 = vmatprep.subr.bf16.mxu0 %v4703
        %5676 = vmatpush1.bf16.msra.mxu0 %v4702
        %5677 = vmatprep.subr.bf16.mxu0 %v4707
        %5678 = vmatpush1.bf16.msra.mxu0 %v4706
        %5679 = vmatprep.mubr.bf16.mxu0 %v3017
        %5680 = vmatmul.mubr.bf16.gmra.mrb[0].mxu0 %v3016
        %v5681 = vpop.f32.mrb[0].mxu0
        %v5682 = vadd.f32 %v5641, %v5681
        %v5683 = vpop.f32.mrb[0].mxu0
        %v5684 = vadd.f32 %v5643, %v5683
        %v5685 = vpop.f32.mrb[0].mxu0
        %v5686 = vpop.f32.mrb[0].mxu0
        %5687 = vdwg.mxu0
        %5688 = vmatprep.subr.bf16.mxu0 %v4711
        %5689 = vmatpush1.bf16.msra.mxu0 %v4710
        %5690 = vmatprep.subr.bf16.mxu0 %v4715
        %5691 = vmatpush1.bf16.msra.mxu0 %v4714
        %5692 = vmatprep.subr.bf16.mxu0 %v4719
        %5693 = vmatpush1.bf16.msra.mxu0 %v4718
        %5694 = vmatprep.subr.bf16.mxu0 %v4723
        %5695 = vmatpush1.bf16.msra.mxu0 %v4722
        %5696 = vmatprep.subr.bf16.mxu0 %v4727
        %5697 = vmatpush1.bf16.msra.mxu0 %v4726
        %5698 = vmatprep.subr.bf16.mxu0 %v4731
        %5699 = vmatpush1.bf16.msra.mxu0 %v4730
        %5700 = vmatprep.subr.bf16.mxu0 %v4735
        %5701 = vmatpush1.bf16.msra.mxu0 %v4734
        %5702 = vmatprep.subr.bf16.mxu0 %v4739
        %5703 = vmatpush1.bf16.msra.mxu0 %v4738
        %5704 = vmatprep.subr.bf16.mxu0 %v4743
        %5705 = vmatpush1.bf16.msra.mxu0 %v4742
        %5706 = vmatprep.subr.bf16.mxu0 %v4747
        %5707 = vmatpush1.bf16.msra.mxu0 %v4746
        %5708 = vmatprep.subr.bf16.mxu0 %v4751
        %5709 = vmatpush1.bf16.msra.mxu0 %v4750
        %5710 = vmatprep.subr.bf16.mxu0 %v4755
        %5711 = vmatpush1.bf16.msra.mxu0 %v4754
        %5712 = vmatprep.subr.bf16.mxu0 %v4759
        %5713 = vmatpush1.bf16.msra.mxu0 %v4758
        %5714 = vmatprep.subr.bf16.mxu0 %v4763
        %5715 = vmatpush1.bf16.msra.mxu0 %v4762
        %5716 = vmatprep.subr.bf16.mxu0 %v4767
        %5717 = vmatpush1.bf16.msra.mxu0 %v4766
        %5718 = vmatprep.subr.bf16.mxu0 %v4771
        %5719 = vmatpush1.bf16.msra.mxu0 %v4770
        %5720 = vmatprep.mubr.bf16.mxu0 %v3019
        %5721 = vmatmul.mubr.bf16.gmra.mrb[0].mxu0 %v3018
        %v5722 = vpop.f32.mrb[0].mxu0
        %v5723 = vadd.f32 %v5682, %v5722
        %v5724 = vpop.f32.mrb[0].mxu0
        %v5725 = vadd.f32 %v5684, %v5724
        %v5726 = vpop.f32.mrb[0].mxu0
        %v5727 = vpop.f32.mrb[0].mxu0
        %5728 = vdwg.mxu0
        %5729 = vmatprep.subr.bf16.mxu0 %v4775
        %5730 = vmatpush1.bf16.msra.mxu0 %v4774
        %5731 = vmatprep.subr.bf16.mxu0 %v4779
        %5732 = vmatpush1.bf16.msra.mxu0 %v4778
        %5733 = vmatprep.subr.bf16.mxu0 %v4783
        %5734 = vmatpush1.bf16.msra.mxu0 %v4782
        %5735 = vmatprep.subr.bf16.mxu0 %v4787
        %5736 = vmatpush1.bf16.msra.mxu0 %v4786
        %5737 = vmatprep.subr.bf16.mxu0 %v4791
        %5738 = vmatpush1.bf16.msra.mxu0 %v4790
        %5739 = vmatprep.subr.bf16.mxu0 %v4795
        %5740 = vmatpush1.bf16.msra.mxu0 %v4794
        %5741 = vmatprep.subr.bf16.mxu0 %v4799
        %5742 = vmatpush1.bf16.msra.mxu0 %v4798
        %5743 = vmatprep.subr.bf16.mxu0 %v4803
        %5744 = vmatpush1.bf16.msra.mxu0 %v4802
        %5745 = vmatprep.subr.bf16.mxu0 %v4807
        %5746 = vmatpush1.bf16.msra.mxu0 %v4806
        %5747 = vmatprep.subr.bf16.mxu0 %v4811
        %5748 = vmatpush1.bf16.msra.mxu0 %v4810
        %5749 = vmatprep.subr.bf16.mxu0 %v4815
        %5750 = vmatpush1.bf16.msra.mxu0 %v4814
        %5751 = vmatprep.subr.bf16.mxu0 %v4819
        %5752 = vmatpush1.bf16.msra.mxu0 %v4818
        %5753 = vmatprep.subr.bf16.mxu0 %v4823
        %5754 = vmatpush1.bf16.msra.mxu0 %v4822
        %5755 = vmatprep.subr.bf16.mxu0 %v4827
        %5756 = vmatpush1.bf16.msra.mxu0 %v4826
        %5757 = vmatprep.subr.bf16.mxu0 %v4831
        %5758 = vmatpush1.bf16.msra.mxu0 %v4830
        %5759 = vmatprep.subr.bf16.mxu0 %v4835
        %5760 = vmatpush1.bf16.msra.mxu0 %v4834
        %5761 = vmatprep.mubr.bf16.mxu0 %v3021
        %5762 = vmatmul.mubr.bf16.gmra.mrb[0].mxu0 %v3020
        %v5763 = vpop.f32.mrb[0].mxu0
        %v5764 = vadd.f32 %v5723, %v5763
        %v5765 = vpop.f32.mrb[0].mxu0
        %v5766 = vadd.f32 %v5725, %v5765
        %v5767 = vpop.f32.mrb[0].mxu0
        %v5768 = vpop.f32.mrb[0].mxu0
        %5769 = vdwg.mxu0
        %5770 = vmatprep.subr.bf16.mxu0 %v4839
        %5771 = vmatpush1.bf16.msra.mxu0 %v4838
        %5772 = vmatprep.subr.bf16.mxu0 %v4843
        %5773 = vmatpush1.bf16.msra.mxu0 %v4842
        %5774 = vmatprep.subr.bf16.mxu0 %v4847
        %5775 = vmatpush1.bf16.msra.mxu0 %v4846
        %5776 = vmatprep.subr.bf16.mxu0 %v4851
        %5777 = vmatpush1.bf16.msra.mxu0 %v4850
        %5778 = vmatprep.subr.bf16.mxu0 %v4855
        %5779 = vmatpush1.bf16.msra.mxu0 %v4854
        %5780 = vmatprep.subr.bf16.mxu0 %v4859
        %5781 = vmatpush1.bf16.msra.mxu0 %v4858
        %5782 = vmatprep.subr.bf16.mxu0 %v4863
        %5783 = vmatpush1.bf16.msra.mxu0 %v4862
        %5784 = vmatprep.subr.bf16.mxu0 %v4867
        %5785 = vmatpush1.bf16.msra.mxu0 %v4866
        %5786 = vmatprep.subr.bf16.mxu0 %v4871
        %5787 = vmatpush1.bf16.msra.mxu0 %v4870
        %5788 = vmatprep.subr.bf16.mxu0 %v4875
        %5789 = vmatpush1.bf16.msra.mxu0 %v4874
        %5790 = vmatprep.subr.bf16.mxu0 %v4879
        %5791 = vmatpush1.bf16.msra.mxu0 %v4878
        %5792 = vmatprep.subr.bf16.mxu0 %v4883
        %5793 = vmatpush1.bf16.msra.mxu0 %v4882
        %5794 = vmatprep.subr.bf16.mxu0 %v4887
        %5795 = vmatpush1.bf16.msra.mxu0 %v4886
        %5796 = vmatprep.subr.bf16.mxu0 %v4891
        %5797 = vmatpush1.bf16.msra.mxu0 %v4890
        %5798 = vmatprep.subr.bf16.mxu0 %v4895
        %5799 = vmatpush1.bf16.msra.mxu0 %v4894
        %5800 = vmatprep.subr.bf16.mxu0 %v4899
        %5801 = vmatpush1.bf16.msra.mxu0 %v4898
        %5802 = vmatprep.mubr.bf16.mxu0 %v3023
        %5803 = vmatmul.mubr.bf16.gmra.mrb[0].mxu0 %v3022
        %v5804 = vpop.f32.mrb[0].mxu0
        %v5805 = vadd.f32 %v5764, %v5804
        %v5806 = vpop.f32.mrb[0].mxu0
        %v5807 = vadd.f32 %v5766, %v5806
        %v5808 = vpop.f32.mrb[0].mxu0
        %v5809 = vpop.f32.mrb[0].mxu0
        %5810 = vdwg.mxu0
        %5811 = vmatprep.subr.bf16.mxu0 %v4903
        %5812 = vmatpush1.bf16.msra.mxu0 %v4902
        %5813 = vmatprep.subr.bf16.mxu0 %v4907
        %5814 = vmatpush1.bf16.msra.mxu0 %v4906
        %5815 = vmatprep.subr.bf16.mxu0 %v4911
        %5816 = vmatpush1.bf16.msra.mxu0 %v4910
        %5817 = vmatprep.subr.bf16.mxu0 %v4915
        %5818 = vmatpush1.bf16.msra.mxu0 %v4914
        %5819 = vmatprep.subr.bf16.mxu0 %v4919
        %5820 = vmatpush1.bf16.msra.mxu0 %v4918
        %5821 = vmatprep.subr.bf16.mxu0 %v4923
        %5822 = vmatpush1.bf16.msra.mxu0 %v4922
        %5823 = vmatprep.subr.bf16.mxu0 %v4927
        %5824 = vmatpush1.bf16.msra.mxu0 %v4926
        %5825 = vmatprep.subr.bf16.mxu0 %v4931
        %5826 = vmatpush1.bf16.msra.mxu0 %v4930
        %5827 = vmatprep.subr.bf16.mxu0 %v4935
        %5828 = vmatpush1.bf16.msra.mxu0 %v4934
        %5829 = vmatprep.subr.bf16.mxu0 %v4939
        %5830 = vmatpush1.bf16.msra.mxu0 %v4938
        %5831 = vmatprep.subr.bf16.mxu0 %v4943
        %5832 = vmatpush1.bf16.msra.mxu0 %v4942
        %5833 = vmatprep.subr.bf16.mxu0 %v4947
        %5834 = vmatpush1.bf16.msra.mxu0 %v4946
        %5835 = vmatprep.subr.bf16.mxu0 %v4951
        %5836 = vmatpush1.bf16.msra.mxu0 %v4950
        %5837 = vmatprep.subr.bf16.mxu0 %v4955
        %5838 = vmatpush1.bf16.msra.mxu0 %v4954
        %5839 = vmatprep.subr.bf16.mxu0 %v4959
        %5840 = vmatpush1.bf16.msra.mxu0 %v4958
        %5841 = vmatprep.subr.bf16.mxu0 %v4963
        %5842 = vmatpush1.bf16.msra.mxu0 %v4962
        %5843 = vmatprep.mubr.bf16.mxu0 %v3025
        %5844 = vmatmul.mubr.bf16.gmra.mrb[0].mxu0 %v3024
        %v5845 = vpop.f32.mrb[0].mxu0
        %v5846 = vadd.f32 %v5805, %v5845
        %v5847 = vpop.f32.mrb[0].mxu0
        %v5848 = vadd.f32 %v5807, %v5847
        %v5849 = vpop.f32.mrb[0].mxu0
        %v5850 = vpop.f32.mrb[0].mxu0
        %5851 = vdwg.mxu0
        %5852 = vmatprep.subr.bf16.mxu0 %v4967
        %5853 = vmatpush1.bf16.msra.mxu0 %v4966
        %5854 = vmatprep.subr.bf16.mxu0 %v4971
        %5855 = vmatpush1.bf16.msra.mxu0 %v4970
        %5856 = vmatprep.subr.bf16.mxu0 %v4975
        %5857 = vmatpush1.bf16.msra.mxu0 %v4974
        %5858 = vmatprep.subr.bf16.mxu0 %v4979
        %5859 = vmatpush1.bf16.msra.mxu0 %v4978
        %5860 = vmatprep.subr.bf16.mxu0 %v4983
        %5861 = vmatpush1.bf16.msra.mxu0 %v4982
        %5862 = vmatprep.subr.bf16.mxu0 %v4987
        %5863 = vmatpush1.bf16.msra.mxu0 %v4986
        %5864 = vmatprep.subr.bf16.mxu0 %v4991
        %5865 = vmatpush1.bf16.msra.mxu0 %v4990
        %5866 = vmatprep.subr.bf16.mxu0 %v4995
        %5867 = vmatpush1.bf16.msra.mxu0 %v4994
        %5868 = vmatprep.subr.bf16.mxu0 %v4999
        %5869 = vmatpush1.bf16.msra.mxu0 %v4998
        %5870 = vmatprep.subr.bf16.mxu0 %v5003
        %5871 = vmatpush1.bf16.msra.mxu0 %v5002
        %5872 = vmatprep.subr.bf16.mxu0 %v5007
        %5873 = vmatpush1.bf16.msra.mxu0 %v5006
        %5874 = vmatprep.subr.bf16.mxu0 %v5011
        %5875 = vmatpush1.bf16.msra.mxu0 %v5010
        %5876 = vmatprep.subr.bf16.mxu0 %v5015
        %5877 = vmatpush1.bf16.msra.mxu0 %v5014
        %5878 = vmatprep.subr.bf16.mxu0 %v5019
        %5879 = vmatpush1.bf16.msra.mxu0 %v5018
        %5880 = vmatprep.subr.bf16.mxu0 %v5023
        %5881 = vmatpush1.bf16.msra.mxu0 %v5022
        %5882 = vmatprep.subr.bf16.mxu0 %v5027
        %5883 = vmatpush1.bf16.msra.mxu0 %v5026
        %5884 = vmatprep.mubr.bf16.mxu0 %v3027
        %5885 = vmatmul.mubr.bf16.gmra.mrb[0].mxu0 %v3026
        %v5886 = vpop.f32.mrb[0].mxu0
        %v5887 = vadd.f32 %v5846, %v5886
        %v5888 = vpop.f32.mrb[0].mxu0
        %v5889 = vadd.f32 %v5848, %v5888
        %v5890 = vpop.f32.mrb[0].mxu0
        %v5891 = vpop.f32.mrb[0].mxu0
        %5892 = vdwg.mxu0
        %5893 = vmatprep.subr.bf16.mxu0 %v5031
        %5894 = vmatpush1.bf16.msra.mxu0 %v5030
        %5895 = vmatprep.subr.bf16.mxu0 %v5035
        %5896 = vmatpush1.bf16.msra.mxu0 %v5034
        %5897 = vmatprep.subr.bf16.mxu0 %v5039
        %5898 = vmatpush1.bf16.msra.mxu0 %v5038
        %5899 = vmatprep.subr.bf16.mxu0 %v5043
        %5900 = vmatpush1.bf16.msra.mxu0 %v5042
        %5901 = vmatprep.subr.bf16.mxu0 %v5047
        %5902 = vmatpush1.bf16.msra.mxu0 %v5046
        %5903 = vmatprep.subr.bf16.mxu0 %v5051
        %5904 = vmatpush1.bf16.msra.mxu0 %v5050
        %5905 = vmatprep.subr.bf16.mxu0 %v5055
        %5906 = vmatpush1.bf16.msra.mxu0 %v5054
        %5907 = vmatprep.subr.bf16.mxu0 %v5059
        %5908 = vmatpush1.bf16.msra.mxu0 %v5058
        %5909 = vmatprep.subr.bf16.mxu0 %v5063
        %5910 = vmatpush1.bf16.msra.mxu0 %v5062
        %5911 = vmatprep.subr.bf16.mxu0 %v5067
        %5912 = vmatpush1.bf16.msra.mxu0 %v5066
        %5913 = vmatprep.subr.bf16.mxu0 %v5071
        %5914 = vmatpush1.bf16.msra.mxu0 %v5070
        %5915 = vmatprep.subr.bf16.mxu0 %v5075
        %5916 = vmatpush1.bf16.msra.mxu0 %v5074
        %5917 = vmatprep.subr.bf16.mxu0 %v5079
        %5918 = vmatpush1.bf16.msra.mxu0 %v5078
        %5919 = vmatprep.subr.bf16.mxu0 %v5083
        %5920 = vmatpush1.bf16.msra.mxu0 %v5082
        %5921 = vmatprep.subr.bf16.mxu0 %v5087
        %5922 = vmatpush1.bf16.msra.mxu0 %v5086
        %5923 = vmatprep.subr.bf16.mxu0 %v5091
        %5924 = vmatpush1.bf16.msra.mxu0 %v5090
        %5925 = vmatprep.mubr.bf16.mxu0 %v3029
        %5926 = vmatmul.mubr.bf16.gmra.mrb[0].mxu0 %v3028
        %v5927 = vpop.f32.mrb[0].mxu0
        %v5928 = vadd.f32 %v5887, %v5927
        %v5929 = vpop.f32.mrb[0].mxu0
        %v5930 = vadd.f32 %v5889, %v5929
        %v5931 = vpop.f32.mrb[0].mxu0
        %v5932 = vpop.f32.mrb[0].mxu0
        %5933 = vdwg.mxu0
        %5934 = vmatprep.subr.bf16.mxu0 %v4585
        %5935 = vmatpush1.bf16.msra.mxu0 %v4584
        %5936 = vmatprep.subr.bf16.mxu0 %v4589
        %5937 = vmatpush1.bf16.msra.mxu0 %v4588
        %5938 = vmatprep.subr.bf16.mxu0 %v4593
        %5939 = vmatpush1.bf16.msra.mxu0 %v4592
        %5940 = vmatprep.subr.bf16.mxu0 %v4597
        %5941 = vmatpush1.bf16.msra.mxu0 %v4596
        %5942 = vmatprep.subr.bf16.mxu0 %v4601
        %5943 = vmatpush1.bf16.msra.mxu0 %v4600
        %5944 = vmatprep.subr.bf16.mxu0 %v4605
        %5945 = vmatpush1.bf16.msra.mxu0 %v4604
        %5946 = vmatprep.subr.bf16.mxu0 %v4609
        %5947 = vmatpush1.bf16.msra.mxu0 %v4608
        %5948 = vmatprep.subr.bf16.mxu0 %v4613
        %5949 = vmatpush1.bf16.msra.mxu0 %v4612
        %5950 = vmatprep.subr.bf16.mxu0 %v4617
        %5951 = vmatpush1.bf16.msra.mxu0 %v4616
        %5952 = vmatprep.subr.bf16.mxu0 %v4621
        %5953 = vmatpush1.bf16.msra.mxu0 %v4620
        %5954 = vmatprep.subr.bf16.mxu0 %v4625
        %5955 = vmatpush1.bf16.msra.mxu0 %v4624
        %5956 = vmatprep.subr.bf16.mxu0 %v4629
        %5957 = vmatpush1.bf16.msra.mxu0 %v4628
        %5958 = vmatprep.subr.bf16.mxu0 %v4633
        %5959 = vmatpush1.bf16.msra.mxu0 %v4632
        %5960 = vmatprep.subr.bf16.mxu0 %v4637
        %5961 = vmatpush1.bf16.msra.mxu0 %v4636
        %5962 = vmatprep.subr.bf16.mxu0 %v4641
        %5963 = vmatpush1.bf16.msra.mxu0 %v4640
        %5964 = vmatprep.subr.bf16.mxu0 %v4645
        %5965 = vmatpush1.bf16.msra.mxu0 %v4644
        %5966 = vmatprep.mubr.bf16.mxu0 %v3015
        %5967 = vmatmul.mubr.bf16.gmra.mrb[0].mxu0 %v3014
        %v5968 = vpop.f32.mrb[0].mxu0
        %v5969 = vadd.f32 %v2981, %v5968
        %v5970 = vpop.f32.mrb[0].mxu0
        %v5971 = vadd.f32 %v2985, %v5970
        %v5972 = vpop.f32.mrb[0].mxu0
        %v5973 = vpop.f32.mrb[0].mxu0
        %5974 = vdwg.mxu0
        %5975 = vmatprep.subr.bf16.mxu0 %v4649
        %5976 = vmatpush1.bf16.msra.mxu0 %v4648
        %5977 = vmatprep.subr.bf16.mxu0 %v4653
        %5978 = vmatpush1.bf16.msra.mxu0 %v4652
        %5979 = vmatprep.subr.bf16.mxu0 %v4657
        %5980 = vmatpush1.bf16.msra.mxu0 %v4656
        %5981 = vmatprep.subr.bf16.mxu0 %v4661
        %5982 = vmatpush1.bf16.msra.mxu0 %v4660
        %5983 = vmatprep.subr.bf16.mxu0 %v4665
        %5984 = vmatpush1.bf16.msra.mxu0 %v4664
        %5985 = vmatprep.subr.bf16.mxu0 %v4669
        %5986 = vmatpush1.bf16.msra.mxu0 %v4668
        %5987 = vmatprep.subr.bf16.mxu0 %v4673
        %5988 = vmatpush1.bf16.msra.mxu0 %v4672
        %5989 = vmatprep.subr.bf16.mxu0 %v4677
        %5990 = vmatpush1.bf16.msra.mxu0 %v4676
        %5991 = vmatprep.subr.bf16.mxu0 %v4681
        %5992 = vmatpush1.bf16.msra.mxu0 %v4680
        %5993 = vmatprep.subr.bf16.mxu0 %v4685
        %5994 = vmatpush1.bf16.msra.mxu0 %v4684
        %5995 = vmatprep.subr.bf16.mxu0 %v4689
        %5996 = vmatpush1.bf16.msra.mxu0 %v4688
        %5997 = vmatprep.subr.bf16.mxu0 %v4693
        %5998 = vmatpush1.bf16.msra.mxu0 %v4692
        %5999 = vmatprep.subr.bf16.mxu0 %v4697
        %6000 = vmatpush1.bf16.msra.mxu0 %v4696
        %6001 = vmatprep.subr.bf16.mxu0 %v4701
        %6002 = vmatpush1.bf16.msra.mxu0 %v4700
        %6003 = vmatprep.subr.bf16.mxu0 %v4705
        %6004 = vmatpush1.bf16.msra.mxu0 %v4704
        %6005 = vmatprep.subr.bf16.mxu0 %v4709
        %6006 = vmatpush1.bf16.msra.mxu0 %v4708
        %6007 = vmatprep.mubr.bf16.mxu0 %v3017
        %6008 = vmatmul.mubr.bf16.gmra.mrb[0].mxu0 %v3016
        %v6009 = vpop.f32.mrb[0].mxu0
        %v6010 = vadd.f32 %v5969, %v6009
        %v6011 = vpop.f32.mrb[0].mxu0
        %v6012 = vadd.f32 %v5971, %v6011
        %v6013 = vpop.f32.mrb[0].mxu0
        %v6014 = vpop.f32.mrb[0].mxu0
        %6015 = vdwg.mxu0
        %6016 = vmatprep.subr.bf16.mxu0 %v4713
        %6017 = vmatpush1.bf16.msra.mxu0 %v4712
        %6018 = vmatprep.subr.bf16.mxu0 %v4717
        %6019 = vmatpush1.bf16.msra.mxu0 %v4716
        %6020 = vmatprep.subr.bf16.mxu0 %v4721
        %6021 = vmatpush1.bf16.msra.mxu0 %v4720
        %6022 = vmatprep.subr.bf16.mxu0 %v4725
        %6023 = vmatpush1.bf16.msra.mxu0 %v4724
        %6024 = vmatprep.subr.bf16.mxu0 %v4729
        %6025 = vmatpush1.bf16.msra.mxu0 %v4728
        %6026 = vmatprep.subr.bf16.mxu0 %v4733
        %6027 = vmatpush1.bf16.msra.mxu0 %v4732
        %6028 = vmatprep.subr.bf16.mxu0 %v4737
        %6029 = vmatpush1.bf16.msra.mxu0 %v4736
        %6030 = vmatprep.subr.bf16.mxu0 %v4741
        %6031 = vmatpush1.bf16.msra.mxu0 %v4740
        %6032 = vmatprep.subr.bf16.mxu0 %v4745
        %6033 = vmatpush1.bf16.msra.mxu0 %v4744
        %6034 = vmatprep.subr.bf16.mxu0 %v4749
        %6035 = vmatpush1.bf16.msra.mxu0 %v4748
        %6036 = vmatprep.subr.bf16.mxu0 %v4753
        %6037 = vmatpush1.bf16.msra.mxu0 %v4752
        %6038 = vmatprep.subr.bf16.mxu0 %v4757
        %6039 = vmatpush1.bf16.msra.mxu0 %v4756
        %6040 = vmatprep.subr.bf16.mxu0 %v4761
        %6041 = vmatpush1.bf16.msra.mxu0 %v4760
        %6042 = vmatprep.subr.bf16.mxu0 %v4765
        %6043 = vmatpush1.bf16.msra.mxu0 %v4764
        %6044 = vmatprep.subr.bf16.mxu0 %v4769
        %6045 = vmatpush1.bf16.msra.mxu0 %v4768
        %6046 = vmatprep.subr.bf16.mxu0 %v4773
        %6047 = vmatpush1.bf16.msra.mxu0 %v4772
        %6048 = vmatprep.mubr.bf16.mxu0 %v3019
        %6049 = vmatmul.mubr.bf16.gmra.mrb[0].mxu0 %v3018
        %v6050 = vpop.f32.mrb[0].mxu0
        %v6051 = vadd.f32 %v6010, %v6050
        %v6052 = vpop.f32.mrb[0].mxu0
        %v6053 = vadd.f32 %v6012, %v6052
        %v6054 = vpop.f32.mrb[0].mxu0
        %v6055 = vpop.f32.mrb[0].mxu0
        %6056 = vdwg.mxu0
        %6057 = vmatprep.subr.bf16.mxu0 %v4777
        %6058 = vmatpush1.bf16.msra.mxu0 %v4776
        %6059 = vmatprep.subr.bf16.mxu0 %v4781
        %6060 = vmatpush1.bf16.msra.mxu0 %v4780
        %6061 = vmatprep.subr.bf16.mxu0 %v4785
        %6062 = vmatpush1.bf16.msra.mxu0 %v4784
        %6063 = vmatprep.subr.bf16.mxu0 %v4789
        %6064 = vmatpush1.bf16.msra.mxu0 %v4788
        %6065 = vmatprep.subr.bf16.mxu0 %v4793
        %6066 = vmatpush1.bf16.msra.mxu0 %v4792
        %6067 = vmatprep.subr.bf16.mxu0 %v4797
        %6068 = vmatpush1.bf16.msra.mxu0 %v4796
        %6069 = vmatprep.subr.bf16.mxu0 %v4801
        %6070 = vmatpush1.bf16.msra.mxu0 %v4800
        %6071 = vmatprep.subr.bf16.mxu0 %v4805
        %6072 = vmatpush1.bf16.msra.mxu0 %v4804
        %6073 = vmatprep.subr.bf16.mxu0 %v4809
        %6074 = vmatpush1.bf16.msra.mxu0 %v4808
        %6075 = vmatprep.subr.bf16.mxu0 %v4813
        %6076 = vmatpush1.bf16.msra.mxu0 %v4812
        %6077 = vmatprep.subr.bf16.mxu0 %v4817
        %6078 = vmatpush1.bf16.msra.mxu0 %v4816
        %6079 = vmatprep.subr.bf16.mxu0 %v4821
        %6080 = vmatpush1.bf16.msra.mxu0 %v4820
        %6081 = vmatprep.subr.bf16.mxu0 %v4825
        %6082 = vmatpush1.bf16.msra.mxu0 %v4824
        %6083 = vmatprep.subr.bf16.mxu0 %v4829
        %6084 = vmatpush1.bf16.msra.mxu0 %v4828
        %6085 = vmatprep.subr.bf16.mxu0 %v4833
        %6086 = vmatpush1.bf16.msra.mxu0 %v4832
        %6087 = vmatprep.subr.bf16.mxu0 %v4837
        %6088 = vmatpush1.bf16.msra.mxu0 %v4836
        %6089 = vmatprep.mubr.bf16.mxu0 %v3021
        %6090 = vmatmul.mubr.bf16.gmra.mrb[0].mxu0 %v3020
        %v6091 = vpop.f32.mrb[0].mxu0
        %v6092 = vadd.f32 %v6051, %v6091
        %v6093 = vpop.f32.mrb[0].mxu0
        %v6094 = vadd.f32 %v6053, %v6093
        %v6095 = vpop.f32.mrb[0].mxu0
        %v6096 = vpop.f32.mrb[0].mxu0
        %6097 = vdwg.mxu0
        %6098 = vmatprep.subr.bf16.mxu0 %v4841
        %6099 = vmatpush1.bf16.msra.mxu0 %v4840
        %6100 = vmatprep.subr.bf16.mxu0 %v4845
        %6101 = vmatpush1.bf16.msra.mxu0 %v4844
        %6102 = vmatprep.subr.bf16.mxu0 %v4849
        %6103 = vmatpush1.bf16.msra.mxu0 %v4848
        %6104 = vmatprep.subr.bf16.mxu0 %v4853
        %6105 = vmatpush1.bf16.msra.mxu0 %v4852
        %6106 = vmatprep.subr.bf16.mxu0 %v4857
        %6107 = vmatpush1.bf16.msra.mxu0 %v4856
        %6108 = vmatprep.subr.bf16.mxu0 %v4861
        %6109 = vmatpush1.bf16.msra.mxu0 %v4860
        %6110 = vmatprep.subr.bf16.mxu0 %v4865
        %6111 = vmatpush1.bf16.msra.mxu0 %v4864
        %6112 = vmatprep.subr.bf16.mxu0 %v4869
        %6113 = vmatpush1.bf16.msra.mxu0 %v4868
        %6114 = vmatprep.subr.bf16.mxu0 %v4873
        %6115 = vmatpush1.bf16.msra.mxu0 %v4872
        %6116 = vmatprep.subr.bf16.mxu0 %v4877
        %6117 = vmatpush1.bf16.msra.mxu0 %v4876
        %6118 = vmatprep.subr.bf16.mxu0 %v4881
        %6119 = vmatpush1.bf16.msra.mxu0 %v4880
        %6120 = vmatprep.subr.bf16.mxu0 %v4885
        %6121 = vmatpush1.bf16.msra.mxu0 %v4884
        %6122 = vmatprep.subr.bf16.mxu0 %v4889
        %6123 = vmatpush1.bf16.msra.mxu0 %v4888
        %6124 = vmatprep.subr.bf16.mxu0 %v4893
        %6125 = vmatpush1.bf16.msra.mxu0 %v4892
        %6126 = vmatprep.subr.bf16.mxu0 %v4897
        %6127 = vmatpush1.bf16.msra.mxu0 %v4896
        %6128 = vmatprep.subr.bf16.mxu0 %v4901
        %6129 = vmatpush1.bf16.msra.mxu0 %v4900
        %6130 = vmatprep.mubr.bf16.mxu0 %v3023
        %6131 = vmatmul.mubr.bf16.gmra.mrb[0].mxu0 %v3022
        %v6132 = vpop.f32.mrb[0].mxu0
        %v6133 = vadd.f32 %v6092, %v6132
        %v6134 = vpop.f32.mrb[0].mxu0
        %v6135 = vadd.f32 %v6094, %v6134
        %v6136 = vpop.f32.mrb[0].mxu0
        %v6137 = vpop.f32.mrb[0].mxu0
        %6138 = vdwg.mxu0
        %6139 = vmatprep.subr.bf16.mxu0 %v4905
        %6140 = vmatpush1.bf16.msra.mxu0 %v4904
        %6141 = vmatprep.subr.bf16.mxu0 %v4909
        %6142 = vmatpush1.bf16.msra.mxu0 %v4908
        %6143 = vmatprep.subr.bf16.mxu0 %v4913
        %6144 = vmatpush1.bf16.msra.mxu0 %v4912
        %6145 = vmatprep.subr.bf16.mxu0 %v4917
        %6146 = vmatpush1.bf16.msra.mxu0 %v4916
        %6147 = vmatprep.subr.bf16.mxu0 %v4921
        %6148 = vmatpush1.bf16.msra.mxu0 %v4920
        %6149 = vmatprep.subr.bf16.mxu0 %v4925
        %6150 = vmatpush1.bf16.msra.mxu0 %v4924
        %6151 = vmatprep.subr.bf16.mxu0 %v4929
        %6152 = vmatpush1.bf16.msra.mxu0 %v4928
        %6153 = vmatprep.subr.bf16.mxu0 %v4933
        %6154 = vmatpush1.bf16.msra.mxu0 %v4932
        %6155 = vmatprep.subr.bf16.mxu0 %v4937
        %6156 = vmatpush1.bf16.msra.mxu0 %v4936
        %6157 = vmatprep.subr.bf16.mxu0 %v4941
        %6158 = vmatpush1.bf16.msra.mxu0 %v4940
        %6159 = vmatprep.subr.bf16.mxu0 %v4945
        %6160 = vmatpush1.bf16.msra.mxu0 %v4944
        %6161 = vmatprep.subr.bf16.mxu0 %v4949
        %6162 = vmatpush1.bf16.msra.mxu0 %v4948
        %6163 = vmatprep.subr.bf16.mxu0 %v4953
        %6164 = vmatpush1.bf16.msra.mxu0 %v4952
        %6165 = vmatprep.subr.bf16.mxu0 %v4957
        %6166 = vmatpush1.bf16.msra.mxu0 %v4956
        %6167 = vmatprep.subr.bf16.mxu0 %v4961
        %6168 = vmatpush1.bf16.msra.mxu0 %v4960
        %6169 = vmatprep.subr.bf16.mxu0 %v4965
        %6170 = vmatpush1.bf16.msra.mxu0 %v4964
        %6171 = vmatprep.mubr.bf16.mxu0 %v3025
        %6172 = vmatmul.mubr.bf16.gmra.mrb[0].mxu0 %v3024
        %v6173 = vpop.f32.mrb[0].mxu0
        %v6174 = vadd.f32 %v6133, %v6173
        %v6175 = vpop.f32.mrb[0].mxu0
        %v6176 = vadd.f32 %v6135, %v6175
        %v6177 = vpop.f32.mrb[0].mxu0
        %v6178 = vpop.f32.mrb[0].mxu0
        %6179 = vdwg.mxu0
        %6180 = vmatprep.subr.bf16.mxu0 %v4969
        %6181 = vmatpush1.bf16.msra.mxu0 %v4968
        %6182 = vmatprep.subr.bf16.mxu0 %v4973
        %6183 = vmatpush1.bf16.msra.mxu0 %v4972
        %6184 = vmatprep.subr.bf16.mxu0 %v4977
        %6185 = vmatpush1.bf16.msra.mxu0 %v4976
        %6186 = vmatprep.subr.bf16.mxu0 %v4981
        %6187 = vmatpush1.bf16.msra.mxu0 %v4980
        %6188 = vmatprep.subr.bf16.mxu0 %v4985
        %6189 = vmatpush1.bf16.msra.mxu0 %v4984
        %6190 = vmatprep.subr.bf16.mxu0 %v4989
        %6191 = vmatpush1.bf16.msra.mxu0 %v4988
        %6192 = vmatprep.subr.bf16.mxu0 %v4993
        %6193 = vmatpush1.bf16.msra.mxu0 %v4992
        %6194 = vmatprep.subr.bf16.mxu0 %v4997
        %6195 = vmatpush1.bf16.msra.mxu0 %v4996
        %6196 = vmatprep.subr.bf16.mxu0 %v5001
        %6197 = vmatpush1.bf16.msra.mxu0 %v5000
        %6198 = vmatprep.subr.bf16.mxu0 %v5005
        %6199 = vmatpush1.bf16.msra.mxu0 %v5004
        %6200 = vmatprep.subr.bf16.mxu0 %v5009
        %6201 = vmatpush1.bf16.msra.mxu0 %v5008
        %6202 = vmatprep.subr.bf16.mxu0 %v5013
        %6203 = vmatpush1.bf16.msra.mxu0 %v5012
        %6204 = vmatprep.subr.bf16.mxu0 %v5017
        %6205 = vmatpush1.bf16.msra.mxu0 %v5016
        %6206 = vmatprep.subr.bf16.mxu0 %v5021
        %6207 = vmatpush1.bf16.msra.mxu0 %v5020
        %6208 = vmatprep.subr.bf16.mxu0 %v5025
        %6209 = vmatpush1.bf16.msra.mxu0 %v5024
        %6210 = vmatprep.subr.bf16.mxu0 %v5029
        %6211 = vmatpush1.bf16.msra.mxu0 %v5028
        %6212 = vmatprep.mubr.bf16.mxu0 %v3027
        %6213 = vmatmul.mubr.bf16.gmra.mrb[0].mxu0 %v3026
        %v6214 = vpop.f32.mrb[0].mxu0
        %v6215 = vadd.f32 %v6174, %v6214
        %v6216 = vpop.f32.mrb[0].mxu0
        %v6217 = vadd.f32 %v6176, %v6216
        %v6218 = vpop.f32.mrb[0].mxu0
        %v6219 = vpop.f32.mrb[0].mxu0
        %6220 = vdwg.mxu0
        %6221 = vmatprep.subr.bf16.mxu0 %v5033
        %6222 = vmatpush1.bf16.msra.mxu0 %v5032
        %6223 = vmatprep.subr.bf16.mxu0 %v5037
        %6224 = vmatpush1.bf16.msra.mxu0 %v5036
        %6225 = vmatprep.subr.bf16.mxu0 %v5041
        %6226 = vmatpush1.bf16.msra.mxu0 %v5040
        %6227 = vmatprep.subr.bf16.mxu0 %v5045
        %6228 = vmatpush1.bf16.msra.mxu0 %v5044
        %6229 = vmatprep.subr.bf16.mxu0 %v5049
        %6230 = vmatpush1.bf16.msra.mxu0 %v5048
        %6231 = vmatprep.subr.bf16.mxu0 %v5053
        %6232 = vmatpush1.bf16.msra.mxu0 %v5052
        %6233 = vmatprep.subr.bf16.mxu0 %v5057
        %6234 = vmatpush1.bf16.msra.mxu0 %v5056
        %6235 = vmatprep.subr.bf16.mxu0 %v5061
        %6236 = vmatpush1.bf16.msra.mxu0 %v5060
        %6237 = vmatprep.subr.bf16.mxu0 %v5065
        %6238 = vmatpush1.bf16.msra.mxu0 %v5064
        %6239 = vmatprep.subr.bf16.mxu0 %v5069
        %6240 = vmatpush1.bf16.msra.mxu0 %v5068
        %6241 = vmatprep.subr.bf16.mxu0 %v5073
        %6242 = vmatpush1.bf16.msra.mxu0 %v5072
        %6243 = vmatprep.subr.bf16.mxu0 %v5077
        %6244 = vmatpush1.bf16.msra.mxu0 %v5076
        %6245 = vmatprep.subr.bf16.mxu0 %v5081
        %6246 = vmatpush1.bf16.msra.mxu0 %v5080
        %6247 = vmatprep.subr.bf16.mxu0 %v5085
        %6248 = vmatpush1.bf16.msra.mxu0 %v5084
        %6249 = vmatprep.subr.bf16.mxu0 %v5089
        %6250 = vmatpush1.bf16.msra.mxu0 %v5088
        %6251 = vmatprep.subr.bf16.mxu0 %v5093
        %6252 = vmatpush1.bf16.msra.mxu0 %v5092
        %6253 = vmatprep.mubr.bf16.mxu0 %v3029
        %6254 = vmatmul.mubr.bf16.gmra.mrb[0].mxu0 %v3028
        %v6255 = vpop.f32.mrb[0].mxu0
        %v6256 = vadd.f32 %v6215, %v6255
        %v6257 = vpop.f32.mrb[0].mxu0
        %v6258 = vadd.f32 %v6217, %v6257
        %v6259 = vpop.f32.mrb[0].mxu0
        %v6260 = vpop.f32.mrb[0].mxu0
        %6261 = vdwg.mxu0
        %v6262 = vmax.f32 %v5928, 0.0
        %v6263 = vmax.f32 %v5930, 0.0
        %v6264 = vmax.f32 %v6256, 0.0
        %v6265 = vmax.f32 %v6258, 0.0
        %v6266 = vld [vmem:[#allocation3] sm:$0xff]
        %v6267 = vpack.c.bf16 %v6262, %v6262
        %v6268 = vpack.c.bf16 %v6263, %v6263
        %v6269 = vpack.c.bf16 %v6264, %v6264
        %v6270 = vpack.c.bf16 %v6265, %v6265
        %v6271 = vld [vmem:[%s395] sm:$0xf]
        %v6272 = vld [vmem:[%s395 + $0x4] sm:$0xf]
        %v6273 = vld [vmem:[%s395 + $0x8] sm:$0xf]
        %v6274 = vld [vmem:[%s395 + $0xc] sm:$0xf]
        %v6275 = vld [vmem:[%s395 + $0x10] sm:$0xf]
        %v6276 = vld [vmem:[%s395 + $0x14] sm:$0xf]
        %v6277 = vld [vmem:[%s395 + $0x18] sm:$0xf]
        %v6278 = vld [vmem:[%s395 + $0x1c] sm:$0xf]
        %v6279 = vld [vmem:[%s395 + $0x20] sm:$0xf]
        %v6280 = vld [vmem:[%s395 + $0x24] sm:$0xf]
        %v6281 = vld [vmem:[%s395 + $0x28] sm:$0xf]
        %v6282 = vld [vmem:[%s395 + $0x2c] sm:$0xf]
        %v6283 = vld [vmem:[%s395 + $0x30] sm:$0xf]
        %v6284 = vld [vmem:[%s395 + $0x34] sm:$0xf]
        %v6285 = vld [vmem:[%s395 + $0x38] sm:$0xf]
        %v6286 = vld [vmem:[%s395 + $0x3c] sm:$0xf]
        %v6287 = vld [vmem:[%s395 + $0x40] sm:$0xf]
        %v6288 = vld [vmem:[%s395 + $0x44] sm:$0xf]
        %v6289 = vld [vmem:[%s395 + $0x48] sm:$0xf]
        %v6290 = vld [vmem:[%s395 + $0x4c] sm:$0xf]
        %v6291 = vld [vmem:[%s395 + $0x50] sm:$0xf]
        %v6292 = vld [vmem:[%s395 + $0x54] sm:$0xf]
        %v6293 = vld [vmem:[%s395 + $0x58] sm:$0xf]
        %v6294 = vld [vmem:[%s395 + $0x5c] sm:$0xf]
        %v6295 = vld [vmem:[%s395 + $0x60] sm:$0xf]
        %v6296 = vld [vmem:[%s395 + $0x64] sm:$0xf]
        %v6297 = vld [vmem:[%s395 + $0x68] sm:$0xf]
        %v6298 = vld [vmem:[%s395 + $0x6c] sm:$0xf]
        %v6299 = vld [vmem:[%s395 + $0x70] sm:$0xf]
        %v6300 = vld [vmem:[%s395 + $0x74] sm:$0xf]
        %v6301 = vld [vmem:[%s395 + $0x78] sm:$0xf]
        %v6302 = vld [vmem:[%s395 + $0x7c] sm:$0xf]
        %v6303 = vld [vmem:[%s395 + $0x80] sm:$0xf]
        %v6304 = vld [vmem:[%s395 + $0x84] sm:$0xf]
        %v6305 = vld [vmem:[%s395 + $0x88] sm:$0xf]
        %v6306 = vld [vmem:[%s395 + $0x8c] sm:$0xf]
        %v6307 = vld [vmem:[%s395 + $0x90] sm:$0xf]
        %v6308 = vld [vmem:[%s395 + $0x94] sm:$0xf]
        %v6309 = vld [vmem:[%s395 + $0x98] sm:$0xf]
        %v6310 = vld [vmem:[%s395 + $0x9c] sm:$0xf]
        %v6311 = vld [vmem:[%s395 + $0xa0] sm:$0xf]
        %v6312 = vld [vmem:[%s395 + $0xa4] sm:$0xf]
        %v6313 = vld [vmem:[%s395 + $0xa8] sm:$0xf]
        %v6314 = vld [vmem:[%s395 + $0xac] sm:$0xf]
        %v6315 = vld [vmem:[%s395 + $0xb0] sm:$0xf]
        %v6316 = vld [vmem:[%s395 + $0xb4] sm:$0xf]
        %v6317 = vld [vmem:[%s395 + $0xb8] sm:$0xf]
        %v6318 = vld [vmem:[%s395 + $0xbc] sm:$0xf]
        %v6319 = vld [vmem:[%s395 + $0xc0] sm:$0xf]
        %v6320 = vld [vmem:[%s395 + $0xc4] sm:$0xf]
        %v6321 = vld [vmem:[%s395 + $0xc8] sm:$0xf]
        %v6322 = vld [vmem:[%s395 + $0xcc] sm:$0xf]
        %v6323 = vld [vmem:[%s395 + $0xd0] sm:$0xf]
        %v6324 = vld [vmem:[%s395 + $0xd4] sm:$0xf]
        %v6325 = vld [vmem:[%s395 + $0xd8] sm:$0xf]
        %v6326 = vld [vmem:[%s395 + $0xdc] sm:$0xf]
        %v6327 = vld [vmem:[%s395 + $0xe0] sm:$0xf]
        %v6328 = vld [vmem:[%s395 + $0xe4] sm:$0xf]
        %v6329 = vld [vmem:[%s395 + $0xe8] sm:$0xf]
        %v6330 = vld [vmem:[%s395 + $0xec] sm:$0xf]
        %v6331 = vld [vmem:[%s395 + $0xf0] sm:$0xf]
        %v6332 = vld [vmem:[%s395 + $0xf4] sm:$0xf]
        %v6333 = vld [vmem:[%s395 + $0xf8] sm:$0xf]
        %v6334 = vld [vmem:[%s395 + $0xfc] sm:$0xf]
        %v6399 = vunpack.c.l.b16 %v6271
        %v6400 = vunpack.c.l.b16 %v6272
        %v6401 = vunpack.c.l.b16 %v6273
        %v6402 = vunpack.c.l.b16 %v6274
        %v6403 = vunpack.c.l.b16 %v6275
        %v6404 = vunpack.c.l.b16 %v6276
        %v6405 = vunpack.c.l.b16 %v6277
        %v6406 = vunpack.c.l.b16 %v6278
        %v6407 = vunpack.c.l.b16 %v6279
        %v6408 = vunpack.c.l.b16 %v6280
        %v6409 = vunpack.c.l.b16 %v6281
        %v6410 = vunpack.c.l.b16 %v6282
        %v6411 = vunpack.c.l.b16 %v6283
        %v6412 = vunpack.c.l.b16 %v6284
        %v6413 = vunpack.c.l.b16 %v6285
        %v6414 = vunpack.c.l.b16 %v6286
        %v6415 = vunpack.c.l.b16 %v6287
        %v6416 = vunpack.c.l.b16 %v6288
        %v6417 = vunpack.c.l.b16 %v6289
        %v6418 = vunpack.c.l.b16 %v6290
        %v6419 = vunpack.c.l.b16 %v6291
        %v6420 = vunpack.c.l.b16 %v6292
        %v6421 = vunpack.c.l.b16 %v6293
        %v6422 = vunpack.c.l.b16 %v6294
        %v6423 = vunpack.c.l.b16 %v6295
        %v6424 = vunpack.c.l.b16 %v6296
        %v6425 = vunpack.c.l.b16 %v6297
        %v6426 = vunpack.c.l.b16 %v6298
        %v6427 = vunpack.c.l.b16 %v6299
        %v6428 = vunpack.c.l.b16 %v6300
        %v6429 = vunpack.c.l.b16 %v6301
        %v6430 = vunpack.c.l.b16 %v6302
        %v6431 = vunpack.c.l.b16 %v6303
        %v6432 = vunpack.c.l.b16 %v6304
        %v6433 = vunpack.c.l.b16 %v6305
        %v6434 = vunpack.c.l.b16 %v6306
        %v6435 = vunpack.c.l.b16 %v6307
        %v6436 = vunpack.c.l.b16 %v6308
        %v6437 = vunpack.c.l.b16 %v6309
        %v6438 = vunpack.c.l.b16 %v6310
        %v6439 = vunpack.c.l.b16 %v6311
        %v6440 = vunpack.c.l.b16 %v6312
        %v6441 = vunpack.c.l.b16 %v6313
        %v6442 = vunpack.c.l.b16 %v6314
        %v6443 = vunpack.c.l.b16 %v6315
        %v6444 = vunpack.c.l.b16 %v6316
        %v6445 = vunpack.c.l.b16 %v6317
        %v6446 = vunpack.c.l.b16 %v6318
        %v6447 = vunpack.c.l.b16 %v6319
        %v6448 = vunpack.c.l.b16 %v6320
        %v6449 = vunpack.c.l.b16 %v6321
        %v6450 = vunpack.c.l.b16 %v6322
        %v6451 = vunpack.c.l.b16 %v6323
        %v6452 = vunpack.c.l.b16 %v6324
        %v6453 = vunpack.c.l.b16 %v6325
        %v6454 = vunpack.c.l.b16 %v6326
        %v6455 = vunpack.c.l.b16 %v6327
        %v6456 = vunpack.c.l.b16 %v6328
        %v6457 = vunpack.c.l.b16 %v6329
        %v6458 = vunpack.c.l.b16 %v6330
        %v6459 = vunpack.c.l.b16 %v6331
        %v6460 = vunpack.c.l.b16 %v6332
        %v6461 = vunpack.c.l.b16 %v6333
        %v6462 = vunpack.c.l.b16 %v6334
        %v6463 = vpack.c.b16 %v6400, %v6399
        %v6464 = vpack.c.b16 %v6402, %v6401
        %v6465 = vpack.c.b16 %v6404, %v6403
        %v6466 = vpack.c.b16 %v6406, %v6405
        %v6467 = vpack.c.b16 %v6408, %v6407
        %v6468 = vpack.c.b16 %v6410, %v6409
        %v6469 = vpack.c.b16 %v6412, %v6411
        %v6470 = vpack.c.b16 %v6414, %v6413
        %v6471 = vpack.c.b16 %v6416, %v6415
        %v6472 = vpack.c.b16 %v6418, %v6417
        %v6473 = vpack.c.b16 %v6420, %v6419
        %v6474 = vpack.c.b16 %v6422, %v6421
        %v6475 = vpack.c.b16 %v6424, %v6423
        %v6476 = vpack.c.b16 %v6426, %v6425
        %v6477 = vpack.c.b16 %v6428, %v6427
        %v6478 = vpack.c.b16 %v6430, %v6429
        %v6479 = vpack.c.b16 %v6432, %v6431
        %v6480 = vpack.c.b16 %v6434, %v6433
        %v6481 = vpack.c.b16 %v6436, %v6435
        %v6482 = vpack.c.b16 %v6438, %v6437
        %v6483 = vpack.c.b16 %v6440, %v6439
        %v6484 = vpack.c.b16 %v6442, %v6441
        %v6485 = vpack.c.b16 %v6444, %v6443
        %v6486 = vpack.c.b16 %v6446, %v6445
        %v6487 = vpack.c.b16 %v6448, %v6447
        %v6488 = vpack.c.b16 %v6450, %v6449
        %v6489 = vpack.c.b16 %v6452, %v6451
        %v6490 = vpack.c.b16 %v6454, %v6453
        %v6491 = vpack.c.b16 %v6456, %v6455
        %v6492 = vpack.c.b16 %v6458, %v6457
        %v6493 = vpack.c.b16 %v6460, %v6459
        %v6494 = vpack.c.b16 %v6462, %v6461
        %6527 = vmatprep.subr.bf16.mxu0 0
        %6528 = vmatpush1.bf16.msra.mxu0 %v6463
        %6529 = vmatprep.subr.bf16.mxu0 0
        %6530 = vmatpush1.bf16.msra.mxu0 %v6464
        %6531 = vmatprep.subr.bf16.mxu0 0
        %6532 = vmatpush1.bf16.msra.mxu0 %v6465
        %6533 = vmatprep.subr.bf16.mxu0 0
        %6534 = vmatpush1.bf16.msra.mxu0 %v6466
        %6535 = vmatprep.subr.bf16.mxu0 0
        %6536 = vmatpush1.bf16.msra.mxu0 %v6467
        %6537 = vmatprep.subr.bf16.mxu0 0
        %6538 = vmatpush1.bf16.msra.mxu0 %v6468
        %6539 = vmatprep.subr.bf16.mxu0 0
        %6540 = vmatpush1.bf16.msra.mxu0 %v6469
        %6541 = vmatprep.subr.bf16.mxu0 0
        %6542 = vmatpush1.bf16.msra.mxu0 %v6470
        %6543 = vmatprep.subr.bf16.mxu0 0
        %6544 = vmatpush1.bf16.msra.mxu0 %v6471
        %6545 = vmatprep.subr.bf16.mxu0 0
        %6546 = vmatpush1.bf16.msra.mxu0 %v6472
        %6547 = vmatprep.subr.bf16.mxu0 0
        %6548 = vmatpush1.bf16.msra.mxu0 %v6473
        %6549 = vmatprep.subr.bf16.mxu0 0
        %6550 = vmatpush1.bf16.msra.mxu0 %v6474
        %6551 = vmatprep.subr.bf16.mxu0 0
        %6552 = vmatpush1.bf16.msra.mxu0 %v6475
        %6553 = vmatprep.subr.bf16.mxu0 0
        %6554 = vmatpush1.bf16.msra.mxu0 %v6476
        %6555 = vmatprep.subr.bf16.mxu0 0
        %6556 = vmatpush1.bf16.msra.mxu0 %v6477
        %6557 = vmatprep.subr.bf16.mxu0 0
        %6558 = vmatpush1.bf16.msra.mxu0 %v6478
        %6559 = vmatprep.mubr.bf16.mxu0 %v6268
        %6560 = vmatmul.mubr.bf16.gmra.mrb[0].mxu0 %v6267
        %v6561 = vpop.f32.mrb[0].mxu0
        %v6562 = vadd.f32 0.0, %v6561
        %v6563 = vpop.f32.mrb[0].mxu0
        %v6564 = vpop.f32.mrb[0].mxu0
        %v6565 = vpop.f32.mrb[0].mxu0
        %6566 = vdwg.mxu0
        %6567 = vmatprep.subr.bf16.mxu0 0
        %6568 = vmatpush1.bf16.msra.mxu0 %v6479
        %6569 = vmatprep.subr.bf16.mxu0 0
        %6570 = vmatpush1.bf16.msra.mxu0 %v6480
        %6571 = vmatprep.subr.bf16.mxu0 0
        %6572 = vmatpush1.bf16.msra.mxu0 %v6481
        %6573 = vmatprep.subr.bf16.mxu0 0
        %6574 = vmatpush1.bf16.msra.mxu0 %v6482
        %6575 = vmatprep.subr.bf16.mxu0 0
        %6576 = vmatpush1.bf16.msra.mxu0 %v6483
        %6577 = vmatprep.subr.bf16.mxu0 0
        %6578 = vmatpush1.bf16.msra.mxu0 %v6484
        %6579 = vmatprep.subr.bf16.mxu0 0
        %6580 = vmatpush1.bf16.msra.mxu0 %v6485
        %6581 = vmatprep.subr.bf16.mxu0 0
        %6582 = vmatpush1.bf16.msra.mxu0 %v6486
        %6583 = vmatprep.subr.bf16.mxu0 0
        %6584 = vmatpush1.bf16.msra.mxu0 %v6487
        %6585 = vmatprep.subr.bf16.mxu0 0
        %6586 = vmatpush1.bf16.msra.mxu0 %v6488
        %6587 = vmatprep.subr.bf16.mxu0 0
        %6588 = vmatpush1.bf16.msra.mxu0 %v6489
        %6589 = vmatprep.subr.bf16.mxu0 0
        %6590 = vmatpush1.bf16.msra.mxu0 %v6490
        %6591 = vmatprep.subr.bf16.mxu0 0
        %6592 = vmatpush1.bf16.msra.mxu0 %v6491
        %6593 = vmatprep.subr.bf16.mxu0 0
        %6594 = vmatpush1.bf16.msra.mxu0 %v6492
        %6595 = vmatprep.subr.bf16.mxu0 0
        %6596 = vmatpush1.bf16.msra.mxu0 %v6493
        %6597 = vmatprep.subr.bf16.mxu0 0
        %6598 = vmatpush1.bf16.msra.mxu0 %v6494
        %6599 = vmatprep.mubr.bf16.mxu0 %v6270
        %6600 = vmatmul.mubr.bf16.gmra.mrb[0].mxu0 %v6269
        %v6601 = vpop.f32.mrb[0].mxu0
        %v6602 = vadd.f32 %v6562, %v6601
        %v6603 = vpop.f32.mrb[0].mxu0
        %v6604 = vpop.f32.mrb[0].mxu0
        %v6605 = vpop.f32.mrb[0].mxu0
        %6606 = vdwg.mxu0
        %v6607 = vadd.f32 %v6266, %v6602
        %vm6608 = vcmask 130048
        %6609 = vst.msk [vmem:[#allocation3] sm:$0xff] %vm6608, %v6607
        %p6610 = scmp.eq.s32.totalorder %s25, 3
        // Predicated region
        $region77: #{tpu_custom_call.1} parent=47 // pred_check
          %p6611 = pneg %p6610
        $region78: #{tpu_custom_call.1} parent=47 // pred_check_branch
          %6613 = sbr.rel (%p6611) target = $region80
        $region79: #{tpu_custom_call.1} parent=47 // pred_region
          %v6614 = vld [vmem:[#allocation3] sm:$0xff]
          %v6615 = vld [vmem:[#allocation13] sm:$0x1]
          %v6617 = vlaneseq
          %v6618 = vshrl.u32 %v6617, 7
          %v6619 = vsub.s32 0, %v6618
          %v6620 = vrot.slane %v6615, %v6619
          %v6622 = vadd.f32 %v6614, %v6620
          %6623 = vst.msk [vmem:[#allocation15] sm:$0xff] %vm6608, %v6622
        $region80: #{tpu_custom_call.1} parent=47 // pred_fallthru
          _
        // Predicated region
        $region81: #{tpu_custom_call.1} parent=47 // pred_check
          %p6624 = pneg %p200
        $region82: #{tpu_custom_call.1} parent=47 // pred_check_branch
          %6626 = sbr.rel (%p6624) target = $region84
        $region83: #{tpu_custom_call.1} parent=47 // pred_region
          %s6628 = ssub.s32 128, 128
          %6629 = vsyncadd [#allocation6], %s6628
          %s6631 = sshll.u32 [#allocation15], 4
          %s6632 = int_to_ptr.vmem [resolvable:$true] %s6631
          %6634 = dma.vmem_to_hbm [thread:$0]  %s6632, 128, %s7, [#allocation6]
        $region84: #{tpu_custom_call.1} parent=47 // pred_fallthru
          _
        // Predicated region
        $region85: #{tpu_custom_call.1} parent=47 // pred_check
          %p6635 = pneg %p200
        $region86: #{tpu_custom_call.1} parent=47 // pred_check_branch
          %6637 = sbr.rel (%p6635) target = $region88
        $region87: #{tpu_custom_call.1} parent=47 // pred_region
          %6638 = dma.done [#allocation6], 128
        $region88: #{tpu_custom_call.1} parent=47 // pred_fallthru
          _
      $region48: #{tpu_custom_call.1} parent=5 // pred_fallthru
        _
      %p6639 = scmp.le.s32.totalorder 2, %s20
      // Predicated region
      $region89: #{tpu_custom_call.1} parent=5 // pred_check
        %p6640 = pneg %p6639
      $region90: #{tpu_custom_call.1} parent=5 // pred_check_branch
        %6642 = sbr.rel (%p6640) target = $region92
      $region91: #{tpu_custom_call.1} parent=5 // pred_region
        %s6643 = ssub.s32 %s20, 2
      $region92: #{tpu_custom_call.1} parent=5 // pred_fallthru
        _
    $region6: #{tpu_custom_call.1} parent=1 // loop_footer
      %s24 = sadd.s32 1, %s20
    $region7: #{tpu_custom_call.1} parent=1 // loop_footer_branch
      %19 = sbr.rel target = $region3
    $region8: #{tpu_custom_call.1} parent=1 // loop_exit
      _
    %6644 = vsyncpa [#allocation5], 1
    %s6645 = scalar_lea.sflag [#allocation5], 1
    %6646 = vsyncpa %s6645, 1
    %6647 = vsyncpa [#allocation8], 1
    %6648 = vsyncpa [#allocation11], 1
    %s6649 = scalar_lea.sflag [#allocation11], 1
    %6650 = vsyncpa %s6649, 1
    %6651 = vsyncpa [#allocation14], 1
    %6652 = vsyncpa [#allocation6], 1
    %s6653 = scalar_lea.sflag [#allocation6], 1
    %6654 = vsyncpa %s6653, 1

</llo_original>
